<compile_context>
chip_gen: v6e
topology: v6e:2x2x1
jax: 0.10.0
libtpu: 0.0.40
codegen_flags: <defaults>
</compile_context>

<pallas_src>
import jax
import jax.numpy as jnp
from jax.experimental import pallas as pl
from jax.experimental.pallas import tpu as pltpu

_LANE = 128
_BN_EPS = 1e-5


def _round_up(v, m):
    return (v + m - 1) // m * m


# ---------------------------------------------------------------------------
# Kernel helpers
# ---------------------------------------------------------------------------
def _im2col_conv(pad_scr, pat_scr, w_ref):
    """3x3 conv as a single MXU contraction: (M, 9*Cin) @ (9*Cin, Cout)."""
    Hp, Wp, Cin = pad_scr.shape
    Ho, Wo = Hp - 2, Wp - 2
    M = Ho * Wo
    for k in range(9):                                  # static unroll: 9 patch copies
        dy, dx = k // 3, k % 3
        pat_scr[:, k * Cin:(k + 1) * Cin] = (
            pad_scr[dy:dy + Ho, dx:dx + Wo, :].reshape(M, Cin))
    return jnp.dot(pat_scr[...], w_ref[...],
                   preferred_element_type=jnp.float32)  # (M, Cout) f32


def _accum_stats(stats_ref, z):
    """Accumulate per-channel [sum; sum of squares] across grid steps."""
    @pl.when(pl.program_id(0) == 0)
    def _():
        stats_ref[...] = jnp.zeros_like(stats_ref)
    stats_ref[0:1, :] += jnp.sum(z, axis=0, keepdims=True)
    stats_ref[1:2, :] += jnp.sum(z * z, axis=0, keepdims=True)


# ---------------------------------------------------------------------------
# Kernels
# ---------------------------------------------------------------------------
def _pool_conv_kernel(x_ref, w_ref, z_ref, stats_ref, pad_scr, pat_scr):
    # x_ref   : (1, Ho, 2, Wo, 2*Cin)  free row-major regrouping of padded NHWC x
    # w_ref   : (9*Cin, Cout)          im2col-packed conv1 weights
    # z_ref   : (1, Ho, Wo, Cout)      raw (pre-BN) conv1 output
    # stats   : (2, Cout)              BN1 sum / sumsq, accumulated over the grid
    _, Ho, _, Wo, C2 = x_ref.shape
    Cin = C2 // 2
    Cout = z_ref.shape[-1]

    # Fused 2x2 max-pool: slab indexing over row pairs, 128-aligned lane slices
    # over column pairs (no strided loads, no extra HBM traffic).
    top = x_ref[0, :, 0, :, :]                       # rows 2*ho
    bot = x_ref[0, :, 1, :, :]                       # rows 2*ho + 1
    m = jnp.maximum(top, bot)                        # (Ho, Wo, 2*Cin)
    p = jnp.maximum(m[..., :Cin], m[..., Cin:])      # (Ho, Wo, Cin)

    # Zero-padded activation for the padding=1 conv.
    pad_scr[...] = jnp.zeros_like(pad_scr)
    pad_scr[1:Ho + 1, 1:Wo + 1, :] = p.astype(pad_scr.dtype)

    z = _im2col_conv(pad_scr, pat_scr, w_ref)        # (Ho*Wo, Cout) f32
    z_ref[...] = z.reshape(1, Ho, Wo, Cout)
    _accum_stats(stats_ref, z)


def _bn_relu_conv_kernel(z1_ref, aff_ref, w_ref, z2_ref, stats_ref,
                         pad_scr, pat_scr):
    # Apply folded BN1 scale/shift + ReLU, then conv2 via im2col; accumulate BN2 stats.
    _, Ho, Wo, Cin = z1_ref.shape
    Cout = z2_ref.shape[-1]

    scale = aff_ref[0:1, :].reshape(1, 1, Cin)       # hoisted, broadcast once
    shift = aff_ref[1:2, :].reshape(1, 1, Cin)
    act = jnp.maximum(z1_ref[0] * scale + shift, 0.0)

    pad_scr[...] = jnp.zeros_like(pad_scr)
    pad_scr[1:Ho + 1, 1:Wo + 1, :] = act

    z = _im2col_conv(pad_scr, pat_scr, w_ref)
    z2_ref[...] = z.reshape(1, Ho, Wo, Cout)
    _accum_stats(stats_ref, z)


def _bn_relu_kernel(z_ref, aff_ref, o_ref):
    # Final folded BN2 scale/shift + ReLU (elementwise, lane-dense).
    C = z_ref.shape[-1]
    scale = aff_ref[0:1, :].reshape(1, 1, 1, C)
    shift = aff_ref[1:2, :].reshape(1, 1, 1, C)
    o_ref[...] = jnp.maximum(z_ref[...] * scale + shift, 0.0).astype(o_ref.dtype)


# ---------------------------------------------------------------------------
# Wrapper-side glue (weight packing, BN folding, layout plumbing)
# ---------------------------------------------------------------------------
def _pack_conv_weights(w_oihw, cin_pad, cout_pad):
    """(Cout, Cin, 3, 3) -> (9*Cin_pad, Cout_pad), tap-major, zero-padded channels."""
    cout, cin, kh, kw = w_oihw.shape
    assert (kh, kw) == (3, 3)
    w = jnp.transpose(w_oihw, (2, 3, 1, 0)).astype(jnp.float32)   # (3,3,Cin,Cout)
    w = jnp.pad(w, ((0, 0), (0, 0), (0, cin_pad - cin), (0, cout_pad - cout)))
    return w.reshape(9 * cin_pad, cout_pad)


def _bn_fold(stats, gamma, beta, count, c_pad):
    """Fold training-mode BatchNorm (batch stats) into per-channel scale/shift."""
    s, ss = stats[0], stats[1]
    mean = s / count
    var = jnp.maximum(ss / count - mean * mean, 0.0)              # biased variance
    g = jnp.pad(gamma.astype(jnp.float32), (0, c_pad - gamma.shape[0]))
    b = jnp.pad(beta.astype(jnp.float32), (0, c_pad - beta.shape[0]))
    scale = g * jax.lax.rsqrt(var + _BN_EPS)
    shift = b - mean * scale
    return jnp.stack([scale, shift], axis=0)                       # (2, c_pad)


def down2d_forward(x_nchw, params):
    """Down2d forward (training-mode BN). Input NCHW -> output NCHW (N, Cout, H/2, W/2)."""
    N, Cin, H, W = x_nchw.shape
    assert H % 2 == 0 and W % 2 == 0
    Ho, Wo = H // 2, W // 2
    C1 = params["w1"].shape[0]
    C2 = params["w2"].shape[0]
    Cin_p = _round_up(Cin, _LANE)
    C1_p = _round_up(C1, _LANE)
    C2_p = _round_up(C2, _LANE)
    count = N * Ho * Wo

    cparams_seq = pltpu.CompilerParams(
        dimension_semantics=("arbitrary",),        # stats block revisited across grid
        vmem_limit_bytes=32 * 1024 * 1024)
    cparams_par = pltpu.CompilerParams(
        dimension_semantics=("parallel",),
        vmem_limit_bytes=32 * 1024 * 1024)

    # NCHW -> NHWC (C on lanes), pad channels to a 128-lane multiple so all
    # matmul operands and stores are lane-dense.
    x = jnp.transpose(x_nchw, (0, 2, 3, 1)).astype(jnp.float32)
    x = jnp.pad(x, ((0, 0), (0, 0), (0, 0), (0, Cin_p - Cin)))
    # Free row-major regrouping: the 2x2 pool becomes slab indexing + 128-aligned
    # lane slicing inside the kernel.
    x6 = x.reshape(N, Ho, 2, Wo, 2 * Cin_p)

    w1 = _pack_conv_weights(params["w1"], Cin_p, C1_p)
    w2 = _pack_conv_weights(params["w2"], C1_p, C2_p)
    # NOTE: conv biases (params["b1"]/["b2"]) are cancelled exactly by the
    # training-mode BatchNorm mean subtraction, so they are intentionally unused.

    # --- Stage 1: fused maxpool + conv1 (+ BN1 stats) -----------------------
    z1, stats1 = pl.pallas_call(
        _pool_conv_kernel,
        grid=(N,),
        in_specs=[
            pl.BlockSpec((1, Ho, 2, Wo, 2 * Cin_p), lambda n: (n, 0, 0, 0, 0)),
            pl.BlockSpec((9 * Cin_p, C1_p), lambda n: (0, 0)),
        ],
        out_specs=(
            pl.BlockSpec((1, Ho, Wo, C1_p), lambda n: (n, 0, 0, 0)),
            pl.BlockSpec((2, C1_p), lambda n: (0, 0)),
        ),
        out_shape=(
            jax.ShapeDtypeStruct((N, Ho, Wo, C1_p), jnp.float32),
            jax.ShapeDtypeStruct((2, C1_p), jnp.float32),
        ),
        scratch_shapes=[
            pltpu.VMEM((Ho + 2, Wo + 2, Cin_p), jnp.float32),   # padded activation
            pltpu.VMEM((Ho * Wo, 9 * Cin_p), jnp.float32),      # im2col matrix
        ],
        compiler_params=cparams_seq,
    )(x6, w1)
    aff1 = _bn_fold(stats1, params["g1"], params["beta1"], count, C1_p)

    # --- Stage 2: BN1 + ReLU + conv2 (+ BN2 stats) --------------------------
    z2, stats2 = pl.pallas_call(
        _bn_relu_conv_kernel,
        grid=(N,),
        in_specs=[
            pl.BlockSpec((1, Ho, Wo, C1_p), lambda n: (n, 0, 0, 0)),
            pl.BlockSpec((2, C1_p), lambda n: (0, 0)),
            pl.BlockSpec((9 * C1_p, C2_p), lambda n: (0, 0)),
        ],
        out_specs=(
            pl.BlockSpec((1, Ho, Wo, C2_p), lambda n: (n, 0, 0, 0)),
            pl.BlockSpec((2, C2_p), lambda n: (0, 0)),
        ),
        out_shape=(
            jax.ShapeDtypeStruct((N, Ho, Wo, C2_p), jnp.float32),
            jax.ShapeDtypeStruct((2, C2_p), jnp.float32),
        ),
        scratch_shapes=[
            pltpu.VMEM((Ho + 2, Wo + 2, C1_p), jnp.float32),
            pltpu.VMEM((Ho * Wo, 9 * C1_p), jnp.float32),
        ],
        compiler_params=cparams_seq,
    )(z1, aff1, w2)
    aff2 = _bn_fold(stats2, params["g2"], params["beta2"], count, C2_p)

    # --- Stage 3: BN2 + ReLU --------------------------------------------------
    y = pl.pallas_call(
        _bn_relu_kernel,
        grid=(N,),
        in_specs=[
            pl.BlockSpec((1, Ho, Wo, C2_p), lambda n: (n, 0, 0, 0)),
            pl.BlockSpec((2, C2_p), lambda n: (0, 0)),
        ],
        out_specs=pl.BlockSpec((1, Ho, Wo, C2_p), lambda n: (n, 0, 0, 0)),
        out_shape=jax.ShapeDtypeStruct((N, Ho, Wo, C2_p), x_nchw.dtype),
        compiler_params=cparams_par,
    )(z2, aff2)

    y = y[..., :C2]                                   # drop channel padding
    return jnp.transpose(y, (0, 3, 1, 2))             # NHWC -> NCHW


# ---------------------------------------------------------------------------
if __name__ == "__main__":
    key = jax.random.PRNGKey(0)
    N, Cin, H, W = 2, 4, 16, 16
    Cout = 8

    ks = jax.random.split(key, 9)
    x = jax.random.normal(ks[0], (N, Cin, H, W), jnp.float32)

    params = dict(
        w1=0.1 * jax.random.normal(ks[1], (Cout, Cin, 3, 3), jnp.float32),
        b1=0.1 * jax.random.normal(ks[2], (Cout,), jnp.float32),   # cancelled by BN
        g1=1.0 + 0.1 * jax.random.normal(ks[3], (Cout,), jnp.float32),
        beta1=0.1 * jax.random.normal(ks[4], (Cout,), jnp.float32),
        w2=0.1 * jax.random.normal(ks[5], (Cout, Cout, 3, 3), jnp.float32),
        b2=0.1 * jax.random.normal(ks[6], (Cout,), jnp.float32),   # cancelled by BN
        g2=1.0 + 0.1 * jax.random.normal(ks[7], (Cout,), jnp.float32),
        beta2=0.1 * jax.random.normal(ks[8], (Cout,), jnp.float32),
    )

    y = jax.jit(down2d_forward)(x, params)
    jax.block_until_ready(y)
    assert y.shape == (N, Cout, H // 2, W // 2), y.shape
    assert bool(jnp.all(jnp.isfinite(y)))
    print("KERNEL_OK")
</pallas_src>

<mosaic_0001>
module attributes {stable_mosaic.version = 11 : i64} {
  func.func @_bn_relu_conv_kernel(%arg0: i32, %arg1: memref<1x8x8x128xf32, #tpu.memory_space<vmem>>, %arg2: memref<2x128xf32, #tpu.memory_space<vmem>>, %arg3: memref<1152x128xf32, #tpu.memory_space<vmem>>, %arg4: memref<1x8x8x128xf32, #tpu.memory_space<vmem>>, %arg5: memref<2x128xf32, #tpu.memory_space<vmem>>, %arg6: memref<10x10x128xf32, #tpu.memory_space<vmem>>, %arg7: memref<64x1152xf32, #tpu.memory_space<vmem>>) attributes {dimension_semantics = [#tpu.dimension_semantics<arbitrary>], iteration_bounds = array<i64: 2>, scalar_prefetch = 0 : i64, scratch_operands = 2 : i64, tpu.core_type = #tpu.core_type<tc>, window_params = [{transform_indices = @transform_0, window_bounds = array<i64: 1, 8, 8, 128>}, {pipeline_mode = #tpu.pipeline_mode<synchronous>, transform_indices = @transform_1, window_bounds = array<i64: 2, 128>}, {pipeline_mode = #tpu.pipeline_mode<synchronous>, transform_indices = @transform_2, window_bounds = array<i64: 1152, 128>}, {transform_indices = @transform_3, window_bounds = array<i64: 1, 8, 8, 128>}, {pipeline_mode = #tpu.pipeline_mode<synchronous>, transform_indices = @transform_4, window_bounds = array<i64: 2, 128>}]} {
    %c0 = arith.constant 0 : index
    %c0_0 = arith.constant 0 : index
    %0 = vector.load %arg2[%c0, %c0_0] : memref<2x128xf32, #tpu.memory_space<vmem>>, vector<1x128xf32>
    %1 = vector.shape_cast %0 : vector<1x128xf32> to vector<1x1x128xf32>
    %c1 = arith.constant 1 : index
    %c0_1 = arith.constant 0 : index
    %2 = vector.load %arg2[%c1, %c0_1] : memref<2x128xf32, #tpu.memory_space<vmem>>, vector<1x128xf32>
    %3 = vector.shape_cast %2 : vector<1x128xf32> to vector<1x1x128xf32>
    %c0_2 = arith.constant 0 : index
    %c0_3 = arith.constant 0 : index
    %c0_4 = arith.constant 0 : index
    %c0_5 = arith.constant 0 : index
    %4 = vector.load %arg1[%c0_2, %c0_3, %c0_4, %c0_5] : memref<1x8x8x128xf32, #tpu.memory_space<vmem>>, vector<1x8x8x128xf32>
    %5 = vector.shape_cast %4 : vector<1x8x8x128xf32> to vector<8x8x128xf32>
    %6 = vector.broadcast %1 : vector<1x1x128xf32> to vector<8x8x128xf32>
    %7 = arith.mulf %5, %6 : vector<8x8x128xf32>
    %8 = vector.broadcast %3 : vector<1x1x128xf32> to vector<8x8x128xf32>
    %9 = arith.addf %7, %8 : vector<8x8x128xf32>
    %cst = arith.constant 0.000000e+00 : f32
    %10 = vector.broadcast %cst : f32 to vector<8x8x128xf32>
    %11 = arith.maximumf %9, %10 : vector<8x8x128xf32>
    %cst_6 = arith.constant 0.000000e+00 : f32
    %12 = vector.broadcast %cst_6 : f32 to vector<10x10x128xf32>
    %c0_7 = arith.constant 0 : index
    %c0_8 = arith.constant 0 : index
    %c0_9 = arith.constant 0 : index
    %13 = vector.load %arg6[%c0_7, %c0_8, %c0_9] : memref<10x10x128xf32, #tpu.memory_space<vmem>>, vector<10x10x128xf32>
    tpu.vector_store %arg6[%c0_7, %c0_8, %c0_9], %12 {strides = array<i32>} : memref<10x10x128xf32, #tpu.memory_space<vmem>>, vector<10x10x128xf32>,
    %c1_10 = arith.constant 1 : index
    %c1_11 = arith.constant 1 : index
    %c0_12 = arith.constant 0 : index
    %14 = vector.load %arg6[%c1_10, %c1_11, %c0_12] : memref<10x10x128xf32, #tpu.memory_space<vmem>>, vector<8x8x128xf32>
    tpu.vector_store %arg6[%c1_10, %c1_11, %c0_12], %11 {strides = array<i32>} : memref<10x10x128xf32, #tpu.memory_space<vmem>>, vector<8x8x128xf32>,
    %c0_13 = arith.constant 0 : index
    %c0_14 = arith.constant 0 : index
    %c0_15 = arith.constant 0 : index
    %15 = vector.load %arg6[%c0_13, %c0_14, %c0_15] : memref<10x10x128xf32, #tpu.memory_space<vmem>>, vector<8x8x128xf32>
    %16 = vector.shape_cast %15 : vector<8x8x128xf32> to vector<64x128xf32>
    %c0_16 = arith.constant 0 : index
    %c0_17 = arith.constant 0 : index
    %17 = vector.load %arg7[%c0_16, %c0_17] : memref<64x1152xf32, #tpu.memory_space<vmem>>, vector<64x128xf32>
    tpu.vector_store %arg7[%c0_16, %c0_17], %16 {strides = array<i32>} : memref<64x1152xf32, #tpu.memory_space<vmem>>, vector<64x128xf32>,
    %c0_18 = arith.constant 0 : index
    %c1_19 = arith.constant 1 : index
    %c0_20 = arith.constant 0 : index
    %18 = vector.load %arg6[%c0_18, %c1_19, %c0_20] : memref<10x10x128xf32, #tpu.memory_space<vmem>>, vector<8x8x128xf32>
    %19 = vector.shape_cast %18 : vector<8x8x128xf32> to vector<64x128xf32>
    %c0_21 = arith.constant 0 : index
    %c128 = arith.constant 128 : index
    %20 = vector.load %arg7[%c0_21, %c128] : memref<64x1152xf32, #tpu.memory_space<vmem>>, vector<64x128xf32>
    tpu.vector_store %arg7[%c0_21, %c128], %19 {strides = array<i32>} : memref<64x1152xf32, #tpu.memory_space<vmem>>, vector<64x128xf32>,
    %c0_22 = arith.constant 0 : index
    %c2 = arith.constant 2 : index
    %c0_23 = arith.constant 0 : index
    %21 = vector.load %arg6[%c0_22, %c2, %c0_23] : memref<10x10x128xf32, #tpu.memory_space<vmem>>, vector<8x8x128xf32>
    %22 = vector.shape_cast %21 : vector<8x8x128xf32> to vector<64x128xf32>
    %c0_24 = arith.constant 0 : index
    %c256 = arith.constant 256 : index
    %23 = vector.load %arg7[%c0_24, %c256] : memref<64x1152xf32, #tpu.memory_space<vmem>>, vector<64x128xf32>
    tpu.vector_store %arg7[%c0_24, %c256], %22 {strides = array<i32>} : memref<64x1152xf32, #tpu.memory_space<vmem>>, vector<64x128xf32>,
    %c1_25 = arith.constant 1 : index
    %c0_26 = arith.constant 0 : index
    %c0_27 = arith.constant 0 : index
    %24 = vector.load %arg6[%c1_25, %c0_26, %c0_27] : memref<10x10x128xf32, #tpu.memory_space<vmem>>, vector<8x8x128xf32>
    %25 = vector.shape_cast %24 : vector<8x8x128xf32> to vector<64x128xf32>
    %c0_28 = arith.constant 0 : index
    %c384 = arith.constant 384 : index
    %26 = vector.load %arg7[%c0_28, %c384] : memref<64x1152xf32, #tpu.memory_space<vmem>>, vector<64x128xf32>
    tpu.vector_store %arg7[%c0_28, %c384], %25 {strides = array<i32>} : memref<64x1152xf32, #tpu.memory_space<vmem>>, vector<64x128xf32>,
    %c1_29 = arith.constant 1 : index
    %c1_30 = arith.constant 1 : index
    %c0_31 = arith.constant 0 : index
    %27 = vector.load %arg6[%c1_29, %c1_30, %c0_31] : memref<10x10x128xf32, #tpu.memory_space<vmem>>, vector<8x8x128xf32>
    %28 = vector.shape_cast %27 : vector<8x8x128xf32> to vector<64x128xf32>
    %c0_32 = arith.constant 0 : index
    %c512 = arith.constant 512 : index
    %29 = vector.load %arg7[%c0_32, %c512] : memref<64x1152xf32, #tpu.memory_space<vmem>>, vector<64x128xf32>
    tpu.vector_store %arg7[%c0_32, %c512], %28 {strides = array<i32>} : memref<64x1152xf32, #tpu.memory_space<vmem>>, vector<64x128xf32>,
    %c1_33 = arith.constant 1 : index
    %c2_34 = arith.constant 2 : index
    %c0_35 = arith.constant 0 : index
    %30 = vector.load %arg6[%c1_33, %c2_34, %c0_35] : memref<10x10x128xf32, #tpu.memory_space<vmem>>, vector<8x8x128xf32>
    %31 = vector.shape_cast %30 : vector<8x8x128xf32> to vector<64x128xf32>
    %c0_36 = arith.constant 0 : index
    %c640 = arith.constant 640 : index
    %32 = vector.load %arg7[%c0_36, %c640] : memref<64x1152xf32, #tpu.memory_space<vmem>>, vector<64x128xf32>
    tpu.vector_store %arg7[%c0_36, %c640], %31 {strides = array<i32>} : memref<64x1152xf32, #tpu.memory_space<vmem>>, vector<64x128xf32>,
    %c2_37 = arith.constant 2 : index
    %c0_38 = arith.constant 0 : index
    %c0_39 = arith.constant 0 : index
    %33 = vector.load %arg6[%c2_37, %c0_38, %c0_39] : memref<10x10x128xf32, #tpu.memory_space<vmem>>, vector<8x8x128xf32>
    %34 = vector.shape_cast %33 : vector<8x8x128xf32> to vector<64x128xf32>
    %c0_40 = arith.constant 0 : index
    %c768 = arith.constant 768 : index
    %35 = vector.load %arg7[%c0_40, %c768] : memref<64x1152xf32, #tpu.memory_space<vmem>>, vector<64x128xf32>
    tpu.vector_store %arg7[%c0_40, %c768], %34 {strides = array<i32>} : memref<64x1152xf32, #tpu.memory_space<vmem>>, vector<64x128xf32>,
    %c2_41 = arith.constant 2 : index
    %c1_42 = arith.constant 1 : index
    %c0_43 = arith.constant 0 : index
    %36 = vector.load %arg6[%c2_41, %c1_42, %c0_43] : memref<10x10x128xf32, #tpu.memory_space<vmem>>, vector<8x8x128xf32>
    %37 = vector.shape_cast %36 : vector<8x8x128xf32> to vector<64x128xf32>
    %c0_44 = arith.constant 0 : index
    %c896 = arith.constant 896 : index
    %38 = vector.load %arg7[%c0_44, %c896] : memref<64x1152xf32, #tpu.memory_space<vmem>>, vector<64x128xf32>
    tpu.vector_store %arg7[%c0_44, %c896], %37 {strides = array<i32>} : memref<64x1152xf32, #tpu.memory_space<vmem>>, vector<64x128xf32>,
    %c2_45 = arith.constant 2 : index
    %c2_46 = arith.constant 2 : index
    %c0_47 = arith.constant 0 : index
    %39 = vector.load %arg6[%c2_45, %c2_46, %c0_47] : memref<10x10x128xf32, #tpu.memory_space<vmem>>, vector<8x8x128xf32>
    %40 = vector.shape_cast %39 : vector<8x8x128xf32> to vector<64x128xf32>
    %c0_48 = arith.constant 0 : index
    %c1024 = arith.constant 1024 : index
    %41 = vector.load %arg7[%c0_48, %c1024] : memref<64x1152xf32, #tpu.memory_space<vmem>>, vector<64x128xf32>
    tpu.vector_store %arg7[%c0_48, %c1024], %40 {strides = array<i32>} : memref<64x1152xf32, #tpu.memory_space<vmem>>, vector<64x128xf32>,
    %c0_49 = arith.constant 0 : index
    %c0_50 = arith.constant 0 : index
    %42 = vector.load %arg7[%c0_49, %c0_50] : memref<64x1152xf32, #tpu.memory_space<vmem>>, vector<64x1152xf32>
    %c0_51 = arith.constant 0 : index
    %c0_52 = arith.constant 0 : index
    %43 = vector.load %arg3[%c0_51, %c0_52] : memref<1152x128xf32, #tpu.memory_space<vmem>>, vector<1152x128xf32>
    %cst_53 = arith.constant dense<0.000000e+00> : vector<64x128xf32>
    %44 = tpu.matmul %42, %43, %cst_53 {dimension_numbers = #tpu.dot_dimension_numbers<[1], [0], [0], [1], [0, 0, 1, 1], [], []>} : vector<64x1152xf32>, vector<1152x128xf32>, vector<64x128xf32> -> vector<64x128xf32>
    %45 = vector.shape_cast %44 : vector<64x128xf32> to vector<1x8x8x128xf32>
    %c0_54 = arith.constant 0 : index
    %c0_55 = arith.constant 0 : index
    %c0_56 = arith.constant 0 : index
    %c0_57 = arith.constant 0 : index
    %46 = vector.load %arg4[%c0_54, %c0_55, %c0_56, %c0_57] : memref<1x8x8x128xf32, #tpu.memory_space<vmem>>, vector<1x8x8x128xf32>
    tpu.vector_store %arg4[%c0_54, %c0_55, %c0_56, %c0_57], %45 {strides = array<i32>} : memref<1x8x8x128xf32, #tpu.memory_space<vmem>>, vector<1x8x8x128xf32>,
    %c0_i32 = arith.constant 0 : i32
    %47 = arith.cmpi eq, %arg0, %c0_i32 : i32
    %48 = arith.extui %47 : i1 to i32
    %c0_i32_58 = arith.constant 0 : i32
    %49 = arith.cmpi ne, %48, %c0_i32_58 : i32
    scf.if %49 {
      %cst_69 = arith.constant 0.000000e+00 : f32
      %61 = vector.broadcast %cst_69 : f32 to vector<2x128xf32>
      %c0_70 = arith.constant 0 : index
      %c0_71 = arith.constant 0 : index
      %62 = vector.load %arg5[%c0_70, %c0_71] : memref<2x128xf32, #tpu.memory_space<vmem>>, vector<2x128xf32>
      tpu.vector_store %arg5[%c0_70, %c0_71], %61 {strides = array<i32>} : memref<2x128xf32, #tpu.memory_space<vmem>>, vector<2x128xf32>,
    } else {
    }
    %c0_59 = arith.constant 0 : index
    %c0_60 = arith.constant 0 : index
    %50 = vector.load %arg5[%c0_59, %c0_60] : memref<2x128xf32, #tpu.memory_space<vmem>>, vector<1x128xf32>
    %cst_61 = arith.constant dense<0.000000e+00> : vector<128xf32>
    %51 = vector.multi_reduction <add>, %44, %cst_61 [0] : vector<64x128xf32> to vector<128xf32>
    %52 = vector.shape_cast %51 : vector<128xf32> to vector<1x128xf32>
    %53 = arith.addf %50, %52 : vector<1x128xf32>
    %c0_62 = arith.constant 0 : index
    %c0_63 = arith.constant 0 : index
    %54 = vector.load %arg5[%c0_62, %c0_63] : memref<2x128xf32, #tpu.memory_space<vmem>>, vector<1x128xf32>
    tpu.vector_store %arg5[%c0_62, %c0_63], %53 {strides = array<i32>} : memref<2x128xf32, #tpu.memory_space<vmem>>, vector<1x128xf32>,
    %c1_64 = arith.constant 1 : index
    %c0_65 = arith.constant 0 : index
    %55 = vector.load %arg5[%c1_64, %c0_65] : memref<2x128xf32, #tpu.memory_space<vmem>>, vector<1x128xf32>
    %56 = arith.mulf %44, %44 : vector<64x128xf32>
    %cst_66 = arith.constant dense<0.000000e+00> : vector<128xf32>
    %57 = vector.multi_reduction <add>, %56, %cst_66 [0] : vector<64x128xf32> to vector<128xf32>
    %58 = vector.shape_cast %57 : vector<128xf32> to vector<1x128xf32>
    %59 = arith.addf %55, %58 : vector<1x128xf32>
    %c1_67 = arith.constant 1 : index
    %c0_68 = arith.constant 0 : index
    %60 = vector.load %arg5[%c1_67, %c0_68] : memref<2x128xf32, #tpu.memory_space<vmem>>, vector<1x128xf32>
    tpu.vector_store %arg5[%c1_67, %c0_68], %59 {strides = array<i32>} : memref<2x128xf32, #tpu.memory_space<vmem>>, vector<1x128xf32>,
    return
  }
  func.func @transform_0(%arg0: i32) -> (i32, i32, i32, i32) {
    %c0_i32 = arith.constant 0 : i32
    %c0_i32_0 = arith.constant 0 : i32
    %c0_i32_1 = arith.constant 0 : i32
    %c0_i32_2 = arith.constant 0 : i32
    return %arg0, %c0_i32, %c0_i32_0, %c0_i32_1 : i32, i32, i32, i32
  }
  func.func @transform_1(%arg0: i32) -> (i32, i32) {
    %c0_i32 = arith.constant 0 : i32
    %c0_i32_0 = arith.constant 0 : i32
    %c0_i32_1 = arith.constant 0 : i32
    return %c0_i32, %c0_i32_0 : i32, i32
  }
  func.func @transform_2(%arg0: i32) -> (i32, i32) {
    %c0_i32 = arith.constant 0 : i32
    %c0_i32_0 = arith.constant 0 : i32
    %c0_i32_1 = arith.constant 0 : i32
    return %c0_i32, %c0_i32_0 : i32, i32
  }
  func.func @transform_3(%arg0: i32) -> (i32, i32, i32, i32) {
    %c0_i32 = arith.constant 0 : i32
    %c0_i32_0 = arith.constant 0 : i32
    %c0_i32_1 = arith.constant 0 : i32
    %c0_i32_2 = arith.constant 0 : i32
    return %arg0, %c0_i32, %c0_i32_0, %c0_i32_1 : i32, i32, i32, i32
  }
  func.func @transform_4(%arg0: i32) -> (i32, i32) {
    %c0_i32 = arith.constant 0 : i32
    %c0_i32_0 = arith.constant 0 : i32
    %c0_i32_1 = arith.constant 0 : i32
    return %c0_i32, %c0_i32_0 : i32, i32
  }
}

module attributes {stable_mosaic.version = 11 : i64} {
  func.func @_bn_relu_kernel(%arg0: i32, %arg1: memref<1x8x8x128xf32, #tpu.memory_space<vmem>>, %arg2: memref<2x128xf32, #tpu.memory_space<vmem>>, %arg3: memref<1x8x8x128xf32, #tpu.memory_space<vmem>>) attributes {dimension_semantics = [#tpu.dimension_semantics<parallel>], iteration_bounds = array<i64: 2>, scalar_prefetch = 0 : i64, scratch_operands = 0 : i64, tpu.core_type = #tpu.core_type<tc>, window_params = [{transform_indices = @transform_0, window_bounds = array<i64: 1, 8, 8, 128>}, {pipeline_mode = #tpu.pipeline_mode<synchronous>, transform_indices = @transform_1, window_bounds = array<i64: 2, 128>}, {transform_indices = @transform_2, window_bounds = array<i64: 1, 8, 8, 128>}]} {
    %c0 = arith.constant 0 : index
    %c0_0 = arith.constant 0 : index
    %0 = vector.load %arg2[%c0, %c0_0] : memref<2x128xf32, #tpu.memory_space<vmem>>, vector<1x128xf32>
    %1 = vector.shape_cast %0 : vector<1x128xf32> to vector<1x1x1x128xf32>
    %c1 = arith.constant 1 : index
    %c0_1 = arith.constant 0 : index
    %2 = vector.load %arg2[%c1, %c0_1] : memref<2x128xf32, #tpu.memory_space<vmem>>, vector<1x128xf32>
    %3 = vector.shape_cast %2 : vector<1x128xf32> to vector<1x1x1x128xf32>
    %c0_2 = arith.constant 0 : index
    %c0_3 = arith.constant 0 : index
    %c0_4 = arith.constant 0 : index
    %c0_5 = arith.constant 0 : index
    %4 = vector.load %arg1[%c0_2, %c0_3, %c0_4, %c0_5] : memref<1x8x8x128xf32, #tpu.memory_space<vmem>>, vector<1x8x8x128xf32>
    %5 = vector.broadcast %1 : vector<1x1x1x128xf32> to vector<1x8x8x128xf32>
    %6 = arith.mulf %4, %5 : vector<1x8x8x128xf32>
    %7 = vector.broadcast %3 : vector<1x1x1x128xf32> to vector<1x8x8x128xf32>
    %8 = arith.addf %6, %7 : vector<1x8x8x128xf32>
    %cst = arith.constant 0.000000e+00 : f32
    %9 = vector.broadcast %cst : f32 to vector<1x8x8x128xf32>
    %10 = arith.maximumf %8, %9 : vector<1x8x8x128xf32>
    %c0_6 = arith.constant 0 : index
    %c0_7 = arith.constant 0 : index
    %c0_8 = arith.constant 0 : index
    %c0_9 = arith.constant 0 : index
    %11 = vector.load %arg3[%c0_6, %c0_7, %c0_8, %c0_9] : memref<1x8x8x128xf32, #tpu.memory_space<vmem>>, vector<1x8x8x128xf32>
    tpu.vector_store %arg3[%c0_6, %c0_7, %c0_8, %c0_9], %10 {strides = array<i32>} : memref<1x8x8x128xf32, #tpu.memory_space<vmem>>, vector<1x8x8x128xf32>,
    return
  }
  func.func @transform_0(%arg0: i32) -> (i32, i32, i32, i32) {
    %c0_i32 = arith.constant 0 : i32
    %c0_i32_0 = arith.constant 0 : i32
    %c0_i32_1 = arith.constant 0 : i32
    %c0_i32_2 = arith.constant 0 : i32
    return %arg0, %c0_i32, %c0_i32_0, %c0_i32_1 : i32, i32, i32, i32
  }
  func.func @transform_1(%arg0: i32) -> (i32, i32) {
    %c0_i32 = arith.constant 0 : i32
    %c0_i32_0 = arith.constant 0 : i32
    %c0_i32_1 = arith.constant 0 : i32
    return %c0_i32, %c0_i32_0 : i32, i32
  }
  func.func @transform_2(%arg0: i32) -> (i32, i32, i32, i32) {
    %c0_i32 = arith.constant 0 : i32
    %c0_i32_0 = arith.constant 0 : i32
    %c0_i32_1 = arith.constant 0 : i32
    %c0_i32_2 = arith.constant 0 : i32
    return %arg0, %c0_i32, %c0_i32_0, %c0_i32_1 : i32, i32, i32, i32
  }
}

module attributes {stable_mosaic.version = 11 : i64} {
  func.func @_pool_conv_kernel(%arg0: i32, %arg1: memref<1x8x2x8x256xf32, #tpu.memory_space<vmem>>, %arg2: memref<1152x128xf32, #tpu.memory_space<vmem>>, %arg3: memref<1x8x8x128xf32, #tpu.memory_space<vmem>>, %arg4: memref<2x128xf32, #tpu.memory_space<vmem>>, %arg5: memref<10x10x128xf32, #tpu.memory_space<vmem>>, %arg6: memref<64x1152xf32, #tpu.memory_space<vmem>>) attributes {dimension_semantics = [#tpu.dimension_semantics<arbitrary>], iteration_bounds = array<i64: 2>, scalar_prefetch = 0 : i64, scratch_operands = 2 : i64, tpu.core_type = #tpu.core_type<tc>, window_params = [{transform_indices = @transform_0, window_bounds = array<i64: 1, 8, 2, 8, 256>}, {pipeline_mode = #tpu.pipeline_mode<synchronous>, transform_indices = @transform_1, window_bounds = array<i64: 1152, 128>}, {transform_indices = @transform_2, window_bounds = array<i64: 1, 8, 8, 128>}, {pipeline_mode = #tpu.pipeline_mode<synchronous>, transform_indices = @transform_3, window_bounds = array<i64: 2, 128>}]} {
    %c0 = arith.constant 0 : index
    %c0_0 = arith.constant 0 : index
    %c0_1 = arith.constant 0 : index
    %c0_2 = arith.constant 0 : index
    %c0_3 = arith.constant 0 : index
    %0 = vector.load %arg1[%c0, %c0_0, %c0_1, %c0_2, %c0_3] : memref<1x8x2x8x256xf32, #tpu.memory_space<vmem>>, vector<1x8x1x8x256xf32>
    %1 = vector.shape_cast %0 : vector<1x8x1x8x256xf32> to vector<8x8x256xf32>
    %c0_4 = arith.constant 0 : index
    %c0_5 = arith.constant 0 : index
    %c1 = arith.constant 1 : index
    %c0_6 = arith.constant 0 : index
    %c0_7 = arith.constant 0 : index
    %2 = vector.load %arg1[%c0_4, %c0_5, %c1, %c0_6, %c0_7] : memref<1x8x2x8x256xf32, #tpu.memory_space<vmem>>, vector<1x8x1x8x256xf32>
    %3 = vector.shape_cast %2 : vector<1x8x1x8x256xf32> to vector<8x8x256xf32>
    %4 = arith.maximumf %1, %3 : vector<8x8x256xf32>
    %5 = vector.extract_strided_slice %4 {offsets = [0, 0, 0], sizes = [8, 8, 128], strides = [1, 1, 1]} : vector<8x8x256xf32> to vector<8x8x128xf32>
    %6 = vector.extract_strided_slice %4 {offsets = [0, 0, 128], sizes = [8, 8, 128], strides = [1, 1, 1]} : vector<8x8x256xf32> to vector<8x8x128xf32>
    %7 = arith.maximumf %5, %6 : vector<8x8x128xf32>
    %cst = arith.constant 0.000000e+00 : f32
    %8 = vector.broadcast %cst : f32 to vector<10x10x128xf32>
    %c0_8 = arith.constant 0 : index
    %c0_9 = arith.constant 0 : index
    %c0_10 = arith.constant 0 : index
    %9 = vector.load %arg5[%c0_8, %c0_9, %c0_10] : memref<10x10x128xf32, #tpu.memory_space<vmem>>, vector<10x10x128xf32>
    tpu.vector_store %arg5[%c0_8, %c0_9, %c0_10], %8 {strides = array<i32>} : memref<10x10x128xf32, #tpu.memory_space<vmem>>, vector<10x10x128xf32>,
    %c1_11 = arith.constant 1 : index
    %c1_12 = arith.constant 1 : index
    %c0_13 = arith.constant 0 : index
    %10 = vector.load %arg5[%c1_11, %c1_12, %c0_13] : memref<10x10x128xf32, #tpu.memory_space<vmem>>, vector<8x8x128xf32>
    tpu.vector_store %arg5[%c1_11, %c1_12, %c0_13], %7 {strides = array<i32>} : memref<10x10x128xf32, #tpu.memory_space<vmem>>, vector<8x8x128xf32>,
    %c0_14 = arith.constant 0 : index
    %c0_15 = arith.constant 0 : index
    %c0_16 = arith.constant 0 : index
    %11 = vector.load %arg5[%c0_14, %c0_15, %c0_16] : memref<10x10x128xf32, #tpu.memory_space<vmem>>, vector<8x8x128xf32>
    %12 = vector.shape_cast %11 : vector<8x8x128xf32> to vector<64x128xf32>
    %c0_17 = arith.constant 0 : index
    %c0_18 = arith.constant 0 : index
    %13 = vector.load %arg6[%c0_17, %c0_18] : memref<64x1152xf32, #tpu.memory_space<vmem>>, vector<64x128xf32>
    tpu.vector_store %arg6[%c0_17, %c0_18], %12 {strides = array<i32>} : memref<64x1152xf32, #tpu.memory_space<vmem>>, vector<64x128xf32>,
    %c0_19 = arith.constant 0 : index
    %c1_20 = arith.constant 1 : index
    %c0_21 = arith.constant 0 : index
    %14 = vector.load %arg5[%c0_19, %c1_20, %c0_21] : memref<10x10x128xf32, #tpu.memory_space<vmem>>, vector<8x8x128xf32>
    %15 = vector.shape_cast %14 : vector<8x8x128xf32> to vector<64x128xf32>
    %c0_22 = arith.constant 0 : index
    %c128 = arith.constant 128 : index
    %16 = vector.load %arg6[%c0_22, %c128] : memref<64x1152xf32, #tpu.memory_space<vmem>>, vector<64x128xf32>
    tpu.vector_store %arg6[%c0_22, %c128], %15 {strides = array<i32>} : memref<64x1152xf32, #tpu.memory_space<vmem>>, vector<64x128xf32>,
    %c0_23 = arith.constant 0 : index
    %c2 = arith.constant 2 : index
    %c0_24 = arith.constant 0 : index
    %17 = vector.load %arg5[%c0_23, %c2, %c0_24] : memref<10x10x128xf32, #tpu.memory_space<vmem>>, vector<8x8x128xf32>
    %18 = vector.shape_cast %17 : vector<8x8x128xf32> to vector<64x128xf32>
    %c0_25 = arith.constant 0 : index
    %c256 = arith.constant 256 : index
    %19 = vector.load %arg6[%c0_25, %c256] : memref<64x1152xf32, #tpu.memory_space<vmem>>, vector<64x128xf32>
    tpu.vector_store %arg6[%c0_25, %c256], %18 {strides = array<i32>} : memref<64x1152xf32, #tpu.memory_space<vmem>>, vector<64x128xf32>,
    %c1_26 = arith.constant 1 : index
    %c0_27 = arith.constant 0 : index
    %c0_28 = arith.constant 0 : index
    %20 = vector.load %arg5[%c1_26, %c0_27, %c0_28] : memref<10x10x128xf32, #tpu.memory_space<vmem>>, vector<8x8x128xf32>
    %21 = vector.shape_cast %20 : vector<8x8x128xf32> to vector<64x128xf32>
    %c0_29 = arith.constant 0 : index
    %c384 = arith.constant 384 : index
    %22 = vector.load %arg6[%c0_29, %c384] : memref<64x1152xf32, #tpu.memory_space<vmem>>, vector<64x128xf32>
    tpu.vector_store %arg6[%c0_29, %c384], %21 {strides = array<i32>} : memref<64x1152xf32, #tpu.memory_space<vmem>>, vector<64x128xf32>,
    %c1_30 = arith.constant 1 : index
    %c1_31 = arith.constant 1 : index
    %c0_32 = arith.constant 0 : index
    %23 = vector.load %arg5[%c1_30, %c1_31, %c0_32] : memref<10x10x128xf32, #tpu.memory_space<vmem>>, vector<8x8x128xf32>
    %24 = vector.shape_cast %23 : vector<8x8x128xf32> to vector<64x128xf32>
    %c0_33 = arith.constant 0 : index
    %c512 = arith.constant 512 : index
    %25 = vector.load %arg6[%c0_33, %c512] : memref<64x1152xf32, #tpu.memory_space<vmem>>, vector<64x128xf32>
    tpu.vector_store %arg6[%c0_33, %c512], %24 {strides = array<i32>} : memref<64x1152xf32, #tpu.memory_space<vmem>>, vector<64x128xf32>,
    %c1_34 = arith.constant 1 : index
    %c2_35 = arith.constant 2 : index
    %c0_36 = arith.constant 0 : index
    %26 = vector.load %arg5[%c1_34, %c2_35, %c0_36] : memref<10x10x128xf32, #tpu.memory_space<vmem>>, vector<8x8x128xf32>
    %27 = vector.shape_cast %26 : vector<8x8x128xf32> to vector<64x128xf32>
    %c0_37 = arith.constant 0 : index
    %c640 = arith.constant 640 : index
    %28 = vector.load %arg6[%c0_37, %c640] : memref<64x1152xf32, #tpu.memory_space<vmem>>, vector<64x128xf32>
    tpu.vector_store %arg6[%c0_37, %c640], %27 {strides = array<i32>} : memref<64x1152xf32, #tpu.memory_space<vmem>>, vector<64x128xf32>,
    %c2_38 = arith.constant 2 : index
    %c0_39 = arith.constant 0 : index
    %c0_40 = arith.constant 0 : index
    %29 = vector.load %arg5[%c2_38, %c0_39, %c0_40] : memref<10x10x128xf32, #tpu.memory_space<vmem>>, vector<8x8x128xf32>
    %30 = vector.shape_cast %29 : vector<8x8x128xf32> to vector<64x128xf32>
    %c0_41 = arith.constant 0 : index
    %c768 = arith.constant 768 : index
    %31 = vector.load %arg6[%c0_41, %c768] : memref<64x1152xf32, #tpu.memory_space<vmem>>, vector<64x128xf32>
    tpu.vector_store %arg6[%c0_41, %c768], %30 {strides = array<i32>} : memref<64x1152xf32, #tpu.memory_space<vmem>>, vector<64x128xf32>,
    %c2_42 = arith.constant 2 : index
    %c1_43 = arith.constant 1 : index
    %c0_44 = arith.constant 0 : index
    %32 = vector.load %arg5[%c2_42, %c1_43, %c0_44] : memref<10x10x128xf32, #tpu.memory_space<vmem>>, vector<8x8x128xf32>
    %33 = vector.shape_cast %32 : vector<8x8x128xf32> to vector<64x128xf32>
    %c0_45 = arith.constant 0 : index
    %c896 = arith.constant 896 : index
    %34 = vector.load %arg6[%c0_45, %c896] : memref<64x1152xf32, #tpu.memory_space<vmem>>, vector<64x128xf32>
    tpu.vector_store %arg6[%c0_45, %c896], %33 {strides = array<i32>} : memref<64x1152xf32, #tpu.memory_space<vmem>>, vector<64x128xf32>,
    %c2_46 = arith.constant 2 : index
    %c2_47 = arith.constant 2 : index
    %c0_48 = arith.constant 0 : index
    %35 = vector.load %arg5[%c2_46, %c2_47, %c0_48] : memref<10x10x128xf32, #tpu.memory_space<vmem>>, vector<8x8x128xf32>
    %36 = vector.shape_cast %35 : vector<8x8x128xf32> to vector<64x128xf32>
    %c0_49 = arith.constant 0 : index
    %c1024 = arith.constant 1024 : index
    %37 = vector.load %arg6[%c0_49, %c1024] : memref<64x1152xf32, #tpu.memory_space<vmem>>, vector<64x128xf32>
    tpu.vector_store %arg6[%c0_49, %c1024], %36 {strides = array<i32>} : memref<64x1152xf32, #tpu.memory_space<vmem>>, vector<64x128xf32>,
    %c0_50 = arith.constant 0 : index
    %c0_51 = arith.constant 0 : index
    %38 = vector.load %arg6[%c0_50, %c0_51] : memref<64x1152xf32, #tpu.memory_space<vmem>>, vector<64x1152xf32>
    %c0_52 = arith.constant 0 : index
    %c0_53 = arith.constant 0 : index
    %39 = vector.load %arg2[%c0_52, %c0_53] : memref<1152x128xf32, #tpu.memory_space<vmem>>, vector<1152x128xf32>
    %cst_54 = arith.constant dense<0.000000e+00> : vector<64x128xf32>
    %40 = tpu.matmul %38, %39, %cst_54 {dimension_numbers = #tpu.dot_dimension_numbers<[1], [0], [0], [1], [0, 0, 1, 1], [], []>} : vector<64x1152xf32>, vector<1152x128xf32>, vector<64x128xf32> -> vector<64x128xf32>
    %41 = vector.shape_cast %40 : vector<64x128xf32> to vector<1x8x8x128xf32>
    %c0_55 = arith.constant 0 : index
    %c0_56 = arith.constant 0 : index
    %c0_57 = arith.constant 0 : index
    %c0_58 = arith.constant 0 : index
    %42 = vector.load %arg3[%c0_55, %c0_56, %c0_57, %c0_58] : memref<1x8x8x128xf32, #tpu.memory_space<vmem>>, vector<1x8x8x128xf32>
    tpu.vector_store %arg3[%c0_55, %c0_56, %c0_57, %c0_58], %41 {strides = array<i32>} : memref<1x8x8x128xf32, #tpu.memory_space<vmem>>, vector<1x8x8x128xf32>,
    %c0_i32 = arith.constant 0 : i32
    %43 = arith.cmpi eq, %arg0, %c0_i32 : i32
    %44 = arith.extui %43 : i1 to i32
    %c0_i32_59 = arith.constant 0 : i32
    %45 = arith.cmpi ne, %44, %c0_i32_59 : i32
    scf.if %45 {
      %cst_70 = arith.constant 0.000000e+00 : f32
      %57 = vector.broadcast %cst_70 : f32 to vector<2x128xf32>
      %c0_71 = arith.constant 0 : index
      %c0_72 = arith.constant 0 : index
      %58 = vector.load %arg4[%c0_71, %c0_72] : memref<2x128xf32, #tpu.memory_space<vmem>>, vector<2x128xf32>
      tpu.vector_store %arg4[%c0_71, %c0_72], %57 {strides = array<i32>} : memref<2x128xf32, #tpu.memory_space<vmem>>, vector<2x128xf32>,
    } else {
    }
    %c0_60 = arith.constant 0 : index
    %c0_61 = arith.constant 0 : index
    %46 = vector.load %arg4[%c0_60, %c0_61] : memref<2x128xf32, #tpu.memory_space<vmem>>, vector<1x128xf32>
    %cst_62 = arith.constant dense<0.000000e+00> : vector<128xf32>
    %47 = vector.multi_reduction <add>, %40, %cst_62 [0] : vector<64x128xf32> to vector<128xf32>
    %48 = vector.shape_cast %47 : vector<128xf32> to vector<1x128xf32>
    %49 = arith.addf %46, %48 : vector<1x128xf32>
    %c0_63 = arith.constant 0 : index
    %c0_64 = arith.constant 0 : index
    %50 = vector.load %arg4[%c0_63, %c0_64] : memref<2x128xf32, #tpu.memory_space<vmem>>, vector<1x128xf32>
    tpu.vector_store %arg4[%c0_63, %c0_64], %49 {strides = array<i32>} : memref<2x128xf32, #tpu.memory_space<vmem>>, vector<1x128xf32>,
    %c1_65 = arith.constant 1 : index
    %c0_66 = arith.constant 0 : index
    %51 = vector.load %arg4[%c1_65, %c0_66] : memref<2x128xf32, #tpu.memory_space<vmem>>, vector<1x128xf32>
    %52 = arith.mulf %40, %40 : vector<64x128xf32>
    %cst_67 = arith.constant dense<0.000000e+00> : vector<128xf32>
    %53 = vector.multi_reduction <add>, %52, %cst_67 [0] : vector<64x128xf32> to vector<128xf32>
    %54 = vector.shape_cast %53 : vector<128xf32> to vector<1x128xf32>
    %55 = arith.addf %51, %54 : vector<1x128xf32>
    %c1_68 = arith.constant 1 : index
    %c0_69 = arith.constant 0 : index
    %56 = vector.load %arg4[%c1_68, %c0_69] : memref<2x128xf32, #tpu.memory_space<vmem>>, vector<1x128xf32>
    tpu.vector_store %arg4[%c1_68, %c0_69], %55 {strides = array<i32>} : memref<2x128xf32, #tpu.memory_space<vmem>>, vector<1x128xf32>,
    return
  }
  func.func @transform_0(%arg0: i32) -> (i32, i32, i32, i32, i32) {
    %c0_i32 = arith.constant 0 : i32
    %c0_i32_0 = arith.constant 0 : i32
    %c0_i32_1 = arith.constant 0 : i32
    %c0_i32_2 = arith.constant 0 : i32
    %c0_i32_3 = arith.constant 0 : i32
    return %arg0, %c0_i32, %c0_i32_0, %c0_i32_1, %c0_i32_2 : i32, i32, i32, i32, i32
  }
  func.func @transform_1(%arg0: i32) -> (i32, i32) {
    %c0_i32 = arith.constant 0 : i32
    %c0_i32_0 = arith.constant 0 : i32
    %c0_i32_1 = arith.constant 0 : i32
    return %c0_i32, %c0_i32_0 : i32, i32
  }
  func.func @transform_2(%arg0: i32) -> (i32, i32, i32, i32) {
    %c0_i32 = arith.constant 0 : i32
    %c0_i32_0 = arith.constant 0 : i32
    %c0_i32_1 = arith.constant 0 : i32
    %c0_i32_2 = arith.constant 0 : i32
    return %arg0, %c0_i32, %c0_i32_0, %c0_i32_1 : i32, i32, i32, i32
  }
  func.func @transform_3(%arg0: i32) -> (i32, i32) {
    %c0_i32 = arith.constant 0 : i32
    %c0_i32_0 = arith.constant 0 : i32
    %c0_i32_1 = arith.constant 0 : i32
    return %c0_i32, %c0_i32_0 : i32, i32
  }
}

</mosaic_0001>

<llo_original>
// kernel: down2d_forward.5
$region0: #{down2d_forward.5}
  #allocation0 [shape = 'u32[]', space=smem, size = 0x4, offset = 0x4, fixed_abs, tag = 'smem constant byte address 0x4 - core index']
  #allocation1 [shape = 'u32[144,128]{1,0:T(1,128)}', space=vmem, size = 0x12000, scoped, tag = 'internal scratch']
  %s0 = inlined_call_operand.vmem [shape: f32[2,8,8,128], index: 0, kind: input, shape index: {}]
  %s1 = inlined_call_operand.vmem [shape: f32[2,128], index: 1, kind: input, shape index: {}]
  %s2 = inlined_call_operand.vmem [shape: f32[2,8,8,128], index: 2, kind: output, shape index: {}]
  %s3 = sld [smem:[#allocation0]]
  $region41: #{down2d_forward.5} parent=0
    _
  %s5 = ssub.s32 1, %s3
  %s6 = scalar_select 0, %s5, %s3
  loop: start=0, step=1, limit=4
  $region2: #{down2d_forward.5} parent=0 // loop_pre_header
    _
  $region3: #{down2d_forward.5} parent=0 // loop_header
    %s8 = sphi 0, %s12
    %p9 = scmp.ge.s32.totalorder %s8, 4
    %s18 = sphi 0, %s20
    %s21 = sphi 0, %s18
    %s22 = sphi 0, %s21
    %s38 = sphi 0, %s22
    %s42 = sphi 0, %s42
    %s44 = sphi 0, %s42
    %s45 = sphi 0, %s44
    %s59 = sphi 0, %s45
    %s65 = sphi 0, %s67
    %s68 = sphi 0, %s65
    %s69 = sphi 0, %s68
    %s85 = sphi 0, %s69
  $region4: #{down2d_forward.5} parent=0 // loop_header_branch
    %11 = sbr.rel (%p9) target = $region8
  $region5: #{down2d_forward.5} parent=0 // loop_body
    %s13 = ssub.s32 %s8, 1
    %s14 = ssub.s32 %s8, 2
    %s15 = sadd.s32 %s8, 1
    %s16 = ssub.s32 %s8, %s15
    %p17 = scmp.eq.s32.totalorder %s16, 0
    %s19 = sadd.s32 %s18, 1
    %s20 = scalar_select %p17, %s18, %s19
    %p23 = pneg %p17
    %p24 = scmp.eq.s32.totalorder %s8, 1
    %p25 = por %p23, %p24
    %p26 = scmp.ne.s32.totalorder %s18, %s21
    %p27 = scmp.eq.s32.totalorder %s8, 0
    %p28 = por %p26, %p27
    %p29 = scmp.ne.s32.totalorder %s18, %s21
    %p30 = scmp.eq.s32.totalorder %s13, 1
    %p31 = por %p29, %p30
    %p32 = scmp.ne.s32.totalorder %s21, %s22
    %p33 = scmp.eq.s32.totalorder %s13, 0
    %p34 = por %p32, %p33
    %p35 = scmp.ne.s32.totalorder %s21, %s22
    %p36 = scmp.eq.s32.totalorder %s14, 1
    %p37 = por %p35, %p36
    %p39 = scmp.ne.s32.totalorder %s22, %s38
    %p40 = scmp.eq.s32.totalorder %s14, 0
    %p41 = por %p39, %p40
    %s43 = sadd.s32 %s42, 1
    %p46 = scmp.eq.s32.totalorder %s8, 1
    %p47 = scmp.ne.s32.totalorder %s42, %s44
    %p48 = scmp.eq.s32.totalorder %s8, 0
    %p49 = por %p47, %p48
    %p50 = scmp.ne.s32.totalorder %s42, %s44
    %p51 = scmp.eq.s32.totalorder %s13, 1
    %p52 = por %p50, %p51
    %p53 = scmp.ne.s32.totalorder %s44, %s45
    %p54 = scmp.eq.s32.totalorder %s13, 0
    %p55 = por %p53, %p54
    %p56 = scmp.ne.s32.totalorder %s44, %s45
    %p57 = scmp.eq.s32.totalorder %s14, 1
    %p58 = por %p56, %p57
    %p60 = scmp.ne.s32.totalorder %s45, %s59
    %p61 = scmp.eq.s32.totalorder %s14, 0
    %p62 = por %p60, %p61
    %s63 = ssub.s32 %s8, %s15
    %p64 = scmp.eq.s32.totalorder %s63, 0
    %s66 = sadd.s32 %s65, 1
    %s67 = scalar_select %p64, %s65, %s66
    %p70 = pneg %p64
    %p71 = scmp.eq.s32.totalorder %s8, 1
    %p72 = por %p70, %p71
    %p73 = scmp.ne.s32.totalorder %s65, %s68
    %p74 = scmp.eq.s32.totalorder %s8, 0
    %p75 = por %p73, %p74
    %p76 = scmp.ne.s32.totalorder %s65, %s68
    %p77 = scmp.eq.s32.totalorder %s13, 1
    %p78 = por %p76, %p77
    %p79 = scmp.ne.s32.totalorder %s68, %s69
    %p80 = scmp.eq.s32.totalorder %s13, 0
    %p81 = por %p79, %p80
    %p82 = scmp.ne.s32.totalorder %s68, %s69
    %p83 = scmp.eq.s32.totalorder %s14, 1
    %p84 = por %p82, %p83
    %p86 = scmp.ne.s32.totalorder %s69, %s85
    %p87 = scmp.eq.s32.totalorder %s14, 0
    %p88 = por %p86, %p87
    %p89 = scmp.le.s32.totalorder 1, %s8
    %p90 = scmp.lt.s32.totalorder %s8, 3
    %p91 = pnand %p89, %p90
    %p92 = pneg %p91
    // Predicated region
    $region9: #{down2d_forward.5} parent=5 // pred_check
      _
    $region10: #{down2d_forward.5} parent=5 // pred_check_branch
      %94 = sbr.rel (%p91) target = $region12
    $region11: #{down2d_forward.5} parent=5 // pred_region
      %s95 = ssub.s32 %s8, 1
      // Predicated region
      $region13: #{down2d_forward.5} parent=11 // pred_check
        %p96 = pneg %p55
      $region14: #{down2d_forward.5} parent=11 // pred_check_branch
        %98 = sbr.rel (%p96) target = $region16
      $region15: #{down2d_forward.5} parent=11 // pred_region
        _
      $region16: #{down2d_forward.5} parent=11 // pred_fallthru
        _
    $region12: #{down2d_forward.5} parent=5 // pred_fallthru
      _
    %p99 = scmp.lt.s32.totalorder %s8, 2
    // Predicated region
    $region17: #{down2d_forward.5} parent=5 // pred_check
      %p100 = pneg %p99
    $region18: #{down2d_forward.5} parent=5 // pred_check_branch
      %102 = sbr.rel (%p100) target = $region20
    $region19: #{down2d_forward.5} parent=5 // pred_region
      // Predicated region
      $region21: #{down2d_forward.5} parent=19 // pred_check
        %p103 = pneg %p28
      $region22: #{down2d_forward.5} parent=19 // pred_check_branch
        %105 = sbr.rel (%p103) target = $region24
      $region23: #{down2d_forward.5} parent=19 // pred_region
        %p106 = scmp.lt.s32.totalorder %s8, 1
        %s107 = scalar_select %p106, %s8, 1
        %s108 = smul.addr %s107, 8
        %s109 = smul.addr %s108, 8
        %s110 = scalar_lea.vmem %s0, %s109
      $region24: #{down2d_forward.5} parent=19 // pred_fallthru
        _
    $region20: #{down2d_forward.5} parent=5 // pred_fallthru
      _
    %p111 = scmp.le.s32.totalorder 1, %s8
    %p112 = scmp.lt.s32.totalorder %s8, 3
    %p113 = pnand %p111, %p112
    %p114 = pneg %p113
    // Predicated region
    $region25: #{down2d_forward.5} parent=5 // pred_check
      _
    $region26: #{down2d_forward.5} parent=5 // pred_check_branch
      %116 = sbr.rel (%p113) target = $region28
    $region27: #{down2d_forward.5} parent=5 // pred_region
      %s117 = ssub.s32 %s8, 1
      %p118 = scmp.lt.s32.totalorder %s13, 1
      %s119 = scalar_select %p118, %s13, 1
      %s120 = smul.addr %s119, 8
      %s121 = smul.addr %s120, 8
      %s122 = scalar_lea.vmem %s0, %s121
      %p123 = pneg %p34
      %p124 = pneg %p31
      %p125 = pneg %p55
      %p126 = pneg %p52
      %p127 = pneg %p81
      %p128 = pneg %p78
      %p129 = scmp.lt.s32.totalorder %s13, 1
      %s130 = scalar_select %p129, %s13, 1
      %s131 = smul.addr %s130, 8
      %s132 = smul.addr %s131, 8
      %s133 = scalar_lea.vmem %s2, %s132
      %p134 = scmp.lt.s32.totalorder %s13, 1
      %s135 = scalar_select %p134, %s13, 1
      %s136 = smul.addr %s135, 8
      %s137 = smul.addr %s136, 8
      %s138 = scalar_lea.vmem %s0, %s137
      %p139 = scmp.lt.s32.totalorder %s13, 1
      %s140 = scalar_select %p139, %s13, 1
      %s141 = smul.addr %s140, 8
      %s142 = smul.addr %s141, 8
      %s143 = scalar_lea.vmem %s2, %s142
      %v144 = vld [vmem:[%s1] sm:$0x1]
      %v145 = vld [vmem:[%s1 + $0x1] sm:$0x1]
      %v146 = vld [vmem:[%s138] sm:$0xff]
      %v147 = vld [vmem:[%s138 + $0x8] sm:$0xff]
      %v148 = vld [vmem:[%s138 + $0x10] sm:$0xff]
      %v149 = vld [vmem:[%s138 + $0x18] sm:$0xff]
      %v150 = vld [vmem:[%s138 + $0x20] sm:$0xff]
      %v151 = vld [vmem:[%s138 + $0x28] sm:$0xff]
      %v152 = vld [vmem:[%s138 + $0x30] sm:$0xff]
      %v153 = vld [vmem:[%s138 + $0x38] sm:$0xff]
      %v154 = vlaneseq
      %v155 = vshrl.u32 %v154, 7
      %v156 = vsub.s32 0, %v155
      %v157 = vrot.slane %v144, %v156
      %v158 = vmul.f32 %v146, %v157
      %v159 = vmul.f32 %v147, %v157
      %v160 = vmul.f32 %v148, %v157
      %v161 = vmul.f32 %v149, %v157
      %v162 = vmul.f32 %v150, %v157
      %v163 = vmul.f32 %v151, %v157
      %v164 = vmul.f32 %v152, %v157
      %v165 = vmul.f32 %v153, %v157
      %v166 = vlaneseq
      %v167 = vshrl.u32 %v166, 7
      %v168 = vsub.s32 0, %v167
      %v169 = vrot.slane %v145, %v168
      %v170 = vadd.f32 %v158, %v169
      %v171 = vadd.f32 %v159, %v169
      %v172 = vadd.f32 %v160, %v169
      %v173 = vadd.f32 %v161, %v169
      %v174 = vadd.f32 %v162, %v169
      %v175 = vadd.f32 %v163, %v169
      %v176 = vadd.f32 %v164, %v169
      %v177 = vadd.f32 %v165, %v169
      %v178 = vmax.f32 %v170, 0.0
      %v179 = vmax.f32 %v171, 0.0
      %v180 = vmax.f32 %v172, 0.0
      %v181 = vmax.f32 %v173, 0.0
      %v182 = vmax.f32 %v174, 0.0
      %v183 = vmax.f32 %v175, 0.0
      %v184 = vmax.f32 %v176, 0.0
      %v185 = vmax.f32 %v177, 0.0
      %186 = vst [vmem:[%s143] sm:$0xff] %v178
      %187 = vst [vmem:[%s143 + $0x8] sm:$0xff] %v179
      %188 = vst [vmem:[%s143 + $0x10] sm:$0xff] %v180
      %189 = vst [vmem:[%s143 + $0x18] sm:$0xff] %v181
      %190 = vst [vmem:[%s143 + $0x20] sm:$0xff] %v182
      %191 = vst [vmem:[%s143 + $0x28] sm:$0xff] %v183
      %192 = vst [vmem:[%s143 + $0x30] sm:$0xff] %v184
      %193 = vst [vmem:[%s143 + $0x38] sm:$0xff] %v185
      %p194 = scmp.lt.s32.totalorder %s13, 1
      %s195 = scalar_select %p194, %s13, 1
      %s196 = smul.addr %s195, 8
      %s197 = smul.addr %s196, 8
      %s198 = scalar_lea.vmem %s2, %s197
      // Predicated region
      $region29: #{down2d_forward.5} parent=27 // pred_check
        %p199 = pneg %p78
      $region30: #{down2d_forward.5} parent=27 // pred_check_branch
        %201 = sbr.rel (%p199) target = $region32
      $region31: #{down2d_forward.5} parent=27 // pred_region
        _
      $region32: #{down2d_forward.5} parent=27 // pred_fallthru
        _
    $region28: #{down2d_forward.5} parent=5 // pred_fallthru
      _
    %p202 = scmp.le.s32.totalorder 2, %s8
    // Predicated region
    $region33: #{down2d_forward.5} parent=5 // pred_check
      %p203 = pneg %p202
    $region34: #{down2d_forward.5} parent=5 // pred_check_branch
      %205 = sbr.rel (%p203) target = $region36
    $region35: #{down2d_forward.5} parent=5 // pred_region
      %s206 = ssub.s32 %s8, 2
      // Predicated region
      $region37: #{down2d_forward.5} parent=35 // pred_check
        %p207 = pneg %p84
      $region38: #{down2d_forward.5} parent=35 // pred_check_branch
        %209 = sbr.rel (%p207) target = $region40
      $region39: #{down2d_forward.5} parent=35 // pred_region
        %p210 = scmp.lt.s32.totalorder %s14, 1
        %s211 = scalar_select %p210, %s14, 1
        %s212 = smul.addr %s211, 8
        %s213 = smul.addr %s212, 8
        %s214 = scalar_lea.vmem %s2, %s213
      $region40: #{down2d_forward.5} parent=35 // pred_fallthru
        _
    $region36: #{down2d_forward.5} parent=5 // pred_fallthru
      _
  $region6: #{down2d_forward.5} parent=0 // loop_footer
    %s12 = sadd.s32 1, %s8
  $region7: #{down2d_forward.5} parent=0 // loop_footer_branch
    %7 = sbr.rel target = $region3
  $region8: #{down2d_forward.5} parent=0 // loop_exit
    _

// kernel: down2d_forward.4
$region0: #{down2d_forward.4}
  #allocation0 [shape = 'u32[]', space=smem, size = 0x4, offset = 0x4, fixed_abs, tag = 'smem constant byte address 0x4 - core index']
  #allocation1 [shape = 'u32[144,128]{1,0:T(1,128)}', space=vmem, size = 0x12000, scoped, tag = 'internal scratch']
  #allocation2 [shape = 'f32[10,10,128]{2,1,0:T(8,128)}', space=vmem, size = 0x14000, scoped, tag = 'scratch operand']
  #allocation3 [shape = 'f32[64,1152]{1,0:T(8,128)}', space=vmem, size = 0x48000, scoped, tag = 'scratch operand']
  %s0 = inlined_call_operand.vmem [shape: f32[2,8,8,128], index: 0, kind: input, shape index: {}]
  %s1 = inlined_call_operand.vmem [shape: f32[2,128], index: 1, kind: input, shape index: {}]
  %s2 = inlined_call_operand.vmem [shape: f32[1152,128], index: 2, kind: input, shape index: {}]
  %s3 = inlined_call_operand.vmem [shape: f32[2,8,8,128], index: 3, kind: output, shape index: {0}]
  %s4 = inlined_call_operand.vmem [shape: f32[2,128], index: 4, kind: output, shape index: {1}]
  %5 = xla_tuple %s3, %s4
  %s6 = sld [smem:[#allocation0]]
  $region57: #{down2d_forward.4} parent=0
    _
  %s8 = ssub.s32 1, %s6
  %s9 = scalar_select 0, %s8, %s6
  loop: start=0, step=1, limit=4
  $region2: #{down2d_forward.4} parent=0 // loop_pre_header
    _
  $region3: #{down2d_forward.4} parent=0 // loop_header
    %s11 = sphi 0, %s15
    %p12 = scmp.ge.s32.totalorder %s11, 4
    %s21 = sphi 0, %s23
    %s24 = sphi 0, %s21
    %s25 = sphi 0, %s24
    %s41 = sphi 0, %s25
    %s45 = sphi 0, %s45
    %s47 = sphi 0, %s45
    %s48 = sphi 0, %s47
    %s62 = sphi 0, %s48
    %s66 = sphi 0, %s66
    %s68 = sphi 0, %s66
    %s69 = sphi 0, %s68
    %s83 = sphi 0, %s69
    %s89 = sphi 0, %s91
    %s92 = sphi 0, %s89
    %s93 = sphi 0, %s92
    %s109 = sphi 0, %s93
    %s113 = sphi 0, %s113
    %s115 = sphi 0, %s113
    %s116 = sphi 0, %s115
    %s130 = sphi 0, %s116
  $region4: #{down2d_forward.4} parent=0 // loop_header_branch
    %14 = sbr.rel (%p12) target = $region8
  $region5: #{down2d_forward.4} parent=0 // loop_body
    %s16 = ssub.s32 %s11, 1
    %s17 = ssub.s32 %s11, 2
    %s18 = sadd.s32 %s11, 1
    %s19 = ssub.s32 %s11, %s18
    %p20 = scmp.eq.s32.totalorder %s19, 0
    %s22 = sadd.s32 %s21, 1
    %s23 = scalar_select %p20, %s21, %s22
    %p26 = pneg %p20
    %p27 = scmp.eq.s32.totalorder %s11, 1
    %p28 = por %p26, %p27
    %p29 = scmp.ne.s32.totalorder %s21, %s24
    %p30 = scmp.eq.s32.totalorder %s11, 0
    %p31 = por %p29, %p30
    %p32 = scmp.ne.s32.totalorder %s21, %s24
    %p33 = scmp.eq.s32.totalorder %s16, 1
    %p34 = por %p32, %p33
    %p35 = scmp.ne.s32.totalorder %s24, %s25
    %p36 = scmp.eq.s32.totalorder %s16, 0
    %p37 = por %p35, %p36
    %p38 = scmp.ne.s32.totalorder %s24, %s25
    %p39 = scmp.eq.s32.totalorder %s17, 1
    %p40 = por %p38, %p39
    %p42 = scmp.ne.s32.totalorder %s25, %s41
    %p43 = scmp.eq.s32.totalorder %s17, 0
    %p44 = por %p42, %p43
    %s46 = sadd.s32 %s45, 1
    %p49 = scmp.eq.s32.totalorder %s11, 1
    %p50 = scmp.ne.s32.totalorder %s45, %s47
    %p51 = scmp.eq.s32.totalorder %s11, 0
    %p52 = por %p50, %p51
    %p53 = scmp.ne.s32.totalorder %s45, %s47
    %p54 = scmp.eq.s32.totalorder %s16, 1
    %p55 = por %p53, %p54
    %p56 = scmp.ne.s32.totalorder %s47, %s48
    %p57 = scmp.eq.s32.totalorder %s16, 0
    %p58 = por %p56, %p57
    %p59 = scmp.ne.s32.totalorder %s47, %s48
    %p60 = scmp.eq.s32.totalorder %s17, 1
    %p61 = por %p59, %p60
    %p63 = scmp.ne.s32.totalorder %s48, %s62
    %p64 = scmp.eq.s32.totalorder %s17, 0
    %p65 = por %p63, %p64
    %s67 = sadd.s32 %s66, 1
    %p70 = scmp.eq.s32.totalorder %s11, 1
    %p71 = scmp.ne.s32.totalorder %s66, %s68
    %p72 = scmp.eq.s32.totalorder %s11, 0
    %p73 = por %p71, %p72
    %p74 = scmp.ne.s32.totalorder %s66, %s68
    %p75 = scmp.eq.s32.totalorder %s16, 1
    %p76 = por %p74, %p75
    %p77 = scmp.ne.s32.totalorder %s68, %s69
    %p78 = scmp.eq.s32.totalorder %s16, 0
    %p79 = por %p77, %p78
    %p80 = scmp.ne.s32.totalorder %s68, %s69
    %p81 = scmp.eq.s32.totalorder %s17, 1
    %p82 = por %p80, %p81
    %p84 = scmp.ne.s32.totalorder %s69, %s83
    %p85 = scmp.eq.s32.totalorder %s17, 0
    %p86 = por %p84, %p85
    %s87 = ssub.s32 %s11, %s18
    %p88 = scmp.eq.s32.totalorder %s87, 0
    %s90 = sadd.s32 %s89, 1
    %s91 = scalar_select %p88, %s89, %s90
    %p94 = pneg %p88
    %p95 = scmp.eq.s32.totalorder %s11, 1
    %p96 = por %p94, %p95
    %p97 = scmp.ne.s32.totalorder %s89, %s92
    %p98 = scmp.eq.s32.totalorder %s11, 0
    %p99 = por %p97, %p98
    %p100 = scmp.ne.s32.totalorder %s89, %s92
    %p101 = scmp.eq.s32.totalorder %s16, 1
    %p102 = por %p100, %p101
    %p103 = scmp.ne.s32.totalorder %s92, %s93
    %p104 = scmp.eq.s32.totalorder %s16, 0
    %p105 = por %p103, %p104
    %p106 = scmp.ne.s32.totalorder %s92, %s93
    %p107 = scmp.eq.s32.totalorder %s17, 1
    %p108 = por %p106, %p107
    %p110 = scmp.ne.s32.totalorder %s93, %s109
    %p111 = scmp.eq.s32.totalorder %s17, 0
    %p112 = por %p110, %p111
    %s114 = sadd.s32 %s113, 1
    %p117 = scmp.eq.s32.totalorder %s11, 1
    %p118 = scmp.ne.s32.totalorder %s113, %s115
    %p119 = scmp.eq.s32.totalorder %s11, 0
    %p120 = por %p118, %p119
    %p121 = scmp.ne.s32.totalorder %s113, %s115
    %p122 = scmp.eq.s32.totalorder %s16, 1
    %p123 = por %p121, %p122
    %p124 = scmp.ne.s32.totalorder %s115, %s116
    %p125 = scmp.eq.s32.totalorder %s16, 0
    %p126 = por %p124, %p125
    %p127 = scmp.ne.s32.totalorder %s115, %s116
    %p128 = scmp.eq.s32.totalorder %s17, 1
    %p129 = por %p127, %p128
    %p131 = scmp.ne.s32.totalorder %s116, %s130
    %p132 = scmp.eq.s32.totalorder %s17, 0
    %p133 = por %p131, %p132
    %p134 = scmp.le.s32.totalorder 1, %s11
    %p135 = scmp.lt.s32.totalorder %s11, 3
    %p136 = pnand %p134, %p135
    %p137 = pneg %p136
    // Predicated region
    $region9: #{down2d_forward.4} parent=5 // pred_check
      _
    $region10: #{down2d_forward.4} parent=5 // pred_check_branch
      %139 = sbr.rel (%p136) target = $region12
    $region11: #{down2d_forward.4} parent=5 // pred_region
      %s140 = ssub.s32 %s11, 1
      // Predicated region
      $region13: #{down2d_forward.4} parent=11 // pred_check
        %p141 = pneg %p58
      $region14: #{down2d_forward.4} parent=11 // pred_check_branch
        %143 = sbr.rel (%p141) target = $region16
      $region15: #{down2d_forward.4} parent=11 // pred_region
        _
      $region16: #{down2d_forward.4} parent=11 // pred_fallthru
        _
      // Predicated region
      $region17: #{down2d_forward.4} parent=11 // pred_check
        %p144 = pneg %p79
      $region18: #{down2d_forward.4} parent=11 // pred_check_branch
        %146 = sbr.rel (%p144) target = $region20
      $region19: #{down2d_forward.4} parent=11 // pred_region
        _
      $region20: #{down2d_forward.4} parent=11 // pred_fallthru
        _
    $region12: #{down2d_forward.4} parent=5 // pred_fallthru
      _
    %p147 = scmp.lt.s32.totalorder %s11, 2
    // Predicated region
    $region21: #{down2d_forward.4} parent=5 // pred_check
      %p148 = pneg %p147
    $region22: #{down2d_forward.4} parent=5 // pred_check_branch
      %150 = sbr.rel (%p148) target = $region24
    $region23: #{down2d_forward.4} parent=5 // pred_region
      // Predicated region
      $region25: #{down2d_forward.4} parent=23 // pred_check
        %p151 = pneg %p31
      $region26: #{down2d_forward.4} parent=23 // pred_check_branch
        %153 = sbr.rel (%p151) target = $region28
      $region27: #{down2d_forward.4} parent=23 // pred_region
        %p154 = scmp.lt.s32.totalorder %s11, 1
        %s155 = scalar_select %p154, %s11, 1
        %s156 = smul.addr %s155, 8
        %s157 = smul.addr %s156, 8
        %s158 = scalar_lea.vmem %s0, %s157
      $region28: #{down2d_forward.4} parent=23 // pred_fallthru
        _
    $region24: #{down2d_forward.4} parent=5 // pred_fallthru
      _
    %p159 = scmp.le.s32.totalorder 1, %s11
    %p160 = scmp.lt.s32.totalorder %s11, 3
    %p161 = pnand %p159, %p160
    %p162 = pneg %p161
    // Predicated region
    $region29: #{down2d_forward.4} parent=5 // pred_check
      _
    $region30: #{down2d_forward.4} parent=5 // pred_check_branch
      %164 = sbr.rel (%p161) target = $region32
    $region31: #{down2d_forward.4} parent=5 // pred_region
      %s165 = ssub.s32 %s11, 1
      %p166 = scmp.lt.s32.totalorder %s16, 1
      %s167 = scalar_select %p166, %s16, 1
      %s168 = smul.addr %s167, 8
      %s169 = smul.addr %s168, 8
      %s170 = scalar_lea.vmem %s0, %s169
      %p171 = pneg %p37
      %p172 = pneg %p34
      %p173 = pneg %p58
      %p174 = pneg %p55
      %p175 = pneg %p79
      %p176 = pneg %p76
      %p177 = pneg %p105
      %p178 = pneg %p102
      %p179 = scmp.lt.s32.totalorder %s16, 1
      %s180 = scalar_select %p179, %s16, 1
      %s181 = smul.addr %s180, 8
      %s182 = smul.addr %s181, 8
      %s183 = scalar_lea.vmem %s3, %s182
      %p184 = pneg %p126
      %p185 = pneg %p123
      %p186 = scmp.lt.s32.totalorder %s16, 1
      %s187 = scalar_select %p186, %s16, 1
      %s188 = smul.addr %s187, 8
      %s189 = smul.addr %s188, 8
      %s190 = scalar_lea.vmem %s0, %s189
      %p191 = scmp.lt.s32.totalorder %s16, 1
      %s192 = scalar_select %p191, %s16, 1
      %s193 = smul.addr %s192, 8
      %s194 = smul.addr %s193, 8
      %s195 = scalar_lea.vmem %s3, %s194
      %v196 = vld [vmem:[%s1] sm:$0x1]
      %v197 = vld [vmem:[%s1 + $0x1] sm:$0x1]
      %v198 = vld [vmem:[%s190] sm:$0xff]
      %v199 = vld [vmem:[%s190 + $0x8] sm:$0xff]
      %v200 = vld [vmem:[%s190 + $0x10] sm:$0xff]
      %v201 = vld [vmem:[%s190 + $0x18] sm:$0xff]
      %v202 = vld [vmem:[%s190 + $0x20] sm:$0xff]
      %v203 = vld [vmem:[%s190 + $0x28] sm:$0xff]
      %v204 = vld [vmem:[%s190 + $0x30] sm:$0xff]
      %v205 = vld [vmem:[%s190 + $0x38] sm:$0xff]
      %v206 = vlaneseq
      %v207 = vshrl.u32 %v206, 7
      %v208 = vsub.s32 0, %v207
      %v209 = vrot.slane %v196, %v208
      %v210 = vmul.f32 %v198, %v209
      %v211 = vmul.f32 %v199, %v209
      %v212 = vmul.f32 %v200, %v209
      %v213 = vmul.f32 %v201, %v209
      %v214 = vmul.f32 %v202, %v209
      %v215 = vmul.f32 %v203, %v209
      %v216 = vmul.f32 %v204, %v209
      %v217 = vmul.f32 %v205, %v209
      %v218 = vlaneseq
      %v219 = vshrl.u32 %v218, 7
      %v220 = vsub.s32 0, %v219
      %v221 = vrot.slane %v197, %v220
      %v222 = vadd.f32 %v210, %v221
      %v223 = vadd.f32 %v211, %v221
      %v224 = vadd.f32 %v212, %v221
      %v225 = vadd.f32 %v213, %v221
      %v226 = vadd.f32 %v214, %v221
      %v227 = vadd.f32 %v215, %v221
      %v228 = vadd.f32 %v216, %v221
      %v229 = vadd.f32 %v217, %v221
      %v230 = vmax.f32 %v222, 0.0
      %v231 = vmax.f32 %v223, 0.0
      %v232 = vmax.f32 %v224, 0.0
      %v233 = vmax.f32 %v225, 0.0
      %v234 = vmax.f32 %v226, 0.0
      %v235 = vmax.f32 %v227, 0.0
      %v236 = vmax.f32 %v228, 0.0
      %v237 = vmax.f32 %v229, 0.0
      %238 = vst [vmem:[#allocation2] sm:$0xff] 0.0
      %239 = vst [vmem:[#allocation2 + $0x8] sm:$0x3] 0.0
      %240 = vst [vmem:[#allocation2 + $0x10] sm:$0xff] 0.0
      %241 = vst [vmem:[#allocation2 + $0x18] sm:$0x3] 0.0
      %242 = vst [vmem:[#allocation2 + $0x20] sm:$0xff] 0.0
      %243 = vst [vmem:[#allocation2 + $0x28] sm:$0x3] 0.0
      %244 = vst [vmem:[#allocation2 + $0x30] sm:$0xff] 0.0
      %245 = vst [vmem:[#allocation2 + $0x38] sm:$0x3] 0.0
      %246 = vst [vmem:[#allocation2 + $0x40] sm:$0xff] 0.0
      %247 = vst [vmem:[#allocation2 + $0x48] sm:$0x3] 0.0
      %248 = vst [vmem:[#allocation2 + $0x50] sm:$0xff] 0.0
      %249 = vst [vmem:[#allocation2 + $0x58] sm:$0x3] 0.0
      %250 = vst [vmem:[#allocation2 + $0x60] sm:$0xff] 0.0
      %251 = vst [vmem:[#allocation2 + $0x68] sm:$0x3] 0.0
      %252 = vst [vmem:[#allocation2 + $0x70] sm:$0xff] 0.0
      %253 = vst [vmem:[#allocation2 + $0x78] sm:$0x3] 0.0
      %254 = vst [vmem:[#allocation2 + $0x80] sm:$0xff] 0.0
      %255 = vst [vmem:[#allocation2 + $0x88] sm:$0x3] 0.0
      %256 = vst [vmem:[#allocation2 + $0x90] sm:$0xff] 0.0
      %257 = vst [vmem:[#allocation2 + $0x98] sm:$0x3] 0.0
      %s258 = scalar_lea.vmem [#allocation2], 16
      %259 = vst [vmem:[%s258 + $0x1] sm:$0xff] %v230
      %260 = vst [vmem:[%s258 + $0x11] sm:$0xff] %v231
      %261 = vst [vmem:[%s258 + $0x21] sm:$0xff] %v232
      %262 = vst [vmem:[%s258 + $0x31] sm:$0xff] %v233
      %263 = vst [vmem:[%s258 + $0x41] sm:$0xff] %v234
      %264 = vst [vmem:[%s258 + $0x51] sm:$0xff] %v235
      %265 = vst [vmem:[%s258 + $0x61] sm:$0xff] %v236
      %266 = vst [vmem:[%s258 + $0x71] sm:$0xff] %v237
      %v267 = vld [vmem:[#allocation2] sm:$0xff]
      %v268 = vld [vmem:[#allocation2 + $0x10] sm:$0xff]
      %v269 = vld [vmem:[#allocation2 + $0x20] sm:$0xff]
      %v270 = vld [vmem:[#allocation2 + $0x30] sm:$0xff]
      %v271 = vld [vmem:[#allocation2 + $0x40] sm:$0xff]
      %v272 = vld [vmem:[#allocation2 + $0x50] sm:$0xff]
      %v273 = vld [vmem:[#allocation2 + $0x60] sm:$0xff]
      %v274 = vld [vmem:[#allocation2 + $0x70] sm:$0xff]
      %275 = vst [vmem:[#allocation3] sm:$0xff] %v267
      %276 = vst [vmem:[#allocation3 + $0x48] sm:$0xff] %v268
      %277 = vst [vmem:[#allocation3 + $0x90] sm:$0xff] %v269
      %278 = vst [vmem:[#allocation3 + $0xd8] sm:$0xff] %v270
      %279 = vst [vmem:[#allocation3 + $0x120] sm:$0xff] %v271
      %280 = vst [vmem:[#allocation3 + $0x168] sm:$0xff] %v272
      %281 = vst [vmem:[#allocation3 + $0x1b0] sm:$0xff] %v273
      %282 = vst [vmem:[#allocation3 + $0x1f8] sm:$0xff] %v274
      %v283 = vld [vmem:[#allocation2 + $0x1] sm:$0xff]
      %v284 = vld [vmem:[#allocation2 + $0x11] sm:$0xff]
      %v285 = vld [vmem:[#allocation2 + $0x21] sm:$0xff]
      %v286 = vld [vmem:[#allocation2 + $0x31] sm:$0xff]
      %v287 = vld [vmem:[#allocation2 + $0x41] sm:$0xff]
      %v288 = vld [vmem:[#allocation2 + $0x51] sm:$0xff]
      %v289 = vld [vmem:[#allocation2 + $0x61] sm:$0xff]
      %v290 = vld [vmem:[#allocation2 + $0x71] sm:$0xff]
      %291 = vst [vmem:[#allocation3 + $0x8] sm:$0xff] %v283
      %292 = vst [vmem:[#allocation3 + $0x50] sm:$0xff] %v284
      %293 = vst [vmem:[#allocation3 + $0x98] sm:$0xff] %v285
      %294 = vst [vmem:[#allocation3 + $0xe0] sm:$0xff] %v286
      %295 = vst [vmem:[#allocation3 + $0x128] sm:$0xff] %v287
      %296 = vst [vmem:[#allocation3 + $0x170] sm:$0xff] %v288
      %297 = vst [vmem:[#allocation3 + $0x1b8] sm:$0xff] %v289
      %298 = vst [vmem:[#allocation3 + $0x200] sm:$0xff] %v290
      %v299 = vld [vmem:[#allocation2 + $0x2] sm:$0xff]
      %v300 = vld [vmem:[#allocation2 + $0x12] sm:$0xff]
      %v301 = vld [vmem:[#allocation2 + $0x22] sm:$0xff]
      %v302 = vld [vmem:[#allocation2 + $0x32] sm:$0xff]
      %v303 = vld [vmem:[#allocation2 + $0x42] sm:$0xff]
      %v304 = vld [vmem:[#allocation2 + $0x52] sm:$0xff]
      %v305 = vld [vmem:[#allocation2 + $0x62] sm:$0xff]
      %v306 = vld [vmem:[#allocation2 + $0x72] sm:$0xff]
      %307 = vst [vmem:[#allocation3 + $0x10] sm:$0xff] %v299
      %308 = vst [vmem:[#allocation3 + $0x58] sm:$0xff] %v300
      %309 = vst [vmem:[#allocation3 + $0xa0] sm:$0xff] %v301
      %310 = vst [vmem:[#allocation3 + $0xe8] sm:$0xff] %v302
      %311 = vst [vmem:[#allocation3 + $0x130] sm:$0xff] %v303
      %312 = vst [vmem:[#allocation3 + $0x178] sm:$0xff] %v304
      %313 = vst [vmem:[#allocation3 + $0x1c0] sm:$0xff] %v305
      %314 = vst [vmem:[#allocation3 + $0x208] sm:$0xff] %v306
      %v315 = vld [vmem:[%s258] sm:$0xff]
      %v316 = vld [vmem:[%s258 + $0x10] sm:$0xff]
      %v317 = vld [vmem:[%s258 + $0x20] sm:$0xff]
      %v318 = vld [vmem:[%s258 + $0x30] sm:$0xff]
      %v319 = vld [vmem:[%s258 + $0x40] sm:$0xff]
      %v320 = vld [vmem:[%s258 + $0x50] sm:$0xff]
      %v321 = vld [vmem:[%s258 + $0x60] sm:$0xff]
      %v322 = vld [vmem:[%s258 + $0x70] sm:$0xff]
      %323 = vst [vmem:[#allocation3 + $0x18] sm:$0xff] %v315
      %324 = vst [vmem:[#allocation3 + $0x60] sm:$0xff] %v316
      %325 = vst [vmem:[#allocation3 + $0xa8] sm:$0xff] %v317
      %326 = vst [vmem:[#allocation3 + $0xf0] sm:$0xff] %v318
      %327 = vst [vmem:[#allocation3 + $0x138] sm:$0xff] %v319
      %328 = vst [vmem:[#allocation3 + $0x180] sm:$0xff] %v320
      %329 = vst [vmem:[#allocation3 + $0x1c8] sm:$0xff] %v321
      %330 = vst [vmem:[#allocation3 + $0x210] sm:$0xff] %v322
      %v331 = vld [vmem:[%s258 + $0x1] sm:$0xff]
      %v332 = vld [vmem:[%s258 + $0x11] sm:$0xff]
      %v333 = vld [vmem:[%s258 + $0x21] sm:$0xff]
      %v334 = vld [vmem:[%s258 + $0x31] sm:$0xff]
      %v335 = vld [vmem:[%s258 + $0x41] sm:$0xff]
      %v336 = vld [vmem:[%s258 + $0x51] sm:$0xff]
      %v337 = vld [vmem:[%s258 + $0x61] sm:$0xff]
      %v338 = vld [vmem:[%s258 + $0x71] sm:$0xff]
      %339 = vst [vmem:[#allocation3 + $0x20] sm:$0xff] %v331
      %340 = vst [vmem:[#allocation3 + $0x68] sm:$0xff] %v332
      %341 = vst [vmem:[#allocation3 + $0xb0] sm:$0xff] %v333
      %342 = vst [vmem:[#allocation3 + $0xf8] sm:$0xff] %v334
      %343 = vst [vmem:[#allocation3 + $0x140] sm:$0xff] %v335
      %344 = vst [vmem:[#allocation3 + $0x188] sm:$0xff] %v336
      %345 = vst [vmem:[#allocation3 + $0x1d0] sm:$0xff] %v337
      %346 = vst [vmem:[#allocation3 + $0x218] sm:$0xff] %v338
      %v347 = vld [vmem:[%s258 + $0x2] sm:$0xff]
      %v348 = vld [vmem:[%s258 + $0x12] sm:$0xff]
      %v349 = vld [vmem:[%s258 + $0x22] sm:$0xff]
      %v350 = vld [vmem:[%s258 + $0x32] sm:$0xff]
      %v351 = vld [vmem:[%s258 + $0x42] sm:$0xff]
      %v352 = vld [vmem:[%s258 + $0x52] sm:$0xff]
      %v353 = vld [vmem:[%s258 + $0x62] sm:$0xff]
      %v354 = vld [vmem:[%s258 + $0x72] sm:$0xff]
      %355 = vst [vmem:[#allocation3 + $0x28] sm:$0xff] %v347
      %356 = vst [vmem:[#allocation3 + $0x70] sm:$0xff] %v348
      %357 = vst [vmem:[#allocation3 + $0xb8] sm:$0xff] %v349
      %358 = vst [vmem:[#allocation3 + $0x100] sm:$0xff] %v350
      %359 = vst [vmem:[#allocation3 + $0x148] sm:$0xff] %v351
      %360 = vst [vmem:[#allocation3 + $0x190] sm:$0xff] %v352
      %361 = vst [vmem:[#allocation3 + $0x1d8] sm:$0xff] %v353
      %362 = vst [vmem:[#allocation3 + $0x220] sm:$0xff] %v354
      %s363 = scalar_lea.vmem [#allocation2], 32
      %v364 = vld [vmem:[%s363] sm:$0xff]
      %v365 = vld [vmem:[%s363 + $0x10] sm:$0xff]
      %v366 = vld [vmem:[%s363 + $0x20] sm:$0xff]
      %v367 = vld [vmem:[%s363 + $0x30] sm:$0xff]
      %v368 = vld [vmem:[%s363 + $0x40] sm:$0xff]
      %v369 = vld [vmem:[%s363 + $0x50] sm:$0xff]
      %v370 = vld [vmem:[%s363 + $0x60] sm:$0xff]
      %v371 = vld [vmem:[%s363 + $0x70] sm:$0xff]
      %372 = vst [vmem:[#allocation3 + $0x30] sm:$0xff] %v364
      %373 = vst [vmem:[#allocation3 + $0x78] sm:$0xff] %v365
      %374 = vst [vmem:[#allocation3 + $0xc0] sm:$0xff] %v366
      %375 = vst [vmem:[#allocation3 + $0x108] sm:$0xff] %v367
      %376 = vst [vmem:[#allocation3 + $0x150] sm:$0xff] %v368
      %377 = vst [vmem:[#allocation3 + $0x198] sm:$0xff] %v369
      %378 = vst [vmem:[#allocation3 + $0x1e0] sm:$0xff] %v370
      %379 = vst [vmem:[#allocation3 + $0x228] sm:$0xff] %v371
      %v380 = vld [vmem:[%s363 + $0x1] sm:$0xff]
      %v381 = vld [vmem:[%s363 + $0x11] sm:$0xff]
      %v382 = vld [vmem:[%s363 + $0x21] sm:$0xff]
      %v383 = vld [vmem:[%s363 + $0x31] sm:$0xff]
      %v384 = vld [vmem:[%s363 + $0x41] sm:$0xff]
      %v385 = vld [vmem:[%s363 + $0x51] sm:$0xff]
      %v386 = vld [vmem:[%s363 + $0x61] sm:$0xff]
      %v387 = vld [vmem:[%s363 + $0x71] sm:$0xff]
      %388 = vst [vmem:[#allocation3 + $0x38] sm:$0xff] %v380
      %389 = vst [vmem:[#allocation3 + $0x80] sm:$0xff] %v381
      %390 = vst [vmem:[#allocation3 + $0xc8] sm:$0xff] %v382
      %391 = vst [vmem:[#allocation3 + $0x110] sm:$0xff] %v383
      %392 = vst [vmem:[#allocation3 + $0x158] sm:$0xff] %v384
      %393 = vst [vmem:[#allocation3 + $0x1a0] sm:$0xff] %v385
      %394 = vst [vmem:[#allocation3 + $0x1e8] sm:$0xff] %v386
      %395 = vst [vmem:[#allocation3 + $0x230] sm:$0xff] %v387
      %v396 = vld [vmem:[%s363 + $0x2] sm:$0xff]
      %v397 = vld [vmem:[%s363 + $0x12] sm:$0xff]
      %v398 = vld [vmem:[%s363 + $0x22] sm:$0xff]
      %v399 = vld [vmem:[%s363 + $0x32] sm:$0xff]
      %v400 = vld [vmem:[%s363 + $0x42] sm:$0xff]
      %v401 = vld [vmem:[%s363 + $0x52] sm:$0xff]
      %v402 = vld [vmem:[%s363 + $0x62] sm:$0xff]
      %v403 = vld [vmem:[%s363 + $0x72] sm:$0xff]
      %404 = vst [vmem:[#allocation3 + $0x40] sm:$0xff] %v396
      %405 = vst [vmem:[#allocation3 + $0x88] sm:$0xff] %v397
      %406 = vst [vmem:[#allocation3 + $0xd0] sm:$0xff] %v398
      %407 = vst [vmem:[#allocation3 + $0x118] sm:$0xff] %v399
      %408 = vst [vmem:[#allocation3 + $0x160] sm:$0xff] %v400
      %409 = vst [vmem:[#allocation3 + $0x1a8] sm:$0xff] %v401
      %410 = vst [vmem:[#allocation3 + $0x1f0] sm:$0xff] %v402
      %411 = vst [vmem:[#allocation3 + $0x238] sm:$0xff] %v403
      %v412 = vld [vmem:[#allocation3] sm:$0xff]
      %v413 = vld [vmem:[#allocation3 + $0x8] sm:$0xff]
      %v414 = vld [vmem:[#allocation3 + $0x10] sm:$0xff]
      %v415 = vld [vmem:[#allocation3 + $0x18] sm:$0xff]
      %v416 = vld [vmem:[#allocation3 + $0x20] sm:$0xff]
      %v417 = vld [vmem:[#allocation3 + $0x28] sm:$0xff]
      %v418 = vld [vmem:[#allocation3 + $0x30] sm:$0xff]
      %v419 = vld [vmem:[#allocation3 + $0x38] sm:$0xff]
      %v420 = vld [vmem:[#allocation3 + $0x40] sm:$0xff]
      %v421 = vld [vmem:[#allocation3 + $0x48] sm:$0xff]
      %v422 = vld [vmem:[#allocation3 + $0x50] sm:$0xff]
      %v423 = vld [vmem:[#allocation3 + $0x58] sm:$0xff]
      %v424 = vld [vmem:[#allocation3 + $0x60] sm:$0xff]
      %v425 = vld [vmem:[#allocation3 + $0x68] sm:$0xff]
      %v426 = vld [vmem:[#allocation3 + $0x70] sm:$0xff]
      %v427 = vld [vmem:[#allocation3 + $0x78] sm:$0xff]
      %v428 = vld [vmem:[#allocation3 + $0x80] sm:$0xff]
      %v429 = vld [vmem:[#allocation3 + $0x88] sm:$0xff]
      %v430 = vld [vmem:[#allocation3 + $0x90] sm:$0xff]
      %v431 = vld [vmem:[#allocation3 + $0x98] sm:$0xff]
      %v432 = vld [vmem:[#allocation3 + $0xa0] sm:$0xff]
      %v433 = vld [vmem:[#allocation3 + $0xa8] sm:$0xff]
      %v434 = vld [vmem:[#allocation3 + $0xb0] sm:$0xff]
      %v435 = vld [vmem:[#allocation3 + $0xb8] sm:$0xff]
      %v436 = vld [vmem:[#allocation3 + $0xc0] sm:$0xff]
      %v437 = vld [vmem:[#allocation3 + $0xc8] sm:$0xff]
      %v438 = vld [vmem:[#allocation3 + $0xd0] sm:$0xff]
      %v439 = vld [vmem:[#allocation3 + $0xd8] sm:$0xff]
      %v440 = vld [vmem:[#allocation3 + $0xe0] sm:$0xff]
      %v441 = vld [vmem:[#allocation3 + $0xe8] sm:$0xff]
      %v442 = vld [vmem:[#allocation3 + $0xf0] sm:$0xff]
      %v443 = vld [vmem:[#allocation3 + $0xf8] sm:$0xff]
      %v444 = vld [vmem:[#allocation3 + $0x100] sm:$0xff]
      %v445 = vld [vmem:[#allocation3 + $0x108] sm:$0xff]
      %v446 = vld [vmem:[#allocation3 + $0x110] sm:$0xff]
      %v447 = vld [vmem:[#allocation3 + $0x118] sm:$0xff]
      %v448 = vld [vmem:[#allocation3 + $0x120] sm:$0xff]
      %v449 = vld [vmem:[#allocation3 + $0x128] sm:$0xff]
      %v450 = vld [vmem:[#allocation3 + $0x130] sm:$0xff]
      %v451 = vld [vmem:[#allocation3 + $0x138] sm:$0xff]
      %v452 = vld [vmem:[#allocation3 + $0x140] sm:$0xff]
      %v453 = vld [vmem:[#allocation3 + $0x148] sm:$0xff]
      %v454 = vld [vmem:[#allocation3 + $0x150] sm:$0xff]
      %v455 = vld [vmem:[#allocation3 + $0x158] sm:$0xff]
      %v456 = vld [vmem:[#allocation3 + $0x160] sm:$0xff]
      %v457 = vld [vmem:[#allocation3 + $0x168] sm:$0xff]
      %v458 = vld [vmem:[#allocation3 + $0x170] sm:$0xff]
      %v459 = vld [vmem:[#allocation3 + $0x178] sm:$0xff]
      %v460 = vld [vmem:[#allocation3 + $0x180] sm:$0xff]
      %v461 = vld [vmem:[#allocation3 + $0x188] sm:$0xff]
      %v462 = vld [vmem:[#allocation3 + $0x190] sm:$0xff]
      %v463 = vld [vmem:[#allocation3 + $0x198] sm:$0xff]
      %v464 = vld [vmem:[#allocation3 + $0x1a0] sm:$0xff]
      %v465 = vld [vmem:[#allocation3 + $0x1a8] sm:$0xff]
      %v466 = vld [vmem:[#allocation3 + $0x1b0] sm:$0xff]
      %v467 = vld [vmem:[#allocation3 + $0x1b8] sm:$0xff]
      %v468 = vld [vmem:[#allocation3 + $0x1c0] sm:$0xff]
      %v469 = vld [vmem:[#allocation3 + $0x1c8] sm:$0xff]
      %v470 = vld [vmem:[#allocation3 + $0x1d0] sm:$0xff]
      %v471 = vld [vmem:[#allocation3 + $0x1d8] sm:$0xff]
      %v472 = vld [vmem:[#allocation3 + $0x1e0] sm:$0xff]
      %v473 = vld [vmem:[#allocation3 + $0x1e8] sm:$0xff]
      %v474 = vld [vmem:[#allocation3 + $0x1f0] sm:$0xff]
      %v475 = vld [vmem:[#allocation3 + $0x1f8] sm:$0xff]
      %v476 = vld [vmem:[#allocation3 + $0x200] sm:$0xff]
      %v477 = vld [vmem:[#allocation3 + $0x208] sm:$0xff]
      %v478 = vld [vmem:[#allocation3 + $0x210] sm:$0xff]
      %v479 = vld [vmem:[#allocation3 + $0x218] sm:$0xff]
      %v480 = vld [vmem:[#allocation3 + $0x220] sm:$0xff]
      %v481 = vld [vmem:[#allocation3 + $0x228] sm:$0xff]
      %v482 = vld [vmem:[#allocation3 + $0x230] sm:$0xff]
      %v483 = vld [vmem:[#allocation3 + $0x238] sm:$0xff]
      %v484 = vld [vmem:[%s2] sm:$0xff]
      %v485 = vld [vmem:[%s2 + $0x8] sm:$0xff]
      %v486 = vld [vmem:[%s2 + $0x10] sm:$0xff]
      %v487 = vld [vmem:[%s2 + $0x18] sm:$0xff]
      %v488 = vld [vmem:[%s2 + $0x20] sm:$0xff]
      %v489 = vld [vmem:[%s2 + $0x28] sm:$0xff]
      %v490 = vld [vmem:[%s2 + $0x30] sm:$0xff]
      %v491 = vld [vmem:[%s2 + $0x38] sm:$0xff]
      %v492 = vld [vmem:[%s2 + $0x40] sm:$0xff]
      %v493 = vld [vmem:[%s2 + $0x48] sm:$0xff]
      %v494 = vld [vmem:[%s2 + $0x50] sm:$0xff]
      %v495 = vld [vmem:[%s2 + $0x58] sm:$0xff]
      %v496 = vld [vmem:[%s2 + $0x60] sm:$0xff]
      %v497 = vld [vmem:[%s2 + $0x68] sm:$0xff]
      %v498 = vld [vmem:[%s2 + $0x70] sm:$0xff]
      %v499 = vld [vmem:[%s2 + $0x78] sm:$0xff]
      %v500 = vld [vmem:[%s2 + $0x80] sm:$0xff]
      %v501 = vld [vmem:[%s2 + $0x88] sm:$0xff]
      %v502 = vld [vmem:[%s2 + $0x90] sm:$0xff]
      %v503 = vld [vmem:[%s2 + $0x98] sm:$0xff]
      %v504 = vld [vmem:[%s2 + $0xa0] sm:$0xff]
      %v505 = vld [vmem:[%s2 + $0xa8] sm:$0xff]
      %v506 = vld [vmem:[%s2 + $0xb0] sm:$0xff]
      %v507 = vld [vmem:[%s2 + $0xb8] sm:$0xff]
      %v508 = vld [vmem:[%s2 + $0xc0] sm:$0xff]
      %v509 = vld [vmem:[%s2 + $0xc8] sm:$0xff]
      %v510 = vld [vmem:[%s2 + $0xd0] sm:$0xff]
      %v511 = vld [vmem:[%s2 + $0xd8] sm:$0xff]
      %v512 = vld [vmem:[%s2 + $0xe0] sm:$0xff]
      %v513 = vld [vmem:[%s2 + $0xe8] sm:$0xff]
      %v514 = vld [vmem:[%s2 + $0xf0] sm:$0xff]
      %v515 = vld [vmem:[%s2 + $0xf8] sm:$0xff]
      %v516 = vld [vmem:[%s2 + $0x100] sm:$0xff]
      %v517 = vld [vmem:[%s2 + $0x108] sm:$0xff]
      %v518 = vld [vmem:[%s2 + $0x110] sm:$0xff]
      %v519 = vld [vmem:[%s2 + $0x118] sm:$0xff]
      %v520 = vld [vmem:[%s2 + $0x120] sm:$0xff]
      %v521 = vld [vmem:[%s2 + $0x128] sm:$0xff]
      %v522 = vld [vmem:[%s2 + $0x130] sm:$0xff]
      %v523 = vld [vmem:[%s2 + $0x138] sm:$0xff]
      %v524 = vld [vmem:[%s2 + $0x140] sm:$0xff]
      %v525 = vld [vmem:[%s2 + $0x148] sm:$0xff]
      %v526 = vld [vmem:[%s2 + $0x150] sm:$0xff]
      %v527 = vld [vmem:[%s2 + $0x158] sm:$0xff]
      %v528 = vld [vmem:[%s2 + $0x160] sm:$0xff]
      %v529 = vld [vmem:[%s2 + $0x168] sm:$0xff]
      %v530 = vld [vmem:[%s2 + $0x170] sm:$0xff]
      %v531 = vld [vmem:[%s2 + $0x178] sm:$0xff]
      %v532 = vld [vmem:[%s2 + $0x180] sm:$0xff]
      %v533 = vld [vmem:[%s2 + $0x188] sm:$0xff]
      %v534 = vld [vmem:[%s2 + $0x190] sm:$0xff]
      %v535 = vld [vmem:[%s2 + $0x198] sm:$0xff]
      %v536 = vld [vmem:[%s2 + $0x1a0] sm:$0xff]
      %v537 = vld [vmem:[%s2 + $0x1a8] sm:$0xff]
      %v538 = vld [vmem:[%s2 + $0x1b0] sm:$0xff]
      %v539 = vld [vmem:[%s2 + $0x1b8] sm:$0xff]
      %v540 = vld [vmem:[%s2 + $0x1c0] sm:$0xff]
      %v541 = vld [vmem:[%s2 + $0x1c8] sm:$0xff]
      %v542 = vld [vmem:[%s2 + $0x1d0] sm:$0xff]
      %v543 = vld [vmem:[%s2 + $0x1d8] sm:$0xff]
      %v544 = vld [vmem:[%s2 + $0x1e0] sm:$0xff]
      %v545 = vld [vmem:[%s2 + $0x1e8] sm:$0xff]
      %v546 = vld [vmem:[%s2 + $0x1f0] sm:$0xff]
      %v547 = vld [vmem:[%s2 + $0x1f8] sm:$0xff]
      %v548 = vld [vmem:[%s2 + $0x200] sm:$0xff]
      %v549 = vld [vmem:[%s2 + $0x208] sm:$0xff]
      %v550 = vld [vmem:[%s2 + $0x210] sm:$0xff]
      %v551 = vld [vmem:[%s2 + $0x218] sm:$0xff]
      %v552 = vld [vmem:[%s2 + $0x220] sm:$0xff]
      %v553 = vld [vmem:[%s2 + $0x228] sm:$0xff]
      %v554 = vld [vmem:[%s2 + $0x230] sm:$0xff]
      %v555 = vld [vmem:[%s2 + $0x238] sm:$0xff]
      %v556 = vld [vmem:[%s2 + $0x240] sm:$0xff]
      %v557 = vld [vmem:[%s2 + $0x248] sm:$0xff]
      %v558 = vld [vmem:[%s2 + $0x250] sm:$0xff]
      %v559 = vld [vmem:[%s2 + $0x258] sm:$0xff]
      %v560 = vld [vmem:[%s2 + $0x260] sm:$0xff]
      %v561 = vld [vmem:[%s2 + $0x268] sm:$0xff]
      %v562 = vld [vmem:[%s2 + $0x270] sm:$0xff]
      %v563 = vld [vmem:[%s2 + $0x278] sm:$0xff]
      %v564 = vld [vmem:[%s2 + $0x280] sm:$0xff]
      %v565 = vld [vmem:[%s2 + $0x288] sm:$0xff]
      %v566 = vld [vmem:[%s2 + $0x290] sm:$0xff]
      %v567 = vld [vmem:[%s2 + $0x298] sm:$0xff]
      %v568 = vld [vmem:[%s2 + $0x2a0] sm:$0xff]
      %v569 = vld [vmem:[%s2 + $0x2a8] sm:$0xff]
      %v570 = vld [vmem:[%s2 + $0x2b0] sm:$0xff]
      %v571 = vld [vmem:[%s2 + $0x2b8] sm:$0xff]
      %v572 = vld [vmem:[%s2 + $0x2c0] sm:$0xff]
      %v573 = vld [vmem:[%s2 + $0x2c8] sm:$0xff]
      %v574 = vld [vmem:[%s2 + $0x2d0] sm:$0xff]
      %v575 = vld [vmem:[%s2 + $0x2d8] sm:$0xff]
      %v576 = vld [vmem:[%s2 + $0x2e0] sm:$0xff]
      %v577 = vld [vmem:[%s2 + $0x2e8] sm:$0xff]
      %v578 = vld [vmem:[%s2 + $0x2f0] sm:$0xff]
      %v579 = vld [vmem:[%s2 + $0x2f8] sm:$0xff]
      %v580 = vld [vmem:[%s2 + $0x300] sm:$0xff]
      %v581 = vld [vmem:[%s2 + $0x308] sm:$0xff]
      %v582 = vld [vmem:[%s2 + $0x310] sm:$0xff]
      %v583 = vld [vmem:[%s2 + $0x318] sm:$0xff]
      %v584 = vld [vmem:[%s2 + $0x320] sm:$0xff]
      %v585 = vld [vmem:[%s2 + $0x328] sm:$0xff]
      %v586 = vld [vmem:[%s2 + $0x330] sm:$0xff]
      %v587 = vld [vmem:[%s2 + $0x338] sm:$0xff]
      %v588 = vld [vmem:[%s2 + $0x340] sm:$0xff]
      %v589 = vld [vmem:[%s2 + $0x348] sm:$0xff]
      %v590 = vld [vmem:[%s2 + $0x350] sm:$0xff]
      %v591 = vld [vmem:[%s2 + $0x358] sm:$0xff]
      %v592 = vld [vmem:[%s2 + $0x360] sm:$0xff]
      %v593 = vld [vmem:[%s2 + $0x368] sm:$0xff]
      %v594 = vld [vmem:[%s2 + $0x370] sm:$0xff]
      %v595 = vld [vmem:[%s2 + $0x378] sm:$0xff]
      %v596 = vld [vmem:[%s2 + $0x380] sm:$0xff]
      %v597 = vld [vmem:[%s2 + $0x388] sm:$0xff]
      %v598 = vld [vmem:[%s2 + $0x390] sm:$0xff]
      %v599 = vld [vmem:[%s2 + $0x398] sm:$0xff]
      %v600 = vld [vmem:[%s2 + $0x3a0] sm:$0xff]
      %v601 = vld [vmem:[%s2 + $0x3a8] sm:$0xff]
      %v602 = vld [vmem:[%s2 + $0x3b0] sm:$0xff]
      %v603 = vld [vmem:[%s2 + $0x3b8] sm:$0xff]
      %v604 = vld [vmem:[%s2 + $0x3c0] sm:$0xff]
      %v605 = vld [vmem:[%s2 + $0x3c8] sm:$0xff]
      %v606 = vld [vmem:[%s2 + $0x3d0] sm:$0xff]
      %v607 = vld [vmem:[%s2 + $0x3d8] sm:$0xff]
      %v608 = vld [vmem:[%s2 + $0x3e0] sm:$0xff]
      %v609 = vld [vmem:[%s2 + $0x3e8] sm:$0xff]
      %v610 = vld [vmem:[%s2 + $0x3f0] sm:$0xff]
      %v611 = vld [vmem:[%s2 + $0x3f8] sm:$0xff]
      %v612 = vld [vmem:[%s2 + $0x400] sm:$0xff]
      %v613 = vld [vmem:[%s2 + $0x408] sm:$0xff]
      %v614 = vld [vmem:[%s2 + $0x410] sm:$0xff]
      %v615 = vld [vmem:[%s2 + $0x418] sm:$0xff]
      %v616 = vld [vmem:[%s2 + $0x420] sm:$0xff]
      %v617 = vld [vmem:[%s2 + $0x428] sm:$0xff]
      %v618 = vld [vmem:[%s2 + $0x430] sm:$0xff]
      %v619 = vld [vmem:[%s2 + $0x438] sm:$0xff]
      %v620 = vld [vmem:[%s2 + $0x440] sm:$0xff]
      %v621 = vld [vmem:[%s2 + $0x448] sm:$0xff]
      %v622 = vld [vmem:[%s2 + $0x450] sm:$0xff]
      %v623 = vld [vmem:[%s2 + $0x458] sm:$0xff]
      %v624 = vld [vmem:[%s2 + $0x460] sm:$0xff]
      %v625 = vld [vmem:[%s2 + $0x468] sm:$0xff]
      %v626 = vld [vmem:[%s2 + $0x470] sm:$0xff]
      %v627 = vld [vmem:[%s2 + $0x478] sm:$0xff]
      %628 = vmatprep.subr.mxu0 0.0
      %629 = vmatpush1.msra.mxu0 %v499
      %630 = vmatprep.subr.mxu0 0.0
      %631 = vmatpush1.msra.mxu0 %v498
      %632 = vmatprep.subr.mxu0 0.0
      %633 = vmatpush1.msra.mxu0 %v497
      %634 = vmatprep.subr.mxu0 0.0
      %635 = vmatpush1.msra.mxu0 %v496
      %636 = vmatprep.subr.mxu0 0.0
      %637 = vmatpush1.msra.mxu0 %v495
      %638 = vmatprep.subr.mxu0 0.0
      %639 = vmatpush1.msra.mxu0 %v494
      %640 = vmatprep.subr.mxu0 0.0
      %641 = vmatpush1.msra.mxu0 %v493
      %642 = vmatprep.subr.mxu0 0.0
      %643 = vmatpush1.msra.mxu0 %v492
      %644 = vmatprep.subr.mxu0 0.0
      %645 = vmatpush1.msra.mxu0 %v491
      %646 = vmatprep.subr.mxu0 0.0
      %647 = vmatpush1.msra.mxu0 %v490
      %648 = vmatprep.subr.mxu0 0.0
      %649 = vmatpush1.msra.mxu0 %v489
      %650 = vmatprep.subr.mxu0 0.0
      %651 = vmatpush1.msra.mxu0 %v488
      %652 = vmatprep.subr.mxu0 0.0
      %653 = vmatpush1.msra.mxu0 %v487
      %654 = vmatprep.subr.mxu0 0.0
      %655 = vmatpush1.msra.mxu0 %v486
      %656 = vmatprep.subr.mxu0 0.0
      %657 = vmatpush1.msra.mxu0 %v485
      %658 = vmatprep.subr.mxu0 0.0
      %659 = vmatpush1.msra.mxu0 %v484
      %660 = vmatprep.subr.mxu0 0.0
      %661 = vmatpush2.msra.mxu0 %v515
      %662 = vmatprep.subr.mxu0 0.0
      %663 = vmatpush2.msra.mxu0 %v514
      %664 = vmatprep.subr.mxu0 0.0
      %665 = vmatpush2.msra.mxu0 %v513
      %666 = vmatprep.subr.mxu0 0.0
      %667 = vmatpush2.msra.mxu0 %v512
      %668 = vmatprep.subr.mxu0 0.0
      %669 = vmatpush2.msra.mxu0 %v511
      %670 = vmatprep.subr.mxu0 0.0
      %671 = vmatpush2.msra.mxu0 %v510
      %672 = vmatprep.subr.mxu0 0.0
      %673 = vmatpush2.msra.mxu0 %v509
      %674 = vmatprep.subr.mxu0 0.0
      %675 = vmatpush2.msra.mxu0 %v508
      %676 = vmatprep.subr.mxu0 0.0
      %677 = vmatpush2.msra.mxu0 %v507
      %678 = vmatprep.subr.mxu0 0.0
      %679 = vmatpush2.msra.mxu0 %v506
      %680 = vmatprep.subr.mxu0 0.0
      %681 = vmatpush2.msra.mxu0 %v505
      %682 = vmatprep.subr.mxu0 0.0
      %683 = vmatpush2.msra.mxu0 %v504
      %684 = vmatprep.subr.mxu0 0.0
      %685 = vmatpush2.msra.mxu0 %v503
      %686 = vmatprep.subr.mxu0 0.0
      %687 = vmatpush2.msra.mxu0 %v502
      %688 = vmatprep.subr.mxu0 0.0
      %689 = vmatpush2.msra.mxu0 %v501
      %690 = vmatprep.subr.mxu0 0.0
      %691 = vmatpush2.msra.mxu0 %v500
      %692 = vmatprep.mubr.f32.mxu0 %v413
      %693 = vmatmul.mubr.f32.gmra.mxu0 %v412
      %v694 = vpop.f32.mrf.mxu0
      %v695 = vadd.f32 0.0, %v694
      %v696 = vpop.f32.mrf.mxu0
      %697 = vmatprep.mubr.f32.mxu0 %v422
      %698 = vmatmul.mubr.f32.gmra.mxu0 %v421
      %v699 = vpop.f32.mrf.mxu0
      %v700 = vadd.f32 0.0, %v699
      %v701 = vpop.f32.mrf.mxu0
      %702 = vmatprep.mubr.f32.mxu0 %v431
      %703 = vmatmul.mubr.f32.gmra.mxu0 %v430
      %v704 = vpop.f32.mrf.mxu0
      %v705 = vadd.f32 0.0, %v704
      %v706 = vpop.f32.mrf.mxu0
      %707 = vmatprep.mubr.f32.mxu0 %v440
      %708 = vmatmul.mubr.f32.gmra.mxu0 %v439
      %v709 = vpop.f32.mrf.mxu0
      %v710 = vadd.f32 0.0, %v709
      %v711 = vpop.f32.mrf.mxu0
      %712 = vmatprep.mubr.f32.mxu0 %v449
      %713 = vmatmul.mubr.f32.gmra.mxu0 %v448
      %v714 = vpop.f32.mrf.mxu0
      %v715 = vadd.f32 0.0, %v714
      %v716 = vpop.f32.mrf.mxu0
      %717 = vmatprep.mubr.f32.mxu0 %v458
      %718 = vmatmul.mubr.f32.gmra.mxu0 %v457
      %v719 = vpop.f32.mrf.mxu0
      %v720 = vadd.f32 0.0, %v719
      %v721 = vpop.f32.mrf.mxu0
      %722 = vmatprep.mubr.f32.mxu0 %v467
      %723 = vmatmul.mubr.f32.gmra.mxu0 %v466
      %v724 = vpop.f32.mrf.mxu0
      %v725 = vadd.f32 0.0, %v724
      %v726 = vpop.f32.mrf.mxu0
      %727 = vmatprep.mubr.f32.mxu0 %v476
      %728 = vmatmul.mubr.f32.gmra.mxu0 %v475
      %v729 = vpop.f32.mrf.mxu0
      %v730 = vadd.f32 0.0, %v729
      %v731 = vpop.f32.mrf.mxu0
      %732 = vdwg.mxu0
      %733 = vmatprep.subr.mxu0 0.0
      %734 = vmatpush1.msra.mxu0 %v531
      %735 = vmatprep.subr.mxu0 0.0
      %736 = vmatpush1.msra.mxu0 %v530
      %737 = vmatprep.subr.mxu0 0.0
      %738 = vmatpush1.msra.mxu0 %v529
      %739 = vmatprep.subr.mxu0 0.0
      %740 = vmatpush1.msra.mxu0 %v528
      %741 = vmatprep.subr.mxu0 0.0
      %742 = vmatpush1.msra.mxu0 %v527
      %743 = vmatprep.subr.mxu0 0.0
      %744 = vmatpush1.msra.mxu0 %v526
      %745 = vmatprep.subr.mxu0 0.0
      %746 = vmatpush1.msra.mxu0 %v525
      %747 = vmatprep.subr.mxu0 0.0
      %748 = vmatpush1.msra.mxu0 %v524
      %749 = vmatprep.subr.mxu0 0.0
      %750 = vmatpush1.msra.mxu0 %v523
      %751 = vmatprep.subr.mxu0 0.0
      %752 = vmatpush1.msra.mxu0 %v522
      %753 = vmatprep.subr.mxu0 0.0
      %754 = vmatpush1.msra.mxu0 %v521
      %755 = vmatprep.subr.mxu0 0.0
      %756 = vmatpush1.msra.mxu0 %v520
      %757 = vmatprep.subr.mxu0 0.0
      %758 = vmatpush1.msra.mxu0 %v519
      %759 = vmatprep.subr.mxu0 0.0
      %760 = vmatpush1.msra.mxu0 %v518
      %761 = vmatprep.subr.mxu0 0.0
      %762 = vmatpush1.msra.mxu0 %v517
      %763 = vmatprep.subr.mxu0 0.0
      %764 = vmatpush1.msra.mxu0 %v516
      %765 = vmatprep.subr.mxu0 0.0
      %766 = vmatpush2.msra.mxu0 %v547
      %767 = vmatprep.subr.mxu0 0.0
      %768 = vmatpush2.msra.mxu0 %v546
      %769 = vmatprep.subr.mxu0 0.0
      %770 = vmatpush2.msra.mxu0 %v545
      %771 = vmatprep.subr.mxu0 0.0
      %772 = vmatpush2.msra.mxu0 %v544
      %773 = vmatprep.subr.mxu0 0.0
      %774 = vmatpush2.msra.mxu0 %v543
      %775 = vmatprep.subr.mxu0 0.0
      %776 = vmatpush2.msra.mxu0 %v542
      %777 = vmatprep.subr.mxu0 0.0
      %778 = vmatpush2.msra.mxu0 %v541
      %779 = vmatprep.subr.mxu0 0.0
      %780 = vmatpush2.msra.mxu0 %v540
      %781 = vmatprep.subr.mxu0 0.0
      %782 = vmatpush2.msra.mxu0 %v539
      %783 = vmatprep.subr.mxu0 0.0
      %784 = vmatpush2.msra.mxu0 %v538
      %785 = vmatprep.subr.mxu0 0.0
      %786 = vmatpush2.msra.mxu0 %v537
      %787 = vmatprep.subr.mxu0 0.0
      %788 = vmatpush2.msra.mxu0 %v536
      %789 = vmatprep.subr.mxu0 0.0
      %790 = vmatpush2.msra.mxu0 %v535
      %791 = vmatprep.subr.mxu0 0.0
      %792 = vmatpush2.msra.mxu0 %v534
      %793 = vmatprep.subr.mxu0 0.0
      %794 = vmatpush2.msra.mxu0 %v533
      %795 = vmatprep.subr.mxu0 0.0
      %796 = vmatpush2.msra.mxu0 %v532
      %797 = vmatprep.mubr.f32.mxu0 %v415
      %798 = vmatmul.mubr.f32.gmra.mxu0 %v414
      %v799 = vpop.f32.mrf.mxu0
      %v800 = vadd.f32 %v695, %v799
      %v801 = vpop.f32.mrf.mxu0
      %802 = vmatprep.mubr.f32.mxu0 %v424
      %803 = vmatmul.mubr.f32.gmra.mxu0 %v423
      %v804 = vpop.f32.mrf.mxu0
      %v805 = vadd.f32 %v700, %v804
      %v806 = vpop.f32.mrf.mxu0
      %807 = vmatprep.mubr.f32.mxu0 %v433
      %808 = vmatmul.mubr.f32.gmra.mxu0 %v432
      %v809 = vpop.f32.mrf.mxu0
      %v810 = vadd.f32 %v705, %v809
      %v811 = vpop.f32.mrf.mxu0
      %812 = vmatprep.mubr.f32.mxu0 %v442
      %813 = vmatmul.mubr.f32.gmra.mxu0 %v441
      %v814 = vpop.f32.mrf.mxu0
      %v815 = vadd.f32 %v710, %v814
      %v816 = vpop.f32.mrf.mxu0
      %817 = vmatprep.mubr.f32.mxu0 %v451
      %818 = vmatmul.mubr.f32.gmra.mxu0 %v450
      %v819 = vpop.f32.mrf.mxu0
      %v820 = vadd.f32 %v715, %v819
      %v821 = vpop.f32.mrf.mxu0
      %822 = vmatprep.mubr.f32.mxu0 %v460
      %823 = vmatmul.mubr.f32.gmra.mxu0 %v459
      %v824 = vpop.f32.mrf.mxu0
      %v825 = vadd.f32 %v720, %v824
      %v826 = vpop.f32.mrf.mxu0
      %827 = vmatprep.mubr.f32.mxu0 %v469
      %828 = vmatmul.mubr.f32.gmra.mxu0 %v468
      %v829 = vpop.f32.mrf.mxu0
      %v830 = vadd.f32 %v725, %v829
      %v831 = vpop.f32.mrf.mxu0
      %832 = vmatprep.mubr.f32.mxu0 %v478
      %833 = vmatmul.mubr.f32.gmra.mxu0 %v477
      %v834 = vpop.f32.mrf.mxu0
      %v835 = vadd.f32 %v730, %v834
      %v836 = vpop.f32.mrf.mxu0
      %837 = vdwg.mxu0
      %838 = vmatprep.subr.mxu0 0.0
      %839 = vmatpush1.msra.mxu0 %v563
      %840 = vmatprep.subr.mxu0 0.0
      %841 = vmatpush1.msra.mxu0 %v562
      %842 = vmatprep.subr.mxu0 0.0
      %843 = vmatpush1.msra.mxu0 %v561
      %844 = vmatprep.subr.mxu0 0.0
      %845 = vmatpush1.msra.mxu0 %v560
      %846 = vmatprep.subr.mxu0 0.0
      %847 = vmatpush1.msra.mxu0 %v559
      %848 = vmatprep.subr.mxu0 0.0
      %849 = vmatpush1.msra.mxu0 %v558
      %850 = vmatprep.subr.mxu0 0.0
      %851 = vmatpush1.msra.mxu0 %v557
      %852 = vmatprep.subr.mxu0 0.0
      %853 = vmatpush1.msra.mxu0 %v556
      %854 = vmatprep.subr.mxu0 0.0
      %855 = vmatpush1.msra.mxu0 %v555
      %856 = vmatprep.subr.mxu0 0.0
      %857 = vmatpush1.msra.mxu0 %v554
      %858 = vmatprep.subr.mxu0 0.0
      %859 = vmatpush1.msra.mxu0 %v553
      %860 = vmatprep.subr.mxu0 0.0
      %861 = vmatpush1.msra.mxu0 %v552
      %862 = vmatprep.subr.mxu0 0.0
      %863 = vmatpush1.msra.mxu0 %v551
      %864 = vmatprep.subr.mxu0 0.0
      %865 = vmatpush1.msra.mxu0 %v550
      %866 = vmatprep.subr.mxu0 0.0
      %867 = vmatpush1.msra.mxu0 %v549
      %868 = vmatprep.subr.mxu0 0.0
      %869 = vmatpush1.msra.mxu0 %v548
      %870 = vmatprep.subr.mxu0 0.0
      %871 = vmatpush2.msra.mxu0 %v579
      %872 = vmatprep.subr.mxu0 0.0
      %873 = vmatpush2.msra.mxu0 %v578
      %874 = vmatprep.subr.mxu0 0.0
      %875 = vmatpush2.msra.mxu0 %v577
      %876 = vmatprep.subr.mxu0 0.0
      %877 = vmatpush2.msra.mxu0 %v576
      %878 = vmatprep.subr.mxu0 0.0
      %879 = vmatpush2.msra.mxu0 %v575
      %880 = vmatprep.subr.mxu0 0.0
      %881 = vmatpush2.msra.mxu0 %v574
      %882 = vmatprep.subr.mxu0 0.0
      %883 = vmatpush2.msra.mxu0 %v573
      %884 = vmatprep.subr.mxu0 0.0
      %885 = vmatpush2.msra.mxu0 %v572
      %886 = vmatprep.subr.mxu0 0.0
      %887 = vmatpush2.msra.mxu0 %v571
      %888 = vmatprep.subr.mxu0 0.0
      %889 = vmatpush2.msra.mxu0 %v570
      %890 = vmatprep.subr.mxu0 0.0
      %891 = vmatpush2.msra.mxu0 %v569
      %892 = vmatprep.subr.mxu0 0.0
      %893 = vmatpush2.msra.mxu0 %v568
      %894 = vmatprep.subr.mxu0 0.0
      %895 = vmatpush2.msra.mxu0 %v567
      %896 = vmatprep.subr.mxu0 0.0
      %897 = vmatpush2.msra.mxu0 %v566
      %898 = vmatprep.subr.mxu0 0.0
      %899 = vmatpush2.msra.mxu0 %v565
      %900 = vmatprep.subr.mxu0 0.0
      %901 = vmatpush2.msra.mxu0 %v564
      %902 = vmatprep.mubr.f32.mxu0 %v417
      %903 = vmatmul.mubr.f32.gmra.mxu0 %v416
      %v904 = vpop.f32.mrf.mxu0
      %v905 = vadd.f32 %v800, %v904
      %v906 = vpop.f32.mrf.mxu0
      %907 = vmatprep.mubr.f32.mxu0 %v426
      %908 = vmatmul.mubr.f32.gmra.mxu0 %v425
      %v909 = vpop.f32.mrf.mxu0
      %v910 = vadd.f32 %v805, %v909
      %v911 = vpop.f32.mrf.mxu0
      %912 = vmatprep.mubr.f32.mxu0 %v435
      %913 = vmatmul.mubr.f32.gmra.mxu0 %v434
      %v914 = vpop.f32.mrf.mxu0
      %v915 = vadd.f32 %v810, %v914
      %v916 = vpop.f32.mrf.mxu0
      %917 = vmatprep.mubr.f32.mxu0 %v444
      %918 = vmatmul.mubr.f32.gmra.mxu0 %v443
      %v919 = vpop.f32.mrf.mxu0
      %v920 = vadd.f32 %v815, %v919
      %v921 = vpop.f32.mrf.mxu0
      %922 = vmatprep.mubr.f32.mxu0 %v453
      %923 = vmatmul.mubr.f32.gmra.mxu0 %v452
      %v924 = vpop.f32.mrf.mxu0
      %v925 = vadd.f32 %v820, %v924
      %v926 = vpop.f32.mrf.mxu0
      %927 = vmatprep.mubr.f32.mxu0 %v462
      %928 = vmatmul.mubr.f32.gmra.mxu0 %v461
      %v929 = vpop.f32.mrf.mxu0
      %v930 = vadd.f32 %v825, %v929
      %v931 = vpop.f32.mrf.mxu0
      %932 = vmatprep.mubr.f32.mxu0 %v471
      %933 = vmatmul.mubr.f32.gmra.mxu0 %v470
      %v934 = vpop.f32.mrf.mxu0
      %v935 = vadd.f32 %v830, %v934
      %v936 = vpop.f32.mrf.mxu0
      %937 = vmatprep.mubr.f32.mxu0 %v480
      %938 = vmatmul.mubr.f32.gmra.mxu0 %v479
      %v939 = vpop.f32.mrf.mxu0
      %v940 = vadd.f32 %v835, %v939
      %v941 = vpop.f32.mrf.mxu0
      %942 = vdwg.mxu0
      %943 = vmatprep.subr.mxu0 0.0
      %944 = vmatpush1.msra.mxu0 %v595
      %945 = vmatprep.subr.mxu0 0.0
      %946 = vmatpush1.msra.mxu0 %v594
      %947 = vmatprep.subr.mxu0 0.0
      %948 = vmatpush1.msra.mxu0 %v593
      %949 = vmatprep.subr.mxu0 0.0
      %950 = vmatpush1.msra.mxu0 %v592
      %951 = vmatprep.subr.mxu0 0.0
      %952 = vmatpush1.msra.mxu0 %v591
      %953 = vmatprep.subr.mxu0 0.0
      %954 = vmatpush1.msra.mxu0 %v590
      %955 = vmatprep.subr.mxu0 0.0
      %956 = vmatpush1.msra.mxu0 %v589
      %957 = vmatprep.subr.mxu0 0.0
      %958 = vmatpush1.msra.mxu0 %v588
      %959 = vmatprep.subr.mxu0 0.0
      %960 = vmatpush1.msra.mxu0 %v587
      %961 = vmatprep.subr.mxu0 0.0
      %962 = vmatpush1.msra.mxu0 %v586
      %963 = vmatprep.subr.mxu0 0.0
      %964 = vmatpush1.msra.mxu0 %v585
      %965 = vmatprep.subr.mxu0 0.0
      %966 = vmatpush1.msra.mxu0 %v584
      %967 = vmatprep.subr.mxu0 0.0
      %968 = vmatpush1.msra.mxu0 %v583
      %969 = vmatprep.subr.mxu0 0.0
      %970 = vmatpush1.msra.mxu0 %v582
      %971 = vmatprep.subr.mxu0 0.0
      %972 = vmatpush1.msra.mxu0 %v581
      %973 = vmatprep.subr.mxu0 0.0
      %974 = vmatpush1.msra.mxu0 %v580
      %975 = vmatprep.subr.mxu0 0.0
      %976 = vmatpush2.msra.mxu0 %v611
      %977 = vmatprep.subr.mxu0 0.0
      %978 = vmatpush2.msra.mxu0 %v610
      %979 = vmatprep.subr.mxu0 0.0
      %980 = vmatpush2.msra.mxu0 %v609
      %981 = vmatprep.subr.mxu0 0.0
      %982 = vmatpush2.msra.mxu0 %v608
      %983 = vmatprep.subr.mxu0 0.0
      %984 = vmatpush2.msra.mxu0 %v607
      %985 = vmatprep.subr.mxu0 0.0
      %986 = vmatpush2.msra.mxu0 %v606
      %987 = vmatprep.subr.mxu0 0.0
      %988 = vmatpush2.msra.mxu0 %v605
      %989 = vmatprep.subr.mxu0 0.0
      %990 = vmatpush2.msra.mxu0 %v604
      %991 = vmatprep.subr.mxu0 0.0
      %992 = vmatpush2.msra.mxu0 %v603
      %993 = vmatprep.subr.mxu0 0.0
      %994 = vmatpush2.msra.mxu0 %v602
      %995 = vmatprep.subr.mxu0 0.0
      %996 = vmatpush2.msra.mxu0 %v601
      %997 = vmatprep.subr.mxu0 0.0
      %998 = vmatpush2.msra.mxu0 %v600
      %999 = vmatprep.subr.mxu0 0.0
      %1000 = vmatpush2.msra.mxu0 %v599
      %1001 = vmatprep.subr.mxu0 0.0
      %1002 = vmatpush2.msra.mxu0 %v598
      %1003 = vmatprep.subr.mxu0 0.0
      %1004 = vmatpush2.msra.mxu0 %v597
      %1005 = vmatprep.subr.mxu0 0.0
      %1006 = vmatpush2.msra.mxu0 %v596
      %1007 = vmatprep.mubr.f32.mxu0 %v419
      %1008 = vmatmul.mubr.f32.gmra.mxu0 %v418
      %v1009 = vpop.f32.mrf.mxu0
      %v1010 = vadd.f32 %v905, %v1009
      %v1011 = vpop.f32.mrf.mxu0
      %1012 = vmatprep.mubr.f32.mxu0 %v428
      %1013 = vmatmul.mubr.f32.gmra.mxu0 %v427
      %v1014 = vpop.f32.mrf.mxu0
      %v1015 = vadd.f32 %v910, %v1014
      %v1016 = vpop.f32.mrf.mxu0
      %1017 = vmatprep.mubr.f32.mxu0 %v437
      %1018 = vmatmul.mubr.f32.gmra.mxu0 %v436
      %v1019 = vpop.f32.mrf.mxu0
      %v1020 = vadd.f32 %v915, %v1019
      %v1021 = vpop.f32.mrf.mxu0
      %1022 = vmatprep.mubr.f32.mxu0 %v446
      %1023 = vmatmul.mubr.f32.gmra.mxu0 %v445
      %v1024 = vpop.f32.mrf.mxu0
      %v1025 = vadd.f32 %v920, %v1024
      %v1026 = vpop.f32.mrf.mxu0
      %1027 = vmatprep.mubr.f32.mxu0 %v455
      %1028 = vmatmul.mubr.f32.gmra.mxu0 %v454
      %v1029 = vpop.f32.mrf.mxu0
      %v1030 = vadd.f32 %v925, %v1029
      %v1031 = vpop.f32.mrf.mxu0
      %1032 = vmatprep.mubr.f32.mxu0 %v464
      %1033 = vmatmul.mubr.f32.gmra.mxu0 %v463
      %v1034 = vpop.f32.mrf.mxu0
      %v1035 = vadd.f32 %v930, %v1034
      %v1036 = vpop.f32.mrf.mxu0
      %1037 = vmatprep.mubr.f32.mxu0 %v473
      %1038 = vmatmul.mubr.f32.gmra.mxu0 %v472
      %v1039 = vpop.f32.mrf.mxu0
      %v1040 = vadd.f32 %v935, %v1039
      %v1041 = vpop.f32.mrf.mxu0
      %1042 = vmatprep.mubr.f32.mxu0 %v482
      %1043 = vmatmul.mubr.f32.gmra.mxu0 %v481
      %v1044 = vpop.f32.mrf.mxu0
      %v1045 = vadd.f32 %v940, %v1044
      %v1046 = vpop.f32.mrf.mxu0
      %1047 = vdwg.mxu0
      %1048 = vmatprep.subr.mxu0 0.0
      %1049 = vmatpush1.msra.mxu0 %v627
      %1050 = vmatprep.subr.mxu0 0.0
      %1051 = vmatpush1.msra.mxu0 %v626
      %1052 = vmatprep.subr.mxu0 0.0
      %1053 = vmatpush1.msra.mxu0 %v625
      %1054 = vmatprep.subr.mxu0 0.0
      %1055 = vmatpush1.msra.mxu0 %v624
      %1056 = vmatprep.subr.mxu0 0.0
      %1057 = vmatpush1.msra.mxu0 %v623
      %1058 = vmatprep.subr.mxu0 0.0
      %1059 = vmatpush1.msra.mxu0 %v622
      %1060 = vmatprep.subr.mxu0 0.0
      %1061 = vmatpush1.msra.mxu0 %v621
      %1062 = vmatprep.subr.mxu0 0.0
      %1063 = vmatpush1.msra.mxu0 %v620
      %1064 = vmatprep.subr.mxu0 0.0
      %1065 = vmatpush1.msra.mxu0 %v619
      %1066 = vmatprep.subr.mxu0 0.0
      %1067 = vmatpush1.msra.mxu0 %v618
      %1068 = vmatprep.subr.mxu0 0.0
      %1069 = vmatpush1.msra.mxu0 %v617
      %1070 = vmatprep.subr.mxu0 0.0
      %1071 = vmatpush1.msra.mxu0 %v616
      %1072 = vmatprep.subr.mxu0 0.0
      %1073 = vmatpush1.msra.mxu0 %v615
      %1074 = vmatprep.subr.mxu0 0.0
      %1075 = vmatpush1.msra.mxu0 %v614
      %1076 = vmatprep.subr.mxu0 0.0
      %1077 = vmatpush1.msra.mxu0 %v613
      %1078 = vmatprep.subr.mxu0 0.0
      %1079 = vmatpush1.msra.mxu0 %v612
      %1080 = vmatprep.subr.mxu0 0.0
      %1081 = vmatpush2.msra.mxu0 0.0
      %1082 = vmatprep.subr.mxu0 0.0
      %1083 = vmatpush2.msra.mxu0 0.0
      %1084 = vmatprep.subr.mxu0 0.0
      %1085 = vmatpush2.msra.mxu0 0.0
      %1086 = vmatprep.subr.mxu0 0.0
      %1087 = vmatpush2.msra.mxu0 0.0
      %1088 = vmatprep.subr.mxu0 0.0
      %1089 = vmatpush2.msra.mxu0 0.0
      %1090 = vmatprep.subr.mxu0 0.0
      %1091 = vmatpush2.msra.mxu0 0.0
      %1092 = vmatprep.subr.mxu0 0.0
      %1093 = vmatpush2.msra.mxu0 0.0
      %1094 = vmatprep.subr.mxu0 0.0
      %1095 = vmatpush2.msra.mxu0 0.0
      %1096 = vmatprep.subr.mxu0 0.0
      %1097 = vmatpush2.msra.mxu0 0.0
      %1098 = vmatprep.subr.mxu0 0.0
      %1099 = vmatpush2.msra.mxu0 0.0
      %1100 = vmatprep.subr.mxu0 0.0
      %1101 = vmatpush2.msra.mxu0 0.0
      %1102 = vmatprep.subr.mxu0 0.0
      %1103 = vmatpush2.msra.mxu0 0.0
      %1104 = vmatprep.subr.mxu0 0.0
      %1105 = vmatpush2.msra.mxu0 0.0
      %1106 = vmatprep.subr.mxu0 0.0
      %1107 = vmatpush2.msra.mxu0 0.0
      %1108 = vmatprep.subr.mxu0 0.0
      %1109 = vmatpush2.msra.mxu0 0.0
      %1110 = vmatprep.subr.mxu0 0.0
      %1111 = vmatpush2.msra.mxu0 0.0
      %1112 = vmatprep.mubr.f32.mxu0 0.0
      %1113 = vmatmul.mubr.f32.gmra.mxu0 %v420
      %v1114 = vpop.f32.mrf.mxu0
      %v1115 = vadd.f32 %v1010, %v1114
      %v1116 = vpop.f32.mrf.mxu0
      %1117 = vmatprep.mubr.f32.mxu0 0.0
      %1118 = vmatmul.mubr.f32.gmra.mxu0 %v429
      %v1119 = vpop.f32.mrf.mxu0
      %v1120 = vadd.f32 %v1015, %v1119
      %v1121 = vpop.f32.mrf.mxu0
      %1122 = vmatprep.mubr.f32.mxu0 0.0
      %1123 = vmatmul.mubr.f32.gmra.mxu0 %v438
      %v1124 = vpop.f32.mrf.mxu0
      %v1125 = vadd.f32 %v1020, %v1124
      %v1126 = vpop.f32.mrf.mxu0
      %1127 = vmatprep.mubr.f32.mxu0 0.0
      %1128 = vmatmul.mubr.f32.gmra.mxu0 %v447
      %v1129 = vpop.f32.mrf.mxu0
      %v1130 = vadd.f32 %v1025, %v1129
      %v1131 = vpop.f32.mrf.mxu0
      %1132 = vmatprep.mubr.f32.mxu0 0.0
      %1133 = vmatmul.mubr.f32.gmra.mxu0 %v456
      %v1134 = vpop.f32.mrf.mxu0
      %v1135 = vadd.f32 %v1030, %v1134
      %v1136 = vpop.f32.mrf.mxu0
      %1137 = vmatprep.mubr.f32.mxu0 0.0
      %1138 = vmatmul.mubr.f32.gmra.mxu0 %v465
      %v1139 = vpop.f32.mrf.mxu0
      %v1140 = vadd.f32 %v1035, %v1139
      %v1141 = vpop.f32.mrf.mxu0
      %1142 = vmatprep.mubr.f32.mxu0 0.0
      %1143 = vmatmul.mubr.f32.gmra.mxu0 %v474
      %v1144 = vpop.f32.mrf.mxu0
      %v1145 = vadd.f32 %v1040, %v1144
      %v1146 = vpop.f32.mrf.mxu0
      %1147 = vmatprep.mubr.f32.mxu0 0.0
      %1148 = vmatmul.mubr.f32.gmra.mxu0 %v483
      %v1149 = vpop.f32.mrf.mxu0
      %v1150 = vadd.f32 %v1045, %v1149
      %v1151 = vpop.f32.mrf.mxu0
      %1152 = vdwg.mxu0
      %1153 = vst [vmem:[%s195] sm:$0xff] %v1115
      %1154 = vst [vmem:[%s195 + $0x8] sm:$0xff] %v1120
      %1155 = vst [vmem:[%s195 + $0x10] sm:$0xff] %v1125
      %1156 = vst [vmem:[%s195 + $0x18] sm:$0xff] %v1130
      %1157 = vst [vmem:[%s195 + $0x20] sm:$0xff] %v1135
      %1158 = vst [vmem:[%s195 + $0x28] sm:$0xff] %v1140
      %1159 = vst [vmem:[%s195 + $0x30] sm:$0xff] %v1145
      %1160 = vst [vmem:[%s195 + $0x38] sm:$0xff] %v1150
      %p1161 = scmp.eq.s32.totalorder %s16, 0
      // Predicated region
      $region33: #{down2d_forward.4} parent=31 // pred_check
        %p1162 = pneg %p1161
      $region34: #{down2d_forward.4} parent=31 // pred_check_branch
        %1164 = sbr.rel (%p1162) target = $region36
      $region35: #{down2d_forward.4} parent=31 // pred_region
        %1165 = vst [vmem:[%s4] sm:$0x3] 0.0
      $region36: #{down2d_forward.4} parent=31 // pred_fallthru
        _
      %v1166 = vld [vmem:[%s4] sm:$0x1]
      %v1167 = vadd.f32 %v1115, %v1120
      %v1168 = vadd.f32 %v1167, %v1125
      %v1169 = vadd.f32 %v1168, %v1130
      %v1170 = vadd.f32 %v1169, %v1135
      %v1171 = vadd.f32 %v1170, %v1140
      %v1172 = vadd.f32 %v1171, %v1145
      %v1173 = vadd.f32 %v1172, %v1150
      %v1174 = vrot.slane %v1173, 4
      %v1175 = vadd.f32 %v1173, %v1174
      %v1176 = vrot.slane %v1175, 2
      %v1177 = vadd.f32 %v1175, %v1176
      %v1178 = vrot.slane %v1177, 1
      %v1179 = vadd.f32 %v1177, %v1178
      %v1180 = vadd.f32 %v1166, %v1179
      %1181 = vst [vmem:[%s4] sm:$0x1] %v1180
      %v1182 = vld [vmem:[%s4 + $0x1] sm:$0x1]
      %v1183 = vmul.f32 %v1115, %v1115
      %v1184 = vmul.f32 %v1120, %v1120
      %v1185 = vmul.f32 %v1125, %v1125
      %v1186 = vmul.f32 %v1130, %v1130
      %v1187 = vmul.f32 %v1135, %v1135
      %v1188 = vmul.f32 %v1140, %v1140
      %v1189 = vmul.f32 %v1145, %v1145
      %v1190 = vmul.f32 %v1150, %v1150
      %v1191 = vadd.f32 %v1183, %v1184
      %v1192 = vadd.f32 %v1191, %v1185
      %v1193 = vadd.f32 %v1192, %v1186
      %v1194 = vadd.f32 %v1193, %v1187
      %v1195 = vadd.f32 %v1194, %v1188
      %v1196 = vadd.f32 %v1195, %v1189
      %v1197 = vadd.f32 %v1196, %v1190
      %v1198 = vrot.slane %v1197, 4
      %v1199 = vadd.f32 %v1197, %v1198
      %v1200 = vrot.slane %v1199, 2
      %v1201 = vadd.f32 %v1199, %v1200
      %v1202 = vrot.slane %v1201, 1
      %v1203 = vadd.f32 %v1201, %v1202
      %v1204 = vadd.f32 %v1182, %v1203
      %1205 = vst [vmem:[%s4 + $0x1] sm:$0x1] %v1204
      %p1206 = scmp.lt.s32.totalorder %s16, 1
      %s1207 = scalar_select %p1206, %s16, 1
      %s1208 = smul.addr %s1207, 8
      %s1209 = smul.addr %s1208, 8
      %s1210 = scalar_lea.vmem %s3, %s1209
      // Predicated region
      $region37: #{down2d_forward.4} parent=31 // pred_check
        %p1211 = pneg %p102
      $region38: #{down2d_forward.4} parent=31 // pred_check_branch
        %1213 = sbr.rel (%p1211) target = $region40
      $region39: #{down2d_forward.4} parent=31 // pred_region
        _
      $region40: #{down2d_forward.4} parent=31 // pred_fallthru
        _
      // Predicated region
      $region41: #{down2d_forward.4} parent=31 // pred_check
        %p1214 = pneg %p123
      $region42: #{down2d_forward.4} parent=31 // pred_check_branch
        %1216 = sbr.rel (%p1214) target = $region44
      $region43: #{down2d_forward.4} parent=31 // pred_region
        _
      $region44: #{down2d_forward.4} parent=31 // pred_fallthru
        _
      // Predicated region
      $region45: #{down2d_forward.4} parent=31 // pred_check
        %p1217 = pneg %p123
      $region46: #{down2d_forward.4} parent=31 // pred_check_branch
        %1219 = sbr.rel (%p1217) target = $region48
      $region47: #{down2d_forward.4} parent=31 // pred_region
        _
      $region48: #{down2d_forward.4} parent=31 // pred_fallthru
        _
    $region32: #{down2d_forward.4} parent=5 // pred_fallthru
      _
    %p1220 = scmp.le.s32.totalorder 2, %s11
    // Predicated region
    $region49: #{down2d_forward.4} parent=5 // pred_check
      %p1221 = pneg %p1220
    $region50: #{down2d_forward.4} parent=5 // pred_check_branch
      %1223 = sbr.rel (%p1221) target = $region52
    $region51: #{down2d_forward.4} parent=5 // pred_region
      %s1224 = ssub.s32 %s11, 2
      // Predicated region
      $region53: #{down2d_forward.4} parent=51 // pred_check
        %p1225 = pneg %p108
      $region54: #{down2d_forward.4} parent=51 // pred_check_branch
        %1227 = sbr.rel (%p1225) target = $region56
      $region55: #{down2d_forward.4} parent=51 // pred_region
        %p1228 = scmp.lt.s32.totalorder %s17, 1
        %s1229 = scalar_select %p1228, %s17, 1
        %s1230 = smul.addr %s1229, 8
        %s1231 = smul.addr %s1230, 8
        %s1232 = scalar_lea.vmem %s3, %s1231
      $region56: #{down2d_forward.4} parent=51 // pred_fallthru
        _
    $region52: #{down2d_forward.4} parent=5 // pred_fallthru
      _
  $region6: #{down2d_forward.4} parent=0 // loop_footer
    %s15 = sadd.s32 1, %s11
  $region7: #{down2d_forward.4} parent=0 // loop_footer_branch
    %10 = sbr.rel target = $region3
  $region8: #{down2d_forward.4} parent=0 // loop_exit
    _

// kernel: down2d_forward.3
$region0: #{down2d_forward.3}
  #allocation0 [shape = 'u32[]', space=smem, size = 0x4, offset = 0x4, fixed_abs, tag = 'smem constant byte address 0x4 - core index']
  #allocation1 [shape = 'u32[144,128]{1,0:T(1,128)}', space=vmem, size = 0x12000, scoped, tag = 'internal scratch']
  #allocation2 [shape = 'f32[10,10,128]{2,1,0:T(8,128)}', space=vmem, size = 0x14000, scoped, tag = 'scratch operand']
  #allocation3 [shape = 'f32[64,1152]{1,0:T(8,128)}', space=vmem, size = 0x48000, scoped, tag = 'scratch operand']
  %s0 = inlined_call_operand.vmem [shape: f32[2,8,2,8,256], index: 0, kind: input, shape index: {}]
  %s1 = inlined_call_operand.vmem [shape: f32[1152,128], index: 1, kind: input, shape index: {}]
  %s2 = inlined_call_operand.vmem [shape: f32[2,8,8,128], index: 2, kind: output, shape index: {0}]
  %s3 = inlined_call_operand.vmem [shape: f32[2,128], index: 3, kind: output, shape index: {1}]
  %4 = xla_tuple %s2, %s3
  %s5 = sld [smem:[#allocation0]]
  $region53: #{down2d_forward.3} parent=0
    _
  %s7 = ssub.s32 1, %s5
  %s8 = scalar_select 0, %s7, %s5
  loop: start=0, step=1, limit=4
  $region2: #{down2d_forward.3} parent=0 // loop_pre_header
    _
  $region3: #{down2d_forward.3} parent=0 // loop_header
    %s10 = sphi 0, %s14
    %p11 = scmp.ge.s32.totalorder %s10, 4
    %s20 = sphi 0, %s22
    %s23 = sphi 0, %s20
    %s24 = sphi 0, %s23
    %s40 = sphi 0, %s24
    %s44 = sphi 0, %s44
    %s46 = sphi 0, %s44
    %s47 = sphi 0, %s46
    %s61 = sphi 0, %s47
    %s67 = sphi 0, %s69
    %s70 = sphi 0, %s67
    %s71 = sphi 0, %s70
    %s87 = sphi 0, %s71
    %s91 = sphi 0, %s91
    %s93 = sphi 0, %s91
    %s94 = sphi 0, %s93
    %s108 = sphi 0, %s94
  $region4: #{down2d_forward.3} parent=0 // loop_header_branch
    %13 = sbr.rel (%p11) target = $region8
  $region5: #{down2d_forward.3} parent=0 // loop_body
    %s15 = ssub.s32 %s10, 1
    %s16 = ssub.s32 %s10, 2
    %s17 = sadd.s32 %s10, 1
    %s18 = ssub.s32 %s10, %s17
    %p19 = scmp.eq.s32.totalorder %s18, 0
    %s21 = sadd.s32 %s20, 1
    %s22 = scalar_select %p19, %s20, %s21
    %p25 = pneg %p19
    %p26 = scmp.eq.s32.totalorder %s10, 1
    %p27 = por %p25, %p26
    %p28 = scmp.ne.s32.totalorder %s20, %s23
    %p29 = scmp.eq.s32.totalorder %s10, 0
    %p30 = por %p28, %p29
    %p31 = scmp.ne.s32.totalorder %s20, %s23
    %p32 = scmp.eq.s32.totalorder %s15, 1
    %p33 = por %p31, %p32
    %p34 = scmp.ne.s32.totalorder %s23, %s24
    %p35 = scmp.eq.s32.totalorder %s15, 0
    %p36 = por %p34, %p35
    %p37 = scmp.ne.s32.totalorder %s23, %s24
    %p38 = scmp.eq.s32.totalorder %s16, 1
    %p39 = por %p37, %p38
    %p41 = scmp.ne.s32.totalorder %s24, %s40
    %p42 = scmp.eq.s32.totalorder %s16, 0
    %p43 = por %p41, %p42
    %s45 = sadd.s32 %s44, 1
    %p48 = scmp.eq.s32.totalorder %s10, 1
    %p49 = scmp.ne.s32.totalorder %s44, %s46
    %p50 = scmp.eq.s32.totalorder %s10, 0
    %p51 = por %p49, %p50
    %p52 = scmp.ne.s32.totalorder %s44, %s46
    %p53 = scmp.eq.s32.totalorder %s15, 1
    %p54 = por %p52, %p53
    %p55 = scmp.ne.s32.totalorder %s46, %s47
    %p56 = scmp.eq.s32.totalorder %s15, 0
    %p57 = por %p55, %p56
    %p58 = scmp.ne.s32.totalorder %s46, %s47
    %p59 = scmp.eq.s32.totalorder %s16, 1
    %p60 = por %p58, %p59
    %p62 = scmp.ne.s32.totalorder %s47, %s61
    %p63 = scmp.eq.s32.totalorder %s16, 0
    %p64 = por %p62, %p63
    %s65 = ssub.s32 %s10, %s17
    %p66 = scmp.eq.s32.totalorder %s65, 0
    %s68 = sadd.s32 %s67, 1
    %s69 = scalar_select %p66, %s67, %s68
    %p72 = pneg %p66
    %p73 = scmp.eq.s32.totalorder %s10, 1
    %p74 = por %p72, %p73
    %p75 = scmp.ne.s32.totalorder %s67, %s70
    %p76 = scmp.eq.s32.totalorder %s10, 0
    %p77 = por %p75, %p76
    %p78 = scmp.ne.s32.totalorder %s67, %s70
    %p79 = scmp.eq.s32.totalorder %s15, 1
    %p80 = por %p78, %p79
    %p81 = scmp.ne.s32.totalorder %s70, %s71
    %p82 = scmp.eq.s32.totalorder %s15, 0
    %p83 = por %p81, %p82
    %p84 = scmp.ne.s32.totalorder %s70, %s71
    %p85 = scmp.eq.s32.totalorder %s16, 1
    %p86 = por %p84, %p85
    %p88 = scmp.ne.s32.totalorder %s71, %s87
    %p89 = scmp.eq.s32.totalorder %s16, 0
    %p90 = por %p88, %p89
    %s92 = sadd.s32 %s91, 1
    %p95 = scmp.eq.s32.totalorder %s10, 1
    %p96 = scmp.ne.s32.totalorder %s91, %s93
    %p97 = scmp.eq.s32.totalorder %s10, 0
    %p98 = por %p96, %p97
    %p99 = scmp.ne.s32.totalorder %s91, %s93
    %p100 = scmp.eq.s32.totalorder %s15, 1
    %p101 = por %p99, %p100
    %p102 = scmp.ne.s32.totalorder %s93, %s94
    %p103 = scmp.eq.s32.totalorder %s15, 0
    %p104 = por %p102, %p103
    %p105 = scmp.ne.s32.totalorder %s93, %s94
    %p106 = scmp.eq.s32.totalorder %s16, 1
    %p107 = por %p105, %p106
    %p109 = scmp.ne.s32.totalorder %s94, %s108
    %p110 = scmp.eq.s32.totalorder %s16, 0
    %p111 = por %p109, %p110
    %p112 = scmp.le.s32.totalorder 1, %s10
    %p113 = scmp.lt.s32.totalorder %s10, 3
    %p114 = pnand %p112, %p113
    %p115 = pneg %p114
    // Predicated region
    $region9: #{down2d_forward.3} parent=5 // pred_check
      _
    $region10: #{down2d_forward.3} parent=5 // pred_check_branch
      %117 = sbr.rel (%p114) target = $region12
    $region11: #{down2d_forward.3} parent=5 // pred_region
      %s118 = ssub.s32 %s10, 1
      // Predicated region
      $region13: #{down2d_forward.3} parent=11 // pred_check
        %p119 = pneg %p57
      $region14: #{down2d_forward.3} parent=11 // pred_check_branch
        %121 = sbr.rel (%p119) target = $region16
      $region15: #{down2d_forward.3} parent=11 // pred_region
        _
      $region16: #{down2d_forward.3} parent=11 // pred_fallthru
        _
    $region12: #{down2d_forward.3} parent=5 // pred_fallthru
      _
    %p122 = scmp.lt.s32.totalorder %s10, 2
    // Predicated region
    $region17: #{down2d_forward.3} parent=5 // pred_check
      %p123 = pneg %p122
    $region18: #{down2d_forward.3} parent=5 // pred_check_branch
      %125 = sbr.rel (%p123) target = $region20
    $region19: #{down2d_forward.3} parent=5 // pred_region
      // Predicated region
      $region21: #{down2d_forward.3} parent=19 // pred_check
        %p126 = pneg %p30
      $region22: #{down2d_forward.3} parent=19 // pred_check_branch
        %128 = sbr.rel (%p126) target = $region24
      $region23: #{down2d_forward.3} parent=19 // pred_region
        %p129 = scmp.lt.s32.totalorder %s10, 1
        %s130 = scalar_select %p129, %s10, 1
        %s131 = smul.addr %s130, 32
        %s132 = smul.addr %s131, 8
        %s133 = scalar_lea.vmem %s0, %s132
      $region24: #{down2d_forward.3} parent=19 // pred_fallthru
        _
    $region20: #{down2d_forward.3} parent=5 // pred_fallthru
      _
    %p134 = scmp.le.s32.totalorder 1, %s10
    %p135 = scmp.lt.s32.totalorder %s10, 3
    %p136 = pnand %p134, %p135
    %p137 = pneg %p136
    // Predicated region
    $region25: #{down2d_forward.3} parent=5 // pred_check
      _
    $region26: #{down2d_forward.3} parent=5 // pred_check_branch
      %139 = sbr.rel (%p136) target = $region28
    $region27: #{down2d_forward.3} parent=5 // pred_region
      %s140 = ssub.s32 %s10, 1
      %p141 = scmp.lt.s32.totalorder %s15, 1
      %s142 = scalar_select %p141, %s15, 1
      %s143 = smul.addr %s142, 32
      %s144 = smul.addr %s143, 8
      %s145 = scalar_lea.vmem %s0, %s144
      %p146 = pneg %p36
      %p147 = pneg %p33
      %p148 = pneg %p57
      %p149 = pneg %p54
      %p150 = pneg %p83
      %p151 = pneg %p80
      %p152 = scmp.lt.s32.totalorder %s15, 1
      %s153 = scalar_select %p152, %s15, 1
      %s154 = smul.addr %s153, 8
      %s155 = smul.addr %s154, 8
      %s156 = scalar_lea.vmem %s2, %s155
      %p157 = pneg %p104
      %p158 = pneg %p101
      %p159 = scmp.lt.s32.totalorder %s15, 1
      %s160 = scalar_select %p159, %s15, 1
      %s161 = smul.addr %s160, 32
      %s162 = smul.addr %s161, 8
      %s163 = scalar_lea.vmem %s0, %s162
      %p164 = scmp.lt.s32.totalorder %s15, 1
      %s165 = scalar_select %p164, %s15, 1
      %s166 = smul.addr %s165, 8
      %s167 = smul.addr %s166, 8
      %s168 = scalar_lea.vmem %s2, %s167
      %v169 = vld [vmem:[%s163] sm:$0xff]
      %v170 = vld [vmem:[%s163 + $0x8] sm:$0xff]
      %v171 = vld [vmem:[%s163 + $0x20] sm:$0xff]
      %v172 = vld [vmem:[%s163 + $0x28] sm:$0xff]
      %v173 = vld [vmem:[%s163 + $0x40] sm:$0xff]
      %v174 = vld [vmem:[%s163 + $0x48] sm:$0xff]
      %v175 = vld [vmem:[%s163 + $0x60] sm:$0xff]
      %v176 = vld [vmem:[%s163 + $0x68] sm:$0xff]
      %v177 = vld [vmem:[%s163 + $0x80] sm:$0xff]
      %v178 = vld [vmem:[%s163 + $0x88] sm:$0xff]
      %v179 = vld [vmem:[%s163 + $0xa0] sm:$0xff]
      %v180 = vld [vmem:[%s163 + $0xa8] sm:$0xff]
      %v181 = vld [vmem:[%s163 + $0xc0] sm:$0xff]
      %v182 = vld [vmem:[%s163 + $0xc8] sm:$0xff]
      %v183 = vld [vmem:[%s163 + $0xe0] sm:$0xff]
      %v184 = vld [vmem:[%s163 + $0xe8] sm:$0xff]
      %s185 = scalar_lea.vmem %s163, 16
      %v186 = vld [vmem:[%s185] sm:$0xff]
      %v187 = vld [vmem:[%s185 + $0x8] sm:$0xff]
      %v188 = vld [vmem:[%s185 + $0x20] sm:$0xff]
      %v189 = vld [vmem:[%s185 + $0x28] sm:$0xff]
      %v190 = vld [vmem:[%s185 + $0x40] sm:$0xff]
      %v191 = vld [vmem:[%s185 + $0x48] sm:$0xff]
      %v192 = vld [vmem:[%s185 + $0x60] sm:$0xff]
      %v193 = vld [vmem:[%s185 + $0x68] sm:$0xff]
      %v194 = vld [vmem:[%s185 + $0x80] sm:$0xff]
      %v195 = vld [vmem:[%s185 + $0x88] sm:$0xff]
      %v196 = vld [vmem:[%s185 + $0xa0] sm:$0xff]
      %v197 = vld [vmem:[%s185 + $0xa8] sm:$0xff]
      %v198 = vld [vmem:[%s185 + $0xc0] sm:$0xff]
      %v199 = vld [vmem:[%s185 + $0xc8] sm:$0xff]
      %v200 = vld [vmem:[%s185 + $0xe0] sm:$0xff]
      %v201 = vld [vmem:[%s185 + $0xe8] sm:$0xff]
      %v202 = vmax.f32 %v169, %v186
      %v203 = vmax.f32 %v170, %v187
      %v204 = vmax.f32 %v171, %v188
      %v205 = vmax.f32 %v172, %v189
      %v206 = vmax.f32 %v173, %v190
      %v207 = vmax.f32 %v174, %v191
      %v208 = vmax.f32 %v175, %v192
      %v209 = vmax.f32 %v176, %v193
      %v210 = vmax.f32 %v177, %v194
      %v211 = vmax.f32 %v178, %v195
      %v212 = vmax.f32 %v179, %v196
      %v213 = vmax.f32 %v180, %v197
      %v214 = vmax.f32 %v181, %v198
      %v215 = vmax.f32 %v182, %v199
      %v216 = vmax.f32 %v183, %v200
      %v217 = vmax.f32 %v184, %v201
      %v218 = vmax.f32 %v202, %v203
      %v219 = vmax.f32 %v204, %v205
      %v220 = vmax.f32 %v206, %v207
      %v221 = vmax.f32 %v208, %v209
      %v222 = vmax.f32 %v210, %v211
      %v223 = vmax.f32 %v212, %v213
      %v224 = vmax.f32 %v214, %v215
      %v225 = vmax.f32 %v216, %v217
      %226 = vst [vmem:[#allocation2] sm:$0xff] 0.0
      %227 = vst [vmem:[#allocation2 + $0x8] sm:$0x3] 0.0
      %228 = vst [vmem:[#allocation2 + $0x10] sm:$0xff] 0.0
      %229 = vst [vmem:[#allocation2 + $0x18] sm:$0x3] 0.0
      %230 = vst [vmem:[#allocation2 + $0x20] sm:$0xff] 0.0
      %231 = vst [vmem:[#allocation2 + $0x28] sm:$0x3] 0.0
      %232 = vst [vmem:[#allocation2 + $0x30] sm:$0xff] 0.0
      %233 = vst [vmem:[#allocation2 + $0x38] sm:$0x3] 0.0
      %234 = vst [vmem:[#allocation2 + $0x40] sm:$0xff] 0.0
      %235 = vst [vmem:[#allocation2 + $0x48] sm:$0x3] 0.0
      %236 = vst [vmem:[#allocation2 + $0x50] sm:$0xff] 0.0
      %237 = vst [vmem:[#allocation2 + $0x58] sm:$0x3] 0.0
      %238 = vst [vmem:[#allocation2 + $0x60] sm:$0xff] 0.0
      %239 = vst [vmem:[#allocation2 + $0x68] sm:$0x3] 0.0
      %240 = vst [vmem:[#allocation2 + $0x70] sm:$0xff] 0.0
      %241 = vst [vmem:[#allocation2 + $0x78] sm:$0x3] 0.0
      %242 = vst [vmem:[#allocation2 + $0x80] sm:$0xff] 0.0
      %243 = vst [vmem:[#allocation2 + $0x88] sm:$0x3] 0.0
      %244 = vst [vmem:[#allocation2 + $0x90] sm:$0xff] 0.0
      %245 = vst [vmem:[#allocation2 + $0x98] sm:$0x3] 0.0
      %s246 = scalar_lea.vmem [#allocation2], 16
      %247 = vst [vmem:[%s246 + $0x1] sm:$0xff] %v218
      %248 = vst [vmem:[%s246 + $0x11] sm:$0xff] %v219
      %249 = vst [vmem:[%s246 + $0x21] sm:$0xff] %v220
      %250 = vst [vmem:[%s246 + $0x31] sm:$0xff] %v221
      %251 = vst [vmem:[%s246 + $0x41] sm:$0xff] %v222
      %252 = vst [vmem:[%s246 + $0x51] sm:$0xff] %v223
      %253 = vst [vmem:[%s246 + $0x61] sm:$0xff] %v224
      %254 = vst [vmem:[%s246 + $0x71] sm:$0xff] %v225
      %v255 = vld [vmem:[#allocation2] sm:$0xff]
      %v256 = vld [vmem:[#allocation2 + $0x10] sm:$0xff]
      %v257 = vld [vmem:[#allocation2 + $0x20] sm:$0xff]
      %v258 = vld [vmem:[#allocation2 + $0x30] sm:$0xff]
      %v259 = vld [vmem:[#allocation2 + $0x40] sm:$0xff]
      %v260 = vld [vmem:[#allocation2 + $0x50] sm:$0xff]
      %v261 = vld [vmem:[#allocation2 + $0x60] sm:$0xff]
      %v262 = vld [vmem:[#allocation2 + $0x70] sm:$0xff]
      %263 = vst [vmem:[#allocation3] sm:$0xff] %v255
      %264 = vst [vmem:[#allocation3 + $0x48] sm:$0xff] %v256
      %265 = vst [vmem:[#allocation3 + $0x90] sm:$0xff] %v257
      %266 = vst [vmem:[#allocation3 + $0xd8] sm:$0xff] %v258
      %267 = vst [vmem:[#allocation3 + $0x120] sm:$0xff] %v259
      %268 = vst [vmem:[#allocation3 + $0x168] sm:$0xff] %v260
      %269 = vst [vmem:[#allocation3 + $0x1b0] sm:$0xff] %v261
      %270 = vst [vmem:[#allocation3 + $0x1f8] sm:$0xff] %v262
      %v271 = vld [vmem:[#allocation2 + $0x1] sm:$0xff]
      %v272 = vld [vmem:[#allocation2 + $0x11] sm:$0xff]
      %v273 = vld [vmem:[#allocation2 + $0x21] sm:$0xff]
      %v274 = vld [vmem:[#allocation2 + $0x31] sm:$0xff]
      %v275 = vld [vmem:[#allocation2 + $0x41] sm:$0xff]
      %v276 = vld [vmem:[#allocation2 + $0x51] sm:$0xff]
      %v277 = vld [vmem:[#allocation2 + $0x61] sm:$0xff]
      %v278 = vld [vmem:[#allocation2 + $0x71] sm:$0xff]
      %279 = vst [vmem:[#allocation3 + $0x8] sm:$0xff] %v271
      %280 = vst [vmem:[#allocation3 + $0x50] sm:$0xff] %v272
      %281 = vst [vmem:[#allocation3 + $0x98] sm:$0xff] %v273
      %282 = vst [vmem:[#allocation3 + $0xe0] sm:$0xff] %v274
      %283 = vst [vmem:[#allocation3 + $0x128] sm:$0xff] %v275
      %284 = vst [vmem:[#allocation3 + $0x170] sm:$0xff] %v276
      %285 = vst [vmem:[#allocation3 + $0x1b8] sm:$0xff] %v277
      %286 = vst [vmem:[#allocation3 + $0x200] sm:$0xff] %v278
      %v287 = vld [vmem:[#allocation2 + $0x2] sm:$0xff]
      %v288 = vld [vmem:[#allocation2 + $0x12] sm:$0xff]
      %v289 = vld [vmem:[#allocation2 + $0x22] sm:$0xff]
      %v290 = vld [vmem:[#allocation2 + $0x32] sm:$0xff]
      %v291 = vld [vmem:[#allocation2 + $0x42] sm:$0xff]
      %v292 = vld [vmem:[#allocation2 + $0x52] sm:$0xff]
      %v293 = vld [vmem:[#allocation2 + $0x62] sm:$0xff]
      %v294 = vld [vmem:[#allocation2 + $0x72] sm:$0xff]
      %295 = vst [vmem:[#allocation3 + $0x10] sm:$0xff] %v287
      %296 = vst [vmem:[#allocation3 + $0x58] sm:$0xff] %v288
      %297 = vst [vmem:[#allocation3 + $0xa0] sm:$0xff] %v289
      %298 = vst [vmem:[#allocation3 + $0xe8] sm:$0xff] %v290
      %299 = vst [vmem:[#allocation3 + $0x130] sm:$0xff] %v291
      %300 = vst [vmem:[#allocation3 + $0x178] sm:$0xff] %v292
      %301 = vst [vmem:[#allocation3 + $0x1c0] sm:$0xff] %v293
      %302 = vst [vmem:[#allocation3 + $0x208] sm:$0xff] %v294
      %v303 = vld [vmem:[%s246] sm:$0xff]
      %v304 = vld [vmem:[%s246 + $0x10] sm:$0xff]
      %v305 = vld [vmem:[%s246 + $0x20] sm:$0xff]
      %v306 = vld [vmem:[%s246 + $0x30] sm:$0xff]
      %v307 = vld [vmem:[%s246 + $0x40] sm:$0xff]
      %v308 = vld [vmem:[%s246 + $0x50] sm:$0xff]
      %v309 = vld [vmem:[%s246 + $0x60] sm:$0xff]
      %v310 = vld [vmem:[%s246 + $0x70] sm:$0xff]
      %311 = vst [vmem:[#allocation3 + $0x18] sm:$0xff] %v303
      %312 = vst [vmem:[#allocation3 + $0x60] sm:$0xff] %v304
      %313 = vst [vmem:[#allocation3 + $0xa8] sm:$0xff] %v305
      %314 = vst [vmem:[#allocation3 + $0xf0] sm:$0xff] %v306
      %315 = vst [vmem:[#allocation3 + $0x138] sm:$0xff] %v307
      %316 = vst [vmem:[#allocation3 + $0x180] sm:$0xff] %v308
      %317 = vst [vmem:[#allocation3 + $0x1c8] sm:$0xff] %v309
      %318 = vst [vmem:[#allocation3 + $0x210] sm:$0xff] %v310
      %v319 = vld [vmem:[%s246 + $0x1] sm:$0xff]
      %v320 = vld [vmem:[%s246 + $0x11] sm:$0xff]
      %v321 = vld [vmem:[%s246 + $0x21] sm:$0xff]
      %v322 = vld [vmem:[%s246 + $0x31] sm:$0xff]
      %v323 = vld [vmem:[%s246 + $0x41] sm:$0xff]
      %v324 = vld [vmem:[%s246 + $0x51] sm:$0xff]
      %v325 = vld [vmem:[%s246 + $0x61] sm:$0xff]
      %v326 = vld [vmem:[%s246 + $0x71] sm:$0xff]
      %327 = vst [vmem:[#allocation3 + $0x20] sm:$0xff] %v319
      %328 = vst [vmem:[#allocation3 + $0x68] sm:$0xff] %v320
      %329 = vst [vmem:[#allocation3 + $0xb0] sm:$0xff] %v321
      %330 = vst [vmem:[#allocation3 + $0xf8] sm:$0xff] %v322
      %331 = vst [vmem:[#allocation3 + $0x140] sm:$0xff] %v323
      %332 = vst [vmem:[#allocation3 + $0x188] sm:$0xff] %v324
      %333 = vst [vmem:[#allocation3 + $0x1d0] sm:$0xff] %v325
      %334 = vst [vmem:[#allocation3 + $0x218] sm:$0xff] %v326
      %v335 = vld [vmem:[%s246 + $0x2] sm:$0xff]
      %v336 = vld [vmem:[%s246 + $0x12] sm:$0xff]
      %v337 = vld [vmem:[%s246 + $0x22] sm:$0xff]
      %v338 = vld [vmem:[%s246 + $0x32] sm:$0xff]
      %v339 = vld [vmem:[%s246 + $0x42] sm:$0xff]
      %v340 = vld [vmem:[%s246 + $0x52] sm:$0xff]
      %v341 = vld [vmem:[%s246 + $0x62] sm:$0xff]
      %v342 = vld [vmem:[%s246 + $0x72] sm:$0xff]
      %343 = vst [vmem:[#allocation3 + $0x28] sm:$0xff] %v335
      %344 = vst [vmem:[#allocation3 + $0x70] sm:$0xff] %v336
      %345 = vst [vmem:[#allocation3 + $0xb8] sm:$0xff] %v337
      %346 = vst [vmem:[#allocation3 + $0x100] sm:$0xff] %v338
      %347 = vst [vmem:[#allocation3 + $0x148] sm:$0xff] %v339
      %348 = vst [vmem:[#allocation3 + $0x190] sm:$0xff] %v340
      %349 = vst [vmem:[#allocation3 + $0x1d8] sm:$0xff] %v341
      %350 = vst [vmem:[#allocation3 + $0x220] sm:$0xff] %v342
      %s351 = scalar_lea.vmem [#allocation2], 32
      %v352 = vld [vmem:[%s351] sm:$0xff]
      %v353 = vld [vmem:[%s351 + $0x10] sm:$0xff]
      %v354 = vld [vmem:[%s351 + $0x20] sm:$0xff]
      %v355 = vld [vmem:[%s351 + $0x30] sm:$0xff]
      %v356 = vld [vmem:[%s351 + $0x40] sm:$0xff]
      %v357 = vld [vmem:[%s351 + $0x50] sm:$0xff]
      %v358 = vld [vmem:[%s351 + $0x60] sm:$0xff]
      %v359 = vld [vmem:[%s351 + $0x70] sm:$0xff]
      %360 = vst [vmem:[#allocation3 + $0x30] sm:$0xff] %v352
      %361 = vst [vmem:[#allocation3 + $0x78] sm:$0xff] %v353
      %362 = vst [vmem:[#allocation3 + $0xc0] sm:$0xff] %v354
      %363 = vst [vmem:[#allocation3 + $0x108] sm:$0xff] %v355
      %364 = vst [vmem:[#allocation3 + $0x150] sm:$0xff] %v356
      %365 = vst [vmem:[#allocation3 + $0x198] sm:$0xff] %v357
      %366 = vst [vmem:[#allocation3 + $0x1e0] sm:$0xff] %v358
      %367 = vst [vmem:[#allocation3 + $0x228] sm:$0xff] %v359
      %v368 = vld [vmem:[%s351 + $0x1] sm:$0xff]
      %v369 = vld [vmem:[%s351 + $0x11] sm:$0xff]
      %v370 = vld [vmem:[%s351 + $0x21] sm:$0xff]
      %v371 = vld [vmem:[%s351 + $0x31] sm:$0xff]
      %v372 = vld [vmem:[%s351 + $0x41] sm:$0xff]
      %v373 = vld [vmem:[%s351 + $0x51] sm:$0xff]
      %v374 = vld [vmem:[%s351 + $0x61] sm:$0xff]
      %v375 = vld [vmem:[%s351 + $0x71] sm:$0xff]
      %376 = vst [vmem:[#allocation3 + $0x38] sm:$0xff] %v368
      %377 = vst [vmem:[#allocation3 + $0x80] sm:$0xff] %v369
      %378 = vst [vmem:[#allocation3 + $0xc8] sm:$0xff] %v370
      %379 = vst [vmem:[#allocation3 + $0x110] sm:$0xff] %v371
      %380 = vst [vmem:[#allocation3 + $0x158] sm:$0xff] %v372
      %381 = vst [vmem:[#allocation3 + $0x1a0] sm:$0xff] %v373
      %382 = vst [vmem:[#allocation3 + $0x1e8] sm:$0xff] %v374
      %383 = vst [vmem:[#allocation3 + $0x230] sm:$0xff] %v375
      %v384 = vld [vmem:[%s351 + $0x2] sm:$0xff]
      %v385 = vld [vmem:[%s351 + $0x12] sm:$0xff]
      %v386 = vld [vmem:[%s351 + $0x22] sm:$0xff]
      %v387 = vld [vmem:[%s351 + $0x32] sm:$0xff]
      %v388 = vld [vmem:[%s351 + $0x42] sm:$0xff]
      %v389 = vld [vmem:[%s351 + $0x52] sm:$0xff]
      %v390 = vld [vmem:[%s351 + $0x62] sm:$0xff]
      %v391 = vld [vmem:[%s351 + $0x72] sm:$0xff]
      %392 = vst [vmem:[#allocation3 + $0x40] sm:$0xff] %v384
      %393 = vst [vmem:[#allocation3 + $0x88] sm:$0xff] %v385
      %394 = vst [vmem:[#allocation3 + $0xd0] sm:$0xff] %v386
      %395 = vst [vmem:[#allocation3 + $0x118] sm:$0xff] %v387
      %396 = vst [vmem:[#allocation3 + $0x160] sm:$0xff] %v388
      %397 = vst [vmem:[#allocation3 + $0x1a8] sm:$0xff] %v389
      %398 = vst [vmem:[#allocation3 + $0x1f0] sm:$0xff] %v390
      %399 = vst [vmem:[#allocation3 + $0x238] sm:$0xff] %v391
      %v400 = vld [vmem:[#allocation3] sm:$0xff]
      %v401 = vld [vmem:[#allocation3 + $0x8] sm:$0xff]
      %v402 = vld [vmem:[#allocation3 + $0x10] sm:$0xff]
      %v403 = vld [vmem:[#allocation3 + $0x18] sm:$0xff]
      %v404 = vld [vmem:[#allocation3 + $0x20] sm:$0xff]
      %v405 = vld [vmem:[#allocation3 + $0x28] sm:$0xff]
      %v406 = vld [vmem:[#allocation3 + $0x30] sm:$0xff]
      %v407 = vld [vmem:[#allocation3 + $0x38] sm:$0xff]
      %v408 = vld [vmem:[#allocation3 + $0x40] sm:$0xff]
      %v409 = vld [vmem:[#allocation3 + $0x48] sm:$0xff]
      %v410 = vld [vmem:[#allocation3 + $0x50] sm:$0xff]
      %v411 = vld [vmem:[#allocation3 + $0x58] sm:$0xff]
      %v412 = vld [vmem:[#allocation3 + $0x60] sm:$0xff]
      %v413 = vld [vmem:[#allocation3 + $0x68] sm:$0xff]
      %v414 = vld [vmem:[#allocation3 + $0x70] sm:$0xff]
      %v415 = vld [vmem:[#allocation3 + $0x78] sm:$0xff]
      %v416 = vld [vmem:[#allocation3 + $0x80] sm:$0xff]
      %v417 = vld [vmem:[#allocation3 + $0x88] sm:$0xff]
      %v418 = vld [vmem:[#allocation3 + $0x90] sm:$0xff]
      %v419 = vld [vmem:[#allocation3 + $0x98] sm:$0xff]
      %v420 = vld [vmem:[#allocation3 + $0xa0] sm:$0xff]
      %v421 = vld [vmem:[#allocation3 + $0xa8] sm:$0xff]
      %v422 = vld [vmem:[#allocation3 + $0xb0] sm:$0xff]
      %v423 = vld [vmem:[#allocation3 + $0xb8] sm:$0xff]
      %v424 = vld [vmem:[#allocation3 + $0xc0] sm:$0xff]
      %v425 = vld [vmem:[#allocation3 + $0xc8] sm:$0xff]
      %v426 = vld [vmem:[#allocation3 + $0xd0] sm:$0xff]
      %v427 = vld [vmem:[#allocation3 + $0xd8] sm:$0xff]
      %v428 = vld [vmem:[#allocation3 + $0xe0] sm:$0xff]
      %v429 = vld [vmem:[#allocation3 + $0xe8] sm:$0xff]
      %v430 = vld [vmem:[#allocation3 + $0xf0] sm:$0xff]
      %v431 = vld [vmem:[#allocation3 + $0xf8] sm:$0xff]
      %v432 = vld [vmem:[#allocation3 + $0x100] sm:$0xff]
      %v433 = vld [vmem:[#allocation3 + $0x108] sm:$0xff]
      %v434 = vld [vmem:[#allocation3 + $0x110] sm:$0xff]
      %v435 = vld [vmem:[#allocation3 + $0x118] sm:$0xff]
      %v436 = vld [vmem:[#allocation3 + $0x120] sm:$0xff]
      %v437 = vld [vmem:[#allocation3 + $0x128] sm:$0xff]
      %v438 = vld [vmem:[#allocation3 + $0x130] sm:$0xff]
      %v439 = vld [vmem:[#allocation3 + $0x138] sm:$0xff]
      %v440 = vld [vmem:[#allocation3 + $0x140] sm:$0xff]
      %v441 = vld [vmem:[#allocation3 + $0x148] sm:$0xff]
      %v442 = vld [vmem:[#allocation3 + $0x150] sm:$0xff]
      %v443 = vld [vmem:[#allocation3 + $0x158] sm:$0xff]
      %v444 = vld [vmem:[#allocation3 + $0x160] sm:$0xff]
      %v445 = vld [vmem:[#allocation3 + $0x168] sm:$0xff]
      %v446 = vld [vmem:[#allocation3 + $0x170] sm:$0xff]
      %v447 = vld [vmem:[#allocation3 + $0x178] sm:$0xff]
      %v448 = vld [vmem:[#allocation3 + $0x180] sm:$0xff]
      %v449 = vld [vmem:[#allocation3 + $0x188] sm:$0xff]
      %v450 = vld [vmem:[#allocation3 + $0x190] sm:$0xff]
      %v451 = vld [vmem:[#allocation3 + $0x198] sm:$0xff]
      %v452 = vld [vmem:[#allocation3 + $0x1a0] sm:$0xff]
      %v453 = vld [vmem:[#allocation3 + $0x1a8] sm:$0xff]
      %v454 = vld [vmem:[#allocation3 + $0x1b0] sm:$0xff]
      %v455 = vld [vmem:[#allocation3 + $0x1b8] sm:$0xff]
      %v456 = vld [vmem:[#allocation3 + $0x1c0] sm:$0xff]
      %v457 = vld [vmem:[#allocation3 + $0x1c8] sm:$0xff]
      %v458 = vld [vmem:[#allocation3 + $0x1d0] sm:$0xff]
      %v459 = vld [vmem:[#allocation3 + $0x1d8] sm:$0xff]
      %v460 = vld [vmem:[#allocation3 + $0x1e0] sm:$0xff]
      %v461 = vld [vmem:[#allocation3 + $0x1e8] sm:$0xff]
      %v462 = vld [vmem:[#allocation3 + $0x1f0] sm:$0xff]
      %v463 = vld [vmem:[#allocation3 + $0x1f8] sm:$0xff]
      %v464 = vld [vmem:[#allocation3 + $0x200] sm:$0xff]
      %v465 = vld [vmem:[#allocation3 + $0x208] sm:$0xff]
      %v466 = vld [vmem:[#allocation3 + $0x210] sm:$0xff]
      %v467 = vld [vmem:[#allocation3 + $0x218] sm:$0xff]
      %v468 = vld [vmem:[#allocation3 + $0x220] sm:$0xff]
      %v469 = vld [vmem:[#allocation3 + $0x228] sm:$0xff]
      %v470 = vld [vmem:[#allocation3 + $0x230] sm:$0xff]
      %v471 = vld [vmem:[#allocation3 + $0x238] sm:$0xff]
      %v472 = vld [vmem:[%s1] sm:$0xff]
      %v473 = vld [vmem:[%s1 + $0x8] sm:$0xff]
      %v474 = vld [vmem:[%s1 + $0x10] sm:$0xff]
      %v475 = vld [vmem:[%s1 + $0x18] sm:$0xff]
      %v476 = vld [vmem:[%s1 + $0x20] sm:$0xff]
      %v477 = vld [vmem:[%s1 + $0x28] sm:$0xff]
      %v478 = vld [vmem:[%s1 + $0x30] sm:$0xff]
      %v479 = vld [vmem:[%s1 + $0x38] sm:$0xff]
      %v480 = vld [vmem:[%s1 + $0x40] sm:$0xff]
      %v481 = vld [vmem:[%s1 + $0x48] sm:$0xff]
      %v482 = vld [vmem:[%s1 + $0x50] sm:$0xff]
      %v483 = vld [vmem:[%s1 + $0x58] sm:$0xff]
      %v484 = vld [vmem:[%s1 + $0x60] sm:$0xff]
      %v485 = vld [vmem:[%s1 + $0x68] sm:$0xff]
      %v486 = vld [vmem:[%s1 + $0x70] sm:$0xff]
      %v487 = vld [vmem:[%s1 + $0x78] sm:$0xff]
      %v488 = vld [vmem:[%s1 + $0x80] sm:$0xff]
      %v489 = vld [vmem:[%s1 + $0x88] sm:$0xff]
      %v490 = vld [vmem:[%s1 + $0x90] sm:$0xff]
      %v491 = vld [vmem:[%s1 + $0x98] sm:$0xff]
      %v492 = vld [vmem:[%s1 + $0xa0] sm:$0xff]
      %v493 = vld [vmem:[%s1 + $0xa8] sm:$0xff]
      %v494 = vld [vmem:[%s1 + $0xb0] sm:$0xff]
      %v495 = vld [vmem:[%s1 + $0xb8] sm:$0xff]
      %v496 = vld [vmem:[%s1 + $0xc0] sm:$0xff]
      %v497 = vld [vmem:[%s1 + $0xc8] sm:$0xff]
      %v498 = vld [vmem:[%s1 + $0xd0] sm:$0xff]
      %v499 = vld [vmem:[%s1 + $0xd8] sm:$0xff]
      %v500 = vld [vmem:[%s1 + $0xe0] sm:$0xff]
      %v501 = vld [vmem:[%s1 + $0xe8] sm:$0xff]
      %v502 = vld [vmem:[%s1 + $0xf0] sm:$0xff]
      %v503 = vld [vmem:[%s1 + $0xf8] sm:$0xff]
      %v504 = vld [vmem:[%s1 + $0x100] sm:$0xff]
      %v505 = vld [vmem:[%s1 + $0x108] sm:$0xff]
      %v506 = vld [vmem:[%s1 + $0x110] sm:$0xff]
      %v507 = vld [vmem:[%s1 + $0x118] sm:$0xff]
      %v508 = vld [vmem:[%s1 + $0x120] sm:$0xff]
      %v509 = vld [vmem:[%s1 + $0x128] sm:$0xff]
      %v510 = vld [vmem:[%s1 + $0x130] sm:$0xff]
      %v511 = vld [vmem:[%s1 + $0x138] sm:$0xff]
      %v512 = vld [vmem:[%s1 + $0x140] sm:$0xff]
      %v513 = vld [vmem:[%s1 + $0x148] sm:$0xff]
      %v514 = vld [vmem:[%s1 + $0x150] sm:$0xff]
      %v515 = vld [vmem:[%s1 + $0x158] sm:$0xff]
      %v516 = vld [vmem:[%s1 + $0x160] sm:$0xff]
      %v517 = vld [vmem:[%s1 + $0x168] sm:$0xff]
      %v518 = vld [vmem:[%s1 + $0x170] sm:$0xff]
      %v519 = vld [vmem:[%s1 + $0x178] sm:$0xff]
      %v520 = vld [vmem:[%s1 + $0x180] sm:$0xff]
      %v521 = vld [vmem:[%s1 + $0x188] sm:$0xff]
      %v522 = vld [vmem:[%s1 + $0x190] sm:$0xff]
      %v523 = vld [vmem:[%s1 + $0x198] sm:$0xff]
      %v524 = vld [vmem:[%s1 + $0x1a0] sm:$0xff]
      %v525 = vld [vmem:[%s1 + $0x1a8] sm:$0xff]
      %v526 = vld [vmem:[%s1 + $0x1b0] sm:$0xff]
      %v527 = vld [vmem:[%s1 + $0x1b8] sm:$0xff]
      %v528 = vld [vmem:[%s1 + $0x1c0] sm:$0xff]
      %v529 = vld [vmem:[%s1 + $0x1c8] sm:$0xff]
      %v530 = vld [vmem:[%s1 + $0x1d0] sm:$0xff]
      %v531 = vld [vmem:[%s1 + $0x1d8] sm:$0xff]
      %v532 = vld [vmem:[%s1 + $0x1e0] sm:$0xff]
      %v533 = vld [vmem:[%s1 + $0x1e8] sm:$0xff]
      %v534 = vld [vmem:[%s1 + $0x1f0] sm:$0xff]
      %v535 = vld [vmem:[%s1 + $0x1f8] sm:$0xff]
      %v536 = vld [vmem:[%s1 + $0x200] sm:$0xff]
      %v537 = vld [vmem:[%s1 + $0x208] sm:$0xff]
      %v538 = vld [vmem:[%s1 + $0x210] sm:$0xff]
      %v539 = vld [vmem:[%s1 + $0x218] sm:$0xff]
      %v540 = vld [vmem:[%s1 + $0x220] sm:$0xff]
      %v541 = vld [vmem:[%s1 + $0x228] sm:$0xff]
      %v542 = vld [vmem:[%s1 + $0x230] sm:$0xff]
      %v543 = vld [vmem:[%s1 + $0x238] sm:$0xff]
      %v544 = vld [vmem:[%s1 + $0x240] sm:$0xff]
      %v545 = vld [vmem:[%s1 + $0x248] sm:$0xff]
      %v546 = vld [vmem:[%s1 + $0x250] sm:$0xff]
      %v547 = vld [vmem:[%s1 + $0x258] sm:$0xff]
      %v548 = vld [vmem:[%s1 + $0x260] sm:$0xff]
      %v549 = vld [vmem:[%s1 + $0x268] sm:$0xff]
      %v550 = vld [vmem:[%s1 + $0x270] sm:$0xff]
      %v551 = vld [vmem:[%s1 + $0x278] sm:$0xff]
      %v552 = vld [vmem:[%s1 + $0x280] sm:$0xff]
      %v553 = vld [vmem:[%s1 + $0x288] sm:$0xff]
      %v554 = vld [vmem:[%s1 + $0x290] sm:$0xff]
      %v555 = vld [vmem:[%s1 + $0x298] sm:$0xff]
      %v556 = vld [vmem:[%s1 + $0x2a0] sm:$0xff]
      %v557 = vld [vmem:[%s1 + $0x2a8] sm:$0xff]
      %v558 = vld [vmem:[%s1 + $0x2b0] sm:$0xff]
      %v559 = vld [vmem:[%s1 + $0x2b8] sm:$0xff]
      %v560 = vld [vmem:[%s1 + $0x2c0] sm:$0xff]
      %v561 = vld [vmem:[%s1 + $0x2c8] sm:$0xff]
      %v562 = vld [vmem:[%s1 + $0x2d0] sm:$0xff]
      %v563 = vld [vmem:[%s1 + $0x2d8] sm:$0xff]
      %v564 = vld [vmem:[%s1 + $0x2e0] sm:$0xff]
      %v565 = vld [vmem:[%s1 + $0x2e8] sm:$0xff]
      %v566 = vld [vmem:[%s1 + $0x2f0] sm:$0xff]
      %v567 = vld [vmem:[%s1 + $0x2f8] sm:$0xff]
      %v568 = vld [vmem:[%s1 + $0x300] sm:$0xff]
      %v569 = vld [vmem:[%s1 + $0x308] sm:$0xff]
      %v570 = vld [vmem:[%s1 + $0x310] sm:$0xff]
      %v571 = vld [vmem:[%s1 + $0x318] sm:$0xff]
      %v572 = vld [vmem:[%s1 + $0x320] sm:$0xff]
      %v573 = vld [vmem:[%s1 + $0x328] sm:$0xff]
      %v574 = vld [vmem:[%s1 + $0x330] sm:$0xff]
      %v575 = vld [vmem:[%s1 + $0x338] sm:$0xff]
      %v576 = vld [vmem:[%s1 + $0x340] sm:$0xff]
      %v577 = vld [vmem:[%s1 + $0x348] sm:$0xff]
      %v578 = vld [vmem:[%s1 + $0x350] sm:$0xff]
      %v579 = vld [vmem:[%s1 + $0x358] sm:$0xff]
      %v580 = vld [vmem:[%s1 + $0x360] sm:$0xff]
      %v581 = vld [vmem:[%s1 + $0x368] sm:$0xff]
      %v582 = vld [vmem:[%s1 + $0x370] sm:$0xff]
      %v583 = vld [vmem:[%s1 + $0x378] sm:$0xff]
      %v584 = vld [vmem:[%s1 + $0x380] sm:$0xff]
      %v585 = vld [vmem:[%s1 + $0x388] sm:$0xff]
      %v586 = vld [vmem:[%s1 + $0x390] sm:$0xff]
      %v587 = vld [vmem:[%s1 + $0x398] sm:$0xff]
      %v588 = vld [vmem:[%s1 + $0x3a0] sm:$0xff]
      %v589 = vld [vmem:[%s1 + $0x3a8] sm:$0xff]
      %v590 = vld [vmem:[%s1 + $0x3b0] sm:$0xff]
      %v591 = vld [vmem:[%s1 + $0x3b8] sm:$0xff]
      %v592 = vld [vmem:[%s1 + $0x3c0] sm:$0xff]
      %v593 = vld [vmem:[%s1 + $0x3c8] sm:$0xff]
      %v594 = vld [vmem:[%s1 + $0x3d0] sm:$0xff]
      %v595 = vld [vmem:[%s1 + $0x3d8] sm:$0xff]
      %v596 = vld [vmem:[%s1 + $0x3e0] sm:$0xff]
      %v597 = vld [vmem:[%s1 + $0x3e8] sm:$0xff]
      %v598 = vld [vmem:[%s1 + $0x3f0] sm:$0xff]
      %v599 = vld [vmem:[%s1 + $0x3f8] sm:$0xff]
      %v600 = vld [vmem:[%s1 + $0x400] sm:$0xff]
      %v601 = vld [vmem:[%s1 + $0x408] sm:$0xff]
      %v602 = vld [vmem:[%s1 + $0x410] sm:$0xff]
      %v603 = vld [vmem:[%s1 + $0x418] sm:$0xff]
      %v604 = vld [vmem:[%s1 + $0x420] sm:$0xff]
      %v605 = vld [vmem:[%s1 + $0x428] sm:$0xff]
      %v606 = vld [vmem:[%s1 + $0x430] sm:$0xff]
      %v607 = vld [vmem:[%s1 + $0x438] sm:$0xff]
      %v608 = vld [vmem:[%s1 + $0x440] sm:$0xff]
      %v609 = vld [vmem:[%s1 + $0x448] sm:$0xff]
      %v610 = vld [vmem:[%s1 + $0x450] sm:$0xff]
      %v611 = vld [vmem:[%s1 + $0x458] sm:$0xff]
      %v612 = vld [vmem:[%s1 + $0x460] sm:$0xff]
      %v613 = vld [vmem:[%s1 + $0x468] sm:$0xff]
      %v614 = vld [vmem:[%s1 + $0x470] sm:$0xff]
      %v615 = vld [vmem:[%s1 + $0x478] sm:$0xff]
      %616 = vmatprep.subr.mxu0 0.0
      %617 = vmatpush1.msra.mxu0 %v487
      %618 = vmatprep.subr.mxu0 0.0
      %619 = vmatpush1.msra.mxu0 %v486
      %620 = vmatprep.subr.mxu0 0.0
      %621 = vmatpush1.msra.mxu0 %v485
      %622 = vmatprep.subr.mxu0 0.0
      %623 = vmatpush1.msra.mxu0 %v484
      %624 = vmatprep.subr.mxu0 0.0
      %625 = vmatpush1.msra.mxu0 %v483
      %626 = vmatprep.subr.mxu0 0.0
      %627 = vmatpush1.msra.mxu0 %v482
      %628 = vmatprep.subr.mxu0 0.0
      %629 = vmatpush1.msra.mxu0 %v481
      %630 = vmatprep.subr.mxu0 0.0
      %631 = vmatpush1.msra.mxu0 %v480
      %632 = vmatprep.subr.mxu0 0.0
      %633 = vmatpush1.msra.mxu0 %v479
      %634 = vmatprep.subr.mxu0 0.0
      %635 = vmatpush1.msra.mxu0 %v478
      %636 = vmatprep.subr.mxu0 0.0
      %637 = vmatpush1.msra.mxu0 %v477
      %638 = vmatprep.subr.mxu0 0.0
      %639 = vmatpush1.msra.mxu0 %v476
      %640 = vmatprep.subr.mxu0 0.0
      %641 = vmatpush1.msra.mxu0 %v475
      %642 = vmatprep.subr.mxu0 0.0
      %643 = vmatpush1.msra.mxu0 %v474
      %644 = vmatprep.subr.mxu0 0.0
      %645 = vmatpush1.msra.mxu0 %v473
      %646 = vmatprep.subr.mxu0 0.0
      %647 = vmatpush1.msra.mxu0 %v472
      %648 = vmatprep.subr.mxu0 0.0
      %649 = vmatpush2.msra.mxu0 %v503
      %650 = vmatprep.subr.mxu0 0.0
      %651 = vmatpush2.msra.mxu0 %v502
      %652 = vmatprep.subr.mxu0 0.0
      %653 = vmatpush2.msra.mxu0 %v501
      %654 = vmatprep.subr.mxu0 0.0
      %655 = vmatpush2.msra.mxu0 %v500
      %656 = vmatprep.subr.mxu0 0.0
      %657 = vmatpush2.msra.mxu0 %v499
      %658 = vmatprep.subr.mxu0 0.0
      %659 = vmatpush2.msra.mxu0 %v498
      %660 = vmatprep.subr.mxu0 0.0
      %661 = vmatpush2.msra.mxu0 %v497
      %662 = vmatprep.subr.mxu0 0.0
      %663 = vmatpush2.msra.mxu0 %v496
      %664 = vmatprep.subr.mxu0 0.0
      %665 = vmatpush2.msra.mxu0 %v495
      %666 = vmatprep.subr.mxu0 0.0
      %667 = vmatpush2.msra.mxu0 %v494
      %668 = vmatprep.subr.mxu0 0.0
      %669 = vmatpush2.msra.mxu0 %v493
      %670 = vmatprep.subr.mxu0 0.0
      %671 = vmatpush2.msra.mxu0 %v492
      %672 = vmatprep.subr.mxu0 0.0
      %673 = vmatpush2.msra.mxu0 %v491
      %674 = vmatprep.subr.mxu0 0.0
      %675 = vmatpush2.msra.mxu0 %v490
      %676 = vmatprep.subr.mxu0 0.0
      %677 = vmatpush2.msra.mxu0 %v489
      %678 = vmatprep.subr.mxu0 0.0
      %679 = vmatpush2.msra.mxu0 %v488
      %680 = vmatprep.mubr.f32.mxu0 %v401
      %681 = vmatmul.mubr.f32.gmra.mxu0 %v400
      %v682 = vpop.f32.mrf.mxu0
      %v683 = vadd.f32 0.0, %v682
      %v684 = vpop.f32.mrf.mxu0
      %685 = vmatprep.mubr.f32.mxu0 %v410
      %686 = vmatmul.mubr.f32.gmra.mxu0 %v409
      %v687 = vpop.f32.mrf.mxu0
      %v688 = vadd.f32 0.0, %v687
      %v689 = vpop.f32.mrf.mxu0
      %690 = vmatprep.mubr.f32.mxu0 %v419
      %691 = vmatmul.mubr.f32.gmra.mxu0 %v418
      %v692 = vpop.f32.mrf.mxu0
      %v693 = vadd.f32 0.0, %v692
      %v694 = vpop.f32.mrf.mxu0
      %695 = vmatprep.mubr.f32.mxu0 %v428
      %696 = vmatmul.mubr.f32.gmra.mxu0 %v427
      %v697 = vpop.f32.mrf.mxu0
      %v698 = vadd.f32 0.0, %v697
      %v699 = vpop.f32.mrf.mxu0
      %700 = vmatprep.mubr.f32.mxu0 %v437
      %701 = vmatmul.mubr.f32.gmra.mxu0 %v436
      %v702 = vpop.f32.mrf.mxu0
      %v703 = vadd.f32 0.0, %v702
      %v704 = vpop.f32.mrf.mxu0
      %705 = vmatprep.mubr.f32.mxu0 %v446
      %706 = vmatmul.mubr.f32.gmra.mxu0 %v445
      %v707 = vpop.f32.mrf.mxu0
      %v708 = vadd.f32 0.0, %v707
      %v709 = vpop.f32.mrf.mxu0
      %710 = vmatprep.mubr.f32.mxu0 %v455
      %711 = vmatmul.mubr.f32.gmra.mxu0 %v454
      %v712 = vpop.f32.mrf.mxu0
      %v713 = vadd.f32 0.0, %v712
      %v714 = vpop.f32.mrf.mxu0
      %715 = vmatprep.mubr.f32.mxu0 %v464
      %716 = vmatmul.mubr.f32.gmra.mxu0 %v463
      %v717 = vpop.f32.mrf.mxu0
      %v718 = vadd.f32 0.0, %v717
      %v719 = vpop.f32.mrf.mxu0
      %720 = vdwg.mxu0
      %721 = vmatprep.subr.mxu0 0.0
      %722 = vmatpush1.msra.mxu0 %v519
      %723 = vmatprep.subr.mxu0 0.0
      %724 = vmatpush1.msra.mxu0 %v518
      %725 = vmatprep.subr.mxu0 0.0
      %726 = vmatpush1.msra.mxu0 %v517
      %727 = vmatprep.subr.mxu0 0.0
      %728 = vmatpush1.msra.mxu0 %v516
      %729 = vmatprep.subr.mxu0 0.0
      %730 = vmatpush1.msra.mxu0 %v515
      %731 = vmatprep.subr.mxu0 0.0
      %732 = vmatpush1.msra.mxu0 %v514
      %733 = vmatprep.subr.mxu0 0.0
      %734 = vmatpush1.msra.mxu0 %v513
      %735 = vmatprep.subr.mxu0 0.0
      %736 = vmatpush1.msra.mxu0 %v512
      %737 = vmatprep.subr.mxu0 0.0
      %738 = vmatpush1.msra.mxu0 %v511
      %739 = vmatprep.subr.mxu0 0.0
      %740 = vmatpush1.msra.mxu0 %v510
      %741 = vmatprep.subr.mxu0 0.0
      %742 = vmatpush1.msra.mxu0 %v509
      %743 = vmatprep.subr.mxu0 0.0
      %744 = vmatpush1.msra.mxu0 %v508
      %745 = vmatprep.subr.mxu0 0.0
      %746 = vmatpush1.msra.mxu0 %v507
      %747 = vmatprep.subr.mxu0 0.0
      %748 = vmatpush1.msra.mxu0 %v506
      %749 = vmatprep.subr.mxu0 0.0
      %750 = vmatpush1.msra.mxu0 %v505
      %751 = vmatprep.subr.mxu0 0.0
      %752 = vmatpush1.msra.mxu0 %v504
      %753 = vmatprep.subr.mxu0 0.0
      %754 = vmatpush2.msra.mxu0 %v535
      %755 = vmatprep.subr.mxu0 0.0
      %756 = vmatpush2.msra.mxu0 %v534
      %757 = vmatprep.subr.mxu0 0.0
      %758 = vmatpush2.msra.mxu0 %v533
      %759 = vmatprep.subr.mxu0 0.0
      %760 = vmatpush2.msra.mxu0 %v532
      %761 = vmatprep.subr.mxu0 0.0
      %762 = vmatpush2.msra.mxu0 %v531
      %763 = vmatprep.subr.mxu0 0.0
      %764 = vmatpush2.msra.mxu0 %v530
      %765 = vmatprep.subr.mxu0 0.0
      %766 = vmatpush2.msra.mxu0 %v529
      %767 = vmatprep.subr.mxu0 0.0
      %768 = vmatpush2.msra.mxu0 %v528
      %769 = vmatprep.subr.mxu0 0.0
      %770 = vmatpush2.msra.mxu0 %v527
      %771 = vmatprep.subr.mxu0 0.0
      %772 = vmatpush2.msra.mxu0 %v526
      %773 = vmatprep.subr.mxu0 0.0
      %774 = vmatpush2.msra.mxu0 %v525
      %775 = vmatprep.subr.mxu0 0.0
      %776 = vmatpush2.msra.mxu0 %v524
      %777 = vmatprep.subr.mxu0 0.0
      %778 = vmatpush2.msra.mxu0 %v523
      %779 = vmatprep.subr.mxu0 0.0
      %780 = vmatpush2.msra.mxu0 %v522
      %781 = vmatprep.subr.mxu0 0.0
      %782 = vmatpush2.msra.mxu0 %v521
      %783 = vmatprep.subr.mxu0 0.0
      %784 = vmatpush2.msra.mxu0 %v520
      %785 = vmatprep.mubr.f32.mxu0 %v403
      %786 = vmatmul.mubr.f32.gmra.mxu0 %v402
      %v787 = vpop.f32.mrf.mxu0
      %v788 = vadd.f32 %v683, %v787
      %v789 = vpop.f32.mrf.mxu0
      %790 = vmatprep.mubr.f32.mxu0 %v412
      %791 = vmatmul.mubr.f32.gmra.mxu0 %v411
      %v792 = vpop.f32.mrf.mxu0
      %v793 = vadd.f32 %v688, %v792
      %v794 = vpop.f32.mrf.mxu0
      %795 = vmatprep.mubr.f32.mxu0 %v421
      %796 = vmatmul.mubr.f32.gmra.mxu0 %v420
      %v797 = vpop.f32.mrf.mxu0
      %v798 = vadd.f32 %v693, %v797
      %v799 = vpop.f32.mrf.mxu0
      %800 = vmatprep.mubr.f32.mxu0 %v430
      %801 = vmatmul.mubr.f32.gmra.mxu0 %v429
      %v802 = vpop.f32.mrf.mxu0
      %v803 = vadd.f32 %v698, %v802
      %v804 = vpop.f32.mrf.mxu0
      %805 = vmatprep.mubr.f32.mxu0 %v439
      %806 = vmatmul.mubr.f32.gmra.mxu0 %v438
      %v807 = vpop.f32.mrf.mxu0
      %v808 = vadd.f32 %v703, %v807
      %v809 = vpop.f32.mrf.mxu0
      %810 = vmatprep.mubr.f32.mxu0 %v448
      %811 = vmatmul.mubr.f32.gmra.mxu0 %v447
      %v812 = vpop.f32.mrf.mxu0
      %v813 = vadd.f32 %v708, %v812
      %v814 = vpop.f32.mrf.mxu0
      %815 = vmatprep.mubr.f32.mxu0 %v457
      %816 = vmatmul.mubr.f32.gmra.mxu0 %v456
      %v817 = vpop.f32.mrf.mxu0
      %v818 = vadd.f32 %v713, %v817
      %v819 = vpop.f32.mrf.mxu0
      %820 = vmatprep.mubr.f32.mxu0 %v466
      %821 = vmatmul.mubr.f32.gmra.mxu0 %v465
      %v822 = vpop.f32.mrf.mxu0
      %v823 = vadd.f32 %v718, %v822
      %v824 = vpop.f32.mrf.mxu0
      %825 = vdwg.mxu0
      %826 = vmatprep.subr.mxu0 0.0
      %827 = vmatpush1.msra.mxu0 %v551
      %828 = vmatprep.subr.mxu0 0.0
      %829 = vmatpush1.msra.mxu0 %v550
      %830 = vmatprep.subr.mxu0 0.0
      %831 = vmatpush1.msra.mxu0 %v549
      %832 = vmatprep.subr.mxu0 0.0
      %833 = vmatpush1.msra.mxu0 %v548
      %834 = vmatprep.subr.mxu0 0.0
      %835 = vmatpush1.msra.mxu0 %v547
      %836 = vmatprep.subr.mxu0 0.0
      %837 = vmatpush1.msra.mxu0 %v546
      %838 = vmatprep.subr.mxu0 0.0
      %839 = vmatpush1.msra.mxu0 %v545
      %840 = vmatprep.subr.mxu0 0.0
      %841 = vmatpush1.msra.mxu0 %v544
      %842 = vmatprep.subr.mxu0 0.0
      %843 = vmatpush1.msra.mxu0 %v543
      %844 = vmatprep.subr.mxu0 0.0
      %845 = vmatpush1.msra.mxu0 %v542
      %846 = vmatprep.subr.mxu0 0.0
      %847 = vmatpush1.msra.mxu0 %v541
      %848 = vmatprep.subr.mxu0 0.0
      %849 = vmatpush1.msra.mxu0 %v540
      %850 = vmatprep.subr.mxu0 0.0
      %851 = vmatpush1.msra.mxu0 %v539
      %852 = vmatprep.subr.mxu0 0.0
      %853 = vmatpush1.msra.mxu0 %v538
      %854 = vmatprep.subr.mxu0 0.0
      %855 = vmatpush1.msra.mxu0 %v537
      %856 = vmatprep.subr.mxu0 0.0
      %857 = vmatpush1.msra.mxu0 %v536
      %858 = vmatprep.subr.mxu0 0.0
      %859 = vmatpush2.msra.mxu0 %v567
      %860 = vmatprep.subr.mxu0 0.0
      %861 = vmatpush2.msra.mxu0 %v566
      %862 = vmatprep.subr.mxu0 0.0
      %863 = vmatpush2.msra.mxu0 %v565
      %864 = vmatprep.subr.mxu0 0.0
      %865 = vmatpush2.msra.mxu0 %v564
      %866 = vmatprep.subr.mxu0 0.0
      %867 = vmatpush2.msra.mxu0 %v563
      %868 = vmatprep.subr.mxu0 0.0
      %869 = vmatpush2.msra.mxu0 %v562
      %870 = vmatprep.subr.mxu0 0.0
      %871 = vmatpush2.msra.mxu0 %v561
      %872 = vmatprep.subr.mxu0 0.0
      %873 = vmatpush2.msra.mxu0 %v560
      %874 = vmatprep.subr.mxu0 0.0
      %875 = vmatpush2.msra.mxu0 %v559
      %876 = vmatprep.subr.mxu0 0.0
      %877 = vmatpush2.msra.mxu0 %v558
      %878 = vmatprep.subr.mxu0 0.0
      %879 = vmatpush2.msra.mxu0 %v557
      %880 = vmatprep.subr.mxu0 0.0
      %881 = vmatpush2.msra.mxu0 %v556
      %882 = vmatprep.subr.mxu0 0.0
      %883 = vmatpush2.msra.mxu0 %v555
      %884 = vmatprep.subr.mxu0 0.0
      %885 = vmatpush2.msra.mxu0 %v554
      %886 = vmatprep.subr.mxu0 0.0
      %887 = vmatpush2.msra.mxu0 %v553
      %888 = vmatprep.subr.mxu0 0.0
      %889 = vmatpush2.msra.mxu0 %v552
      %890 = vmatprep.mubr.f32.mxu0 %v405
      %891 = vmatmul.mubr.f32.gmra.mxu0 %v404
      %v892 = vpop.f32.mrf.mxu0
      %v893 = vadd.f32 %v788, %v892
      %v894 = vpop.f32.mrf.mxu0
      %895 = vmatprep.mubr.f32.mxu0 %v414
      %896 = vmatmul.mubr.f32.gmra.mxu0 %v413
      %v897 = vpop.f32.mrf.mxu0
      %v898 = vadd.f32 %v793, %v897
      %v899 = vpop.f32.mrf.mxu0
      %900 = vmatprep.mubr.f32.mxu0 %v423
      %901 = vmatmul.mubr.f32.gmra.mxu0 %v422
      %v902 = vpop.f32.mrf.mxu0
      %v903 = vadd.f32 %v798, %v902
      %v904 = vpop.f32.mrf.mxu0
      %905 = vmatprep.mubr.f32.mxu0 %v432
      %906 = vmatmul.mubr.f32.gmra.mxu0 %v431
      %v907 = vpop.f32.mrf.mxu0
      %v908 = vadd.f32 %v803, %v907
      %v909 = vpop.f32.mrf.mxu0
      %910 = vmatprep.mubr.f32.mxu0 %v441
      %911 = vmatmul.mubr.f32.gmra.mxu0 %v440
      %v912 = vpop.f32.mrf.mxu0
      %v913 = vadd.f32 %v808, %v912
      %v914 = vpop.f32.mrf.mxu0
      %915 = vmatprep.mubr.f32.mxu0 %v450
      %916 = vmatmul.mubr.f32.gmra.mxu0 %v449
      %v917 = vpop.f32.mrf.mxu0
      %v918 = vadd.f32 %v813, %v917
      %v919 = vpop.f32.mrf.mxu0
      %920 = vmatprep.mubr.f32.mxu0 %v459
      %921 = vmatmul.mubr.f32.gmra.mxu0 %v458
      %v922 = vpop.f32.mrf.mxu0
      %v923 = vadd.f32 %v818, %v922
      %v924 = vpop.f32.mrf.mxu0
      %925 = vmatprep.mubr.f32.mxu0 %v468
      %926 = vmatmul.mubr.f32.gmra.mxu0 %v467
      %v927 = vpop.f32.mrf.mxu0
      %v928 = vadd.f32 %v823, %v927
      %v929 = vpop.f32.mrf.mxu0
      %930 = vdwg.mxu0
      %931 = vmatprep.subr.mxu0 0.0
      %932 = vmatpush1.msra.mxu0 %v583
      %933 = vmatprep.subr.mxu0 0.0
      %934 = vmatpush1.msra.mxu0 %v582
      %935 = vmatprep.subr.mxu0 0.0
      %936 = vmatpush1.msra.mxu0 %v581
      %937 = vmatprep.subr.mxu0 0.0
      %938 = vmatpush1.msra.mxu0 %v580
      %939 = vmatprep.subr.mxu0 0.0
      %940 = vmatpush1.msra.mxu0 %v579
      %941 = vmatprep.subr.mxu0 0.0
      %942 = vmatpush1.msra.mxu0 %v578
      %943 = vmatprep.subr.mxu0 0.0
      %944 = vmatpush1.msra.mxu0 %v577
      %945 = vmatprep.subr.mxu0 0.0
      %946 = vmatpush1.msra.mxu0 %v576
      %947 = vmatprep.subr.mxu0 0.0
      %948 = vmatpush1.msra.mxu0 %v575
      %949 = vmatprep.subr.mxu0 0.0
      %950 = vmatpush1.msra.mxu0 %v574
      %951 = vmatprep.subr.mxu0 0.0
      %952 = vmatpush1.msra.mxu0 %v573
      %953 = vmatprep.subr.mxu0 0.0
      %954 = vmatpush1.msra.mxu0 %v572
      %955 = vmatprep.subr.mxu0 0.0
      %956 = vmatpush1.msra.mxu0 %v571
      %957 = vmatprep.subr.mxu0 0.0
      %958 = vmatpush1.msra.mxu0 %v570
      %959 = vmatprep.subr.mxu0 0.0
      %960 = vmatpush1.msra.mxu0 %v569
      %961 = vmatprep.subr.mxu0 0.0
      %962 = vmatpush1.msra.mxu0 %v568
      %963 = vmatprep.subr.mxu0 0.0
      %964 = vmatpush2.msra.mxu0 %v599
      %965 = vmatprep.subr.mxu0 0.0
      %966 = vmatpush2.msra.mxu0 %v598
      %967 = vmatprep.subr.mxu0 0.0
      %968 = vmatpush2.msra.mxu0 %v597
      %969 = vmatprep.subr.mxu0 0.0
      %970 = vmatpush2.msra.mxu0 %v596
      %971 = vmatprep.subr.mxu0 0.0
      %972 = vmatpush2.msra.mxu0 %v595
      %973 = vmatprep.subr.mxu0 0.0
      %974 = vmatpush2.msra.mxu0 %v594
      %975 = vmatprep.subr.mxu0 0.0
      %976 = vmatpush2.msra.mxu0 %v593
      %977 = vmatprep.subr.mxu0 0.0
      %978 = vmatpush2.msra.mxu0 %v592
      %979 = vmatprep.subr.mxu0 0.0
      %980 = vmatpush2.msra.mxu0 %v591
      %981 = vmatprep.subr.mxu0 0.0
      %982 = vmatpush2.msra.mxu0 %v590
      %983 = vmatprep.subr.mxu0 0.0
      %984 = vmatpush2.msra.mxu0 %v589
      %985 = vmatprep.subr.mxu0 0.0
      %986 = vmatpush2.msra.mxu0 %v588
      %987 = vmatprep.subr.mxu0 0.0
      %988 = vmatpush2.msra.mxu0 %v587
      %989 = vmatprep.subr.mxu0 0.0
      %990 = vmatpush2.msra.mxu0 %v586
      %991 = vmatprep.subr.mxu0 0.0
      %992 = vmatpush2.msra.mxu0 %v585
      %993 = vmatprep.subr.mxu0 0.0
      %994 = vmatpush2.msra.mxu0 %v584
      %995 = vmatprep.mubr.f32.mxu0 %v407
      %996 = vmatmul.mubr.f32.gmra.mxu0 %v406
      %v997 = vpop.f32.mrf.mxu0
      %v998 = vadd.f32 %v893, %v997
      %v999 = vpop.f32.mrf.mxu0
      %1000 = vmatprep.mubr.f32.mxu0 %v416
      %1001 = vmatmul.mubr.f32.gmra.mxu0 %v415
      %v1002 = vpop.f32.mrf.mxu0
      %v1003 = vadd.f32 %v898, %v1002
      %v1004 = vpop.f32.mrf.mxu0
      %1005 = vmatprep.mubr.f32.mxu0 %v425
      %1006 = vmatmul.mubr.f32.gmra.mxu0 %v424
      %v1007 = vpop.f32.mrf.mxu0
      %v1008 = vadd.f32 %v903, %v1007
      %v1009 = vpop.f32.mrf.mxu0
      %1010 = vmatprep.mubr.f32.mxu0 %v434
      %1011 = vmatmul.mubr.f32.gmra.mxu0 %v433
      %v1012 = vpop.f32.mrf.mxu0
      %v1013 = vadd.f32 %v908, %v1012
      %v1014 = vpop.f32.mrf.mxu0
      %1015 = vmatprep.mubr.f32.mxu0 %v443
      %1016 = vmatmul.mubr.f32.gmra.mxu0 %v442
      %v1017 = vpop.f32.mrf.mxu0
      %v1018 = vadd.f32 %v913, %v1017
      %v1019 = vpop.f32.mrf.mxu0
      %1020 = vmatprep.mubr.f32.mxu0 %v452
      %1021 = vmatmul.mubr.f32.gmra.mxu0 %v451
      %v1022 = vpop.f32.mrf.mxu0
      %v1023 = vadd.f32 %v918, %v1022
      %v1024 = vpop.f32.mrf.mxu0
      %1025 = vmatprep.mubr.f32.mxu0 %v461
      %1026 = vmatmul.mubr.f32.gmra.mxu0 %v460
      %v1027 = vpop.f32.mrf.mxu0
      %v1028 = vadd.f32 %v923, %v1027
      %v1029 = vpop.f32.mrf.mxu0
      %1030 = vmatprep.mubr.f32.mxu0 %v470
      %1031 = vmatmul.mubr.f32.gmra.mxu0 %v469
      %v1032 = vpop.f32.mrf.mxu0
      %v1033 = vadd.f32 %v928, %v1032
      %v1034 = vpop.f32.mrf.mxu0
      %1035 = vdwg.mxu0
      %1036 = vmatprep.subr.mxu0 0.0
      %1037 = vmatpush1.msra.mxu0 %v615
      %1038 = vmatprep.subr.mxu0 0.0
      %1039 = vmatpush1.msra.mxu0 %v614
      %1040 = vmatprep.subr.mxu0 0.0
      %1041 = vmatpush1.msra.mxu0 %v613
      %1042 = vmatprep.subr.mxu0 0.0
      %1043 = vmatpush1.msra.mxu0 %v612
      %1044 = vmatprep.subr.mxu0 0.0
      %1045 = vmatpush1.msra.mxu0 %v611
      %1046 = vmatprep.subr.mxu0 0.0
      %1047 = vmatpush1.msra.mxu0 %v610
      %1048 = vmatprep.subr.mxu0 0.0
      %1049 = vmatpush1.msra.mxu0 %v609
      %1050 = vmatprep.subr.mxu0 0.0
      %1051 = vmatpush1.msra.mxu0 %v608
      %1052 = vmatprep.subr.mxu0 0.0
      %1053 = vmatpush1.msra.mxu0 %v607
      %1054 = vmatprep.subr.mxu0 0.0
      %1055 = vmatpush1.msra.mxu0 %v606
      %1056 = vmatprep.subr.mxu0 0.0
      %1057 = vmatpush1.msra.mxu0 %v605
      %1058 = vmatprep.subr.mxu0 0.0
      %1059 = vmatpush1.msra.mxu0 %v604
      %1060 = vmatprep.subr.mxu0 0.0
      %1061 = vmatpush1.msra.mxu0 %v603
      %1062 = vmatprep.subr.mxu0 0.0
      %1063 = vmatpush1.msra.mxu0 %v602
      %1064 = vmatprep.subr.mxu0 0.0
      %1065 = vmatpush1.msra.mxu0 %v601
      %1066 = vmatprep.subr.mxu0 0.0
      %1067 = vmatpush1.msra.mxu0 %v600
      %1068 = vmatprep.subr.mxu0 0.0
      %1069 = vmatpush2.msra.mxu0 0.0
      %1070 = vmatprep.subr.mxu0 0.0
      %1071 = vmatpush2.msra.mxu0 0.0
      %1072 = vmatprep.subr.mxu0 0.0
      %1073 = vmatpush2.msra.mxu0 0.0
      %1074 = vmatprep.subr.mxu0 0.0
      %1075 = vmatpush2.msra.mxu0 0.0
      %1076 = vmatprep.subr.mxu0 0.0
      %1077 = vmatpush2.msra.mxu0 0.0
      %1078 = vmatprep.subr.mxu0 0.0
      %1079 = vmatpush2.msra.mxu0 0.0
      %1080 = vmatprep.subr.mxu0 0.0
      %1081 = vmatpush2.msra.mxu0 0.0
      %1082 = vmatprep.subr.mxu0 0.0
      %1083 = vmatpush2.msra.mxu0 0.0
      %1084 = vmatprep.subr.mxu0 0.0
      %1085 = vmatpush2.msra.mxu0 0.0
      %1086 = vmatprep.subr.mxu0 0.0
      %1087 = vmatpush2.msra.mxu0 0.0
      %1088 = vmatprep.subr.mxu0 0.0
      %1089 = vmatpush2.msra.mxu0 0.0
      %1090 = vmatprep.subr.mxu0 0.0
      %1091 = vmatpush2.msra.mxu0 0.0
      %1092 = vmatprep.subr.mxu0 0.0
      %1093 = vmatpush2.msra.mxu0 0.0
      %1094 = vmatprep.subr.mxu0 0.0
      %1095 = vmatpush2.msra.mxu0 0.0
      %1096 = vmatprep.subr.mxu0 0.0
      %1097 = vmatpush2.msra.mxu0 0.0
      %1098 = vmatprep.subr.mxu0 0.0
      %1099 = vmatpush2.msra.mxu0 0.0
      %1100 = vmatprep.mubr.f32.mxu0 0.0
      %1101 = vmatmul.mubr.f32.gmra.mxu0 %v408
      %v1102 = vpop.f32.mrf.mxu0
      %v1103 = vadd.f32 %v998, %v1102
      %v1104 = vpop.f32.mrf.mxu0
      %1105 = vmatprep.mubr.f32.mxu0 0.0
      %1106 = vmatmul.mubr.f32.gmra.mxu0 %v417
      %v1107 = vpop.f32.mrf.mxu0
      %v1108 = vadd.f32 %v1003, %v1107
      %v1109 = vpop.f32.mrf.mxu0
      %1110 = vmatprep.mubr.f32.mxu0 0.0
      %1111 = vmatmul.mubr.f32.gmra.mxu0 %v426
      %v1112 = vpop.f32.mrf.mxu0
      %v1113 = vadd.f32 %v1008, %v1112
      %v1114 = vpop.f32.mrf.mxu0
      %1115 = vmatprep.mubr.f32.mxu0 0.0
      %1116 = vmatmul.mubr.f32.gmra.mxu0 %v435
      %v1117 = vpop.f32.mrf.mxu0
      %v1118 = vadd.f32 %v1013, %v1117
      %v1119 = vpop.f32.mrf.mxu0
      %1120 = vmatprep.mubr.f32.mxu0 0.0
      %1121 = vmatmul.mubr.f32.gmra.mxu0 %v444
      %v1122 = vpop.f32.mrf.mxu0
      %v1123 = vadd.f32 %v1018, %v1122
      %v1124 = vpop.f32.mrf.mxu0
      %1125 = vmatprep.mubr.f32.mxu0 0.0
      %1126 = vmatmul.mubr.f32.gmra.mxu0 %v453
      %v1127 = vpop.f32.mrf.mxu0
      %v1128 = vadd.f32 %v1023, %v1127
      %v1129 = vpop.f32.mrf.mxu0
      %1130 = vmatprep.mubr.f32.mxu0 0.0
      %1131 = vmatmul.mubr.f32.gmra.mxu0 %v462
      %v1132 = vpop.f32.mrf.mxu0
      %v1133 = vadd.f32 %v1028, %v1132
      %v1134 = vpop.f32.mrf.mxu0
      %1135 = vmatprep.mubr.f32.mxu0 0.0
      %1136 = vmatmul.mubr.f32.gmra.mxu0 %v471
      %v1137 = vpop.f32.mrf.mxu0
      %v1138 = vadd.f32 %v1033, %v1137
      %v1139 = vpop.f32.mrf.mxu0
      %1140 = vdwg.mxu0
      %1141 = vst [vmem:[%s168] sm:$0xff] %v1103
      %1142 = vst [vmem:[%s168 + $0x8] sm:$0xff] %v1108
      %1143 = vst [vmem:[%s168 + $0x10] sm:$0xff] %v1113
      %1144 = vst [vmem:[%s168 + $0x18] sm:$0xff] %v1118
      %1145 = vst [vmem:[%s168 + $0x20] sm:$0xff] %v1123
      %1146 = vst [vmem:[%s168 + $0x28] sm:$0xff] %v1128
      %1147 = vst [vmem:[%s168 + $0x30] sm:$0xff] %v1133
      %1148 = vst [vmem:[%s168 + $0x38] sm:$0xff] %v1138
      %p1149 = scmp.eq.s32.totalorder %s15, 0
      // Predicated region
      $region29: #{down2d_forward.3} parent=27 // pred_check
        %p1150 = pneg %p1149
      $region30: #{down2d_forward.3} parent=27 // pred_check_branch
        %1152 = sbr.rel (%p1150) target = $region32
      $region31: #{down2d_forward.3} parent=27 // pred_region
        %1153 = vst [vmem:[%s3] sm:$0x3] 0.0
      $region32: #{down2d_forward.3} parent=27 // pred_fallthru
        _
      %v1154 = vld [vmem:[%s3] sm:$0x1]
      %v1155 = vadd.f32 %v1103, %v1108
      %v1156 = vadd.f32 %v1155, %v1113
      %v1157 = vadd.f32 %v1156, %v1118
      %v1158 = vadd.f32 %v1157, %v1123
      %v1159 = vadd.f32 %v1158, %v1128
      %v1160 = vadd.f32 %v1159, %v1133
      %v1161 = vadd.f32 %v1160, %v1138
      %v1162 = vrot.slane %v1161, 4
      %v1163 = vadd.f32 %v1161, %v1162
      %v1164 = vrot.slane %v1163, 2
      %v1165 = vadd.f32 %v1163, %v1164
      %v1166 = vrot.slane %v1165, 1
      %v1167 = vadd.f32 %v1165, %v1166
      %v1168 = vadd.f32 %v1154, %v1167
      %1169 = vst [vmem:[%s3] sm:$0x1] %v1168
      %v1170 = vld [vmem:[%s3 + $0x1] sm:$0x1]
      %v1171 = vmul.f32 %v1103, %v1103
      %v1172 = vmul.f32 %v1108, %v1108
      %v1173 = vmul.f32 %v1113, %v1113
      %v1174 = vmul.f32 %v1118, %v1118
      %v1175 = vmul.f32 %v1123, %v1123
      %v1176 = vmul.f32 %v1128, %v1128
      %v1177 = vmul.f32 %v1133, %v1133
      %v1178 = vmul.f32 %v1138, %v1138
      %v1179 = vadd.f32 %v1171, %v1172
      %v1180 = vadd.f32 %v1179, %v1173
      %v1181 = vadd.f32 %v1180, %v1174
      %v1182 = vadd.f32 %v1181, %v1175
      %v1183 = vadd.f32 %v1182, %v1176
      %v1184 = vadd.f32 %v1183, %v1177
      %v1185 = vadd.f32 %v1184, %v1178
      %v1186 = vrot.slane %v1185, 4
      %v1187 = vadd.f32 %v1185, %v1186
      %v1188 = vrot.slane %v1187, 2
      %v1189 = vadd.f32 %v1187, %v1188
      %v1190 = vrot.slane %v1189, 1
      %v1191 = vadd.f32 %v1189, %v1190
      %v1192 = vadd.f32 %v1170, %v1191
      %1193 = vst [vmem:[%s3 + $0x1] sm:$0x1] %v1192
      %p1194 = scmp.lt.s32.totalorder %s15, 1
      %s1195 = scalar_select %p1194, %s15, 1
      %s1196 = smul.addr %s1195, 8
      %s1197 = smul.addr %s1196, 8
      %s1198 = scalar_lea.vmem %s2, %s1197
      // Predicated region
      $region33: #{down2d_forward.3} parent=27 // pred_check
        %p1199 = pneg %p80
      $region34: #{down2d_forward.3} parent=27 // pred_check_branch
        %1201 = sbr.rel (%p1199) target = $region36
      $region35: #{down2d_forward.3} parent=27 // pred_region
        _
      $region36: #{down2d_forward.3} parent=27 // pred_fallthru
        _
      // Predicated region
      $region37: #{down2d_forward.3} parent=27 // pred_check
        %p1202 = pneg %p101
      $region38: #{down2d_forward.3} parent=27 // pred_check_branch
        %1204 = sbr.rel (%p1202) target = $region40
      $region39: #{down2d_forward.3} parent=27 // pred_region
        _
      $region40: #{down2d_forward.3} parent=27 // pred_fallthru
        _
      // Predicated region
      $region41: #{down2d_forward.3} parent=27 // pred_check
        %p1205 = pneg %p101
      $region42: #{down2d_forward.3} parent=27 // pred_check_branch
        %1207 = sbr.rel (%p1205) target = $region44
      $region43: #{down2d_forward.3} parent=27 // pred_region
        _
      $region44: #{down2d_forward.3} parent=27 // pred_fallthru
        _
    $region28: #{down2d_forward.3} parent=5 // pred_fallthru
      _
    %p1208 = scmp.le.s32.totalorder 2, %s10
    // Predicated region
    $region45: #{down2d_forward.3} parent=5 // pred_check
      %p1209 = pneg %p1208
    $region46: #{down2d_forward.3} parent=5 // pred_check_branch
      %1211 = sbr.rel (%p1209) target = $region48
    $region47: #{down2d_forward.3} parent=5 // pred_region
      %s1212 = ssub.s32 %s10, 2
      // Predicated region
      $region49: #{down2d_forward.3} parent=47 // pred_check
        %p1213 = pneg %p86
      $region50: #{down2d_forward.3} parent=47 // pred_check_branch
        %1215 = sbr.rel (%p1213) target = $region52
      $region51: #{down2d_forward.3} parent=47 // pred_region
        %p1216 = scmp.lt.s32.totalorder %s16, 1
        %s1217 = scalar_select %p1216, %s16, 1
        %s1218 = smul.addr %s1217, 8
        %s1219 = smul.addr %s1218, 8
        %s1220 = scalar_lea.vmem %s2, %s1219
      $region52: #{down2d_forward.3} parent=47 // pred_fallthru
        _
    $region48: #{down2d_forward.3} parent=5 // pred_fallthru
      _
  $region6: #{down2d_forward.3} parent=0 // loop_footer
    %s14 = sadd.s32 1, %s10
  $region7: #{down2d_forward.3} parent=0 // loop_footer_branch
    %9 = sbr.rel target = $region3
  $region8: #{down2d_forward.3} parent=0 // loop_exit
    _

</llo_original>
